<compile_context>
chip_gen: v7x
topology: tpu7x:2x2x1
jax: 0.10.0
libtpu: 0.0.40
codegen_flags: <defaults>
</compile_context>

<pallas_src>
import numpy as np

import jax
import jax.numpy as jnp
from jax.experimental import pallas as pl
from jax.experimental.pallas import tpu as pltpu


# ----------------------------------------------------------------------------
# Fused Pallas kernel: whole LeNetTanh forward for BT images per grid step.
# ----------------------------------------------------------------------------
def _lenet_tanh_fused_kernel(
    x_ref,    # (BT*32, 96)    bf16  stacked slabs: row b*32+h, lane w*3+c
    d1_ref,   # (5, 96, 168)   bf16  conv1 banded weights, one per vertical tap
    cb1_ref,  # (1, 168)       f32   conv1 bias tiled over width
    rp1_ref,  # (BT*14, BT*32) bf16  pool1 row-avg (block-diag, +4 offset folded)
    pc1_ref,  # (168, 84)      bf16  pool1 column-avg (shared across batch)
    d2_ref,   # (5, 84, 160)   bf16  conv2 banded weights
    cb2_ref,  # (1, 160)       f32   conv2 bias tiled over width
    l_ref,    # (5*BT, BT*14)  bf16  pool2 row-avg fused with fc1 y-reorder
    w1_ref,   # (5, 160, 120)  f32   fc1 weights with pc2 + flatten pre-folded
    b1_ref,   # (1, 120)       f32
    w2_ref,   # (120, 84)      f32
    b2_ref,   # (1, 84)        f32
    w3_ref,   # (84, 10)       f32
    b3_ref,   # (1, 10)        f32
    out_ref,  # (BT, 10)       f32
):
    f32, bf16 = jnp.float32, jnp.bfloat16
    n1 = x_ref.shape[0]          # BT*32 rows (conv1 stage)
    bt = n1 // 32
    n2 = bt * 14                 # conv2 stage rows

    s = x_ref[...]                                               # (BT*32, 96) bf16

    # ---- conv1 (5x5 valid): 5 banded MXU dots; vertical taps via XLU sublane
    #      rolls of the f32 partials (valid conv row y lands at row y+4). -------
    acc1 = jnp.zeros((n1, 168), f32)
    for i in range(5):
        f = jnp.dot(s, d1_ref[i], preferred_element_type=f32)    # (BT*32, 168)
        if i < 4:
            f = pltpu.roll(f, shift=4 - i, axis=0)
        acc1 = acc1 + f
    t1 = jnp.tanh(acc1 + cb1_ref[...]).astype(bf16)              # (BT*32, 168)

    # ---- avg-pool 2x2: block-diag row matrix (crops + offsets), shared column
    #      matrix. --------------------------------------------------------------
    p1 = jnp.dot(rp1_ref[...], t1, preferred_element_type=f32)   # (BT*14, 168)
    p1 = jnp.dot(p1.astype(bf16), pc1_ref[...],
                 preferred_element_type=f32).astype(bf16)        # (BT*14, 84)

    # ---- conv2 (5x5 valid), same scheme. ---------------------------------------
    acc2 = jnp.zeros((n2, 160), f32)
    for i in range(5):
        f = jnp.dot(p1, d2_ref[i], preferred_element_type=f32)   # (BT*14, 160)
        if i < 4:
            f = pltpu.roll(f, shift=4 - i, axis=0)
        acc2 = acc2 + f
    t2 = jnp.tanh(acc2 + cb2_ref[...]).astype(bf16)              # (BT*14, 160)

    # ---- pool2 rows + fc1 flatten reorder fused in l_ref; pc2 folded into w1. --
    v = jnp.dot(l_ref[...], t2, preferred_element_type=f32)      # (5*BT, 160)

    h1 = b1_ref[...]                                             # (1, 120) -> bcast
    for y in range(5):
        h1 = h1 + jnp.dot(v[y * bt:(y + 1) * bt, :], w1_ref[y],
                          preferred_element_type=f32)            # (BT, 120)
    h1 = jnp.tanh(h1)

    h2 = jnp.tanh(jnp.dot(h1, w2_ref[...], preferred_element_type=f32)
                  + b2_ref[...])                                 # (BT, 84)
    out = jnp.dot(h2, w3_ref[...], preferred_element_type=f32) + b3_ref[...]
    out_ref[...] = out.astype(out_ref.dtype)


# ----------------------------------------------------------------------------
# Host-side one-time parameter packing (PyTorch layout -> kernel constants).
# ----------------------------------------------------------------------------
def pack_params(params, *, block_batch=8):
    assert block_batch % 8 == 0, "block_batch must be a multiple of 8"
    bt = block_batch
    f32 = np.float32

    c1w = np.asarray(params["conv1_w"], f32)     # (6, 3, 5, 5)
    c1b = np.asarray(params["conv1_b"], f32)
    c2w = np.asarray(params["conv2_w"], f32)     # (16, 6, 5, 5)
    c2b = np.asarray(params["conv2_b"], f32)
    fc1_w = np.asarray(params["fc1_w"], f32)     # (120, 400)
    fc1_b = np.asarray(params["fc1_b"], f32)
    fc2_w = np.asarray(params["fc2_w"], f32)     # (84, 120)
    fc2_b = np.asarray(params["fc2_b"], f32)
    fc3_w = np.asarray(params["fc3_w"], f32)     # (10, 84)
    fc3_b = np.asarray(params["fc3_b"], f32)

    def banded(w, in_w, out_w):
        # w: (Cout, Cin, 5, 5) -> (5, in_w*Cin, out_w*Cout) with
        # D_i[wp*Cin + c, x*Cout + co] = w[co, c, i, wp - x]  (0 <= wp - x < 5)
        cout, cin = w.shape[:2]
        out = np.zeros((5, in_w * cin, out_w * cout), f32)
        for i in range(5):
            for j in range(5):
                out[i] += np.kron(np.eye(in_w, out_w, k=-j, dtype=f32),
                                  w[:, :, i, j].T)
        return out

    # pool1: block-diag row matrix; valid conv1 row y sits at stacked row y+4.
    rp_img = np.zeros((14, 32), f32)
    for r in range(14):
        rp_img[r, 2 * r + 4] = 0.25
        rp_img[r, 2 * r + 5] = 0.25
    rp1 = np.kron(np.eye(bt, dtype=f32), rp_img)                 # (bt*14, bt*32)
    pc1 = np.kron(np.repeat(np.eye(14, dtype=f32), 2, axis=0),
                  np.eye(6, dtype=f32))                          # (168, 84)

    # pool2 row-average fused with the fc1 per-y block reorder (+4 offset).
    lmat = np.zeros((5 * bt, bt * 14), f32)
    for y in range(5):
        for b in range(bt):
            lmat[y * bt + b, b * 14 + 2 * y + 4] = 0.25
            lmat[y * bt + b, b * 14 + 2 * y + 5] = 0.25
    pc2 = np.kron(np.repeat(np.eye(5, dtype=f32), 2, axis=0),
                  np.eye(16, dtype=f32))                         # (160, 80)

    # fc1 weight, permuted from PyTorch's (c, y, x) flatten order to the slab
    # order (y, x*16+c), then the pool2 column-average folded in.
    w1blk = fc1_w.reshape(120, 16, 5, 5).transpose(2, 3, 1, 0).reshape(5, 80, 120)
    w1p = np.einsum("gf,yfo->ygo", pc2, w1blk)                   # (5, 160, 120)

    bf16 = jnp.bfloat16
    f32j = jnp.float32
    return {
        "d1": jnp.asarray(banded(c1w, 32, 28), bf16),
        "cb1": jnp.asarray(np.tile(c1b, 28)[None, :], f32j),
        "rp1": jnp.asarray(rp1, bf16),
        "pc1": jnp.asarray(pc1, bf16),
        "d2": jnp.asarray(banded(c2w, 14, 10), bf16),
        "cb2": jnp.asarray(np.tile(c2b, 10)[None, :], f32j),
        "l": jnp.asarray(lmat, bf16),
        "w1": jnp.asarray(w1p, f32j),
        "b1": jnp.asarray(fc1_b[None, :], f32j),
        "w2": jnp.asarray(fc2_w.T.copy(), f32j),
        "b2": jnp.asarray(fc2_b[None, :], f32j),
        "w3": jnp.asarray(fc3_w.T.copy(), f32j),
        "b3": jnp.asarray(fc3_b[None, :], f32j),
    }


# ----------------------------------------------------------------------------
# Forward pass: one fused pallas_call, grid over batch tiles of BT images.
# ----------------------------------------------------------------------------
def lenet_tanh_forward(packed, x):
    B = x.shape[0]
    assert x.shape[1:] == (3, 32, 32), x.shape
    bt = packed["rp1"].shape[0] // 14            # batch tile, baked into rp1 / l
    bp = ((B + bt - 1) // bt) * bt

    # NCHW -> channels-last slab (h, w*3 + c); fused by XLA with the jit.
    xs = jnp.transpose(x, (0, 2, 3, 1)).reshape(B, 32, 96)
    if bp != B:
        xs = jnp.pad(xs, ((0, bp - B), (0, 0), (0, 0)))
    xs = xs.reshape(bp * 32, 96).astype(jnp.bfloat16)

    def const(a):
        return pl.BlockSpec(a.shape, lambda g, _nd=a.ndim: (0,) * _nd)

    operands = (packed["d1"], packed["cb1"], packed["rp1"], packed["pc1"],
                packed["d2"], packed["cb2"], packed["l"], packed["w1"],
                packed["b1"], packed["w2"], packed["b2"], packed["w3"],
                packed["b3"])

    out = pl.pallas_call(
        _lenet_tanh_fused_kernel,
        out_shape=jax.ShapeDtypeStruct((bp, 10), jnp.float32),
        grid=(bp // bt,),
        in_specs=[pl.BlockSpec((bt * 32, 96), lambda g: (g, 0))]
                 + [const(a) for a in operands],
        out_specs=pl.BlockSpec((bt, 10), lambda g: (g, 0)),
        compiler_params=pltpu.CompilerParams(
            dimension_semantics=("parallel",),
            vmem_limit_bytes=32 * 1024 * 1024,
        ),
    )(xs, *operands)
    return out[:B]


# ----------------------------------------------------------------------------
# Parameter init (PyTorch default layout + init) and a pure-JAX reference.
# ----------------------------------------------------------------------------
def init_params(key):
    ks = jax.random.split(key, 10)

    def u(k, shape, fan_in):
        bound = 1.0 / jnp.sqrt(fan_in)
        return jax.random.uniform(k, shape, jnp.float32, -bound, bound)

    return {
        "conv1_w": u(ks[0], (6, 3, 5, 5), 3 * 5 * 5),
        "conv1_b": u(ks[1], (6,), 3 * 5 * 5),
        "conv2_w": u(ks[2], (16, 6, 5, 5), 6 * 5 * 5),
        "conv2_b": u(ks[3], (16,), 6 * 5 * 5),
        "fc1_w": u(ks[4], (120, 16 * 5 * 5), 16 * 5 * 5),
        "fc1_b": u(ks[5], (120,), 16 * 5 * 5),
        "fc2_w": u(ks[6], (84, 120), 120),
        "fc2_b": u(ks[7], (84,), 120),
        "fc3_w": u(ks[8], (10, 84), 84),
        "fc3_b": u(ks[9], (10,), 84),
    }


def lenet_tanh_reference(params, x):
    hp = jax.lax.Precision.HIGHEST

    def conv(y, w, b):
        y = jax.lax.conv_general_dilated(
            y, w, (1, 1), "VALID",
            dimension_numbers=("NCHW", "OIHW", "NCHW"), precision=hp)
        return y + b[None, :, None, None]

    def pool(y):
        return 0.25 * (y[:, :, 0::2, 0::2] + y[:, :, 0::2, 1::2]
                       + y[:, :, 1::2, 0::2] + y[:, :, 1::2, 1::2])

    y = pool(jnp.tanh(conv(x, params["conv1_w"], params["conv1_b"])))
    y = pool(jnp.tanh(conv(y, params["conv2_w"], params["conv2_b"])))
    y = y.reshape(y.shape[0], -1)
    y = jnp.tanh(jnp.dot(y, params["fc1_w"].T, precision=hp) + params["fc1_b"])
    y = jnp.tanh(jnp.dot(y, params["fc2_w"].T, precision=hp) + params["fc2_b"])
    return jnp.dot(y, params["fc3_w"].T, precision=hp) + params["fc3_b"]


if __name__ == "__main__":
    key = jax.random.PRNGKey(0)
    k_params, k_x = jax.random.split(key)
    params = init_params(k_params)
    packed = pack_params(params, block_batch=8)   # one-time, host-side repacking
    # LeNet requires 3x32x32 inputs (16*5*5 flatten after two conv5 + pool2 stages).
    x = jax.random.normal(k_x, (4, 3, 32, 32), dtype=jnp.float32)

    fwd = jax.jit(lenet_tanh_forward)
    out = jax.block_until_ready(fwd(packed, x))
    assert out.shape == (4, 10), out.shape
    assert bool(jnp.all(jnp.isfinite(out)))

    # Cross-check against a plain-JAX reference of the PyTorch module.
    # (Tolerance covers bf16 MXU operands for the conv/pool dots; tanh saturation
    #  keeps the propagated error small.)
    ref = jax.block_until_ready(lenet_tanh_reference(params, x))
    max_err = float(jnp.max(jnp.abs(out - ref)))
    assert max_err < 5e-2, f"mismatch vs reference: {max_err}"

    print("KERNEL_OK")
</pallas_src>

<mosaic_0001>
module attributes {stable_mosaic.version = 11 : i64} {
  func.func @_lenet_tanh_fused_kernel(%arg0: i32, %arg1: memref<256x96xbf16, #tpu.memory_space<vmem>>, %arg2: memref<5x96x168xbf16, #tpu.memory_space<vmem>>, %arg3: memref<1x168xf32, #tpu.memory_space<vmem>>, %arg4: memref<112x256xbf16, #tpu.memory_space<vmem>>, %arg5: memref<168x84xbf16, #tpu.memory_space<vmem>>, %arg6: memref<5x84x160xbf16, #tpu.memory_space<vmem>>, %arg7: memref<1x160xf32, #tpu.memory_space<vmem>>, %arg8: memref<40x112xbf16, #tpu.memory_space<vmem>>, %arg9: memref<5x160x120xf32, #tpu.memory_space<vmem>>, %arg10: memref<1x120xf32, #tpu.memory_space<vmem>>, %arg11: memref<120x84xf32, #tpu.memory_space<vmem>>, %arg12: memref<1x84xf32, #tpu.memory_space<vmem>>, %arg13: memref<84x10xf32, #tpu.memory_space<vmem>>, %arg14: memref<1x10xf32, #tpu.memory_space<vmem>>, %arg15: memref<8x10xf32, #tpu.memory_space<vmem>>) attributes {dimension_semantics = [#tpu.dimension_semantics<parallel>], iteration_bounds = array<i64: 1>, scalar_prefetch = 0 : i64, scratch_operands = 0 : i64, tpu.core_type = #tpu.core_type<tc>, window_params = [{transform_indices = @transform_0, window_bounds = array<i64: 256, 96>}, {pipeline_mode = #tpu.pipeline_mode<synchronous>, transform_indices = @transform_1, window_bounds = array<i64: 5, 96, 168>}, {pipeline_mode = #tpu.pipeline_mode<synchronous>, transform_indices = @transform_2, window_bounds = array<i64: 1, 168>}, {pipeline_mode = #tpu.pipeline_mode<synchronous>, transform_indices = @transform_3, window_bounds = array<i64: 112, 256>}, {pipeline_mode = #tpu.pipeline_mode<synchronous>, transform_indices = @transform_4, window_bounds = array<i64: 168, 84>}, {pipeline_mode = #tpu.pipeline_mode<synchronous>, transform_indices = @transform_5, window_bounds = array<i64: 5, 84, 160>}, {pipeline_mode = #tpu.pipeline_mode<synchronous>, transform_indices = @transform_6, window_bounds = array<i64: 1, 160>}, {pipeline_mode = #tpu.pipeline_mode<synchronous>, transform_indices = @transform_7, window_bounds = array<i64: 40, 112>}, {pipeline_mode = #tpu.pipeline_mode<synchronous>, transform_indices = @transform_8, window_bounds = array<i64: 5, 160, 120>}, {pipeline_mode = #tpu.pipeline_mode<synchronous>, transform_indices = @transform_9, window_bounds = array<i64: 1, 120>}, {pipeline_mode = #tpu.pipeline_mode<synchronous>, transform_indices = @transform_10, window_bounds = array<i64: 120, 84>}, {pipeline_mode = #tpu.pipeline_mode<synchronous>, transform_indices = @transform_11, window_bounds = array<i64: 1, 84>}, {pipeline_mode = #tpu.pipeline_mode<synchronous>, transform_indices = @transform_12, window_bounds = array<i64: 84, 10>}, {pipeline_mode = #tpu.pipeline_mode<synchronous>, transform_indices = @transform_13, window_bounds = array<i64: 1, 10>}, {transform_indices = @transform_14, window_bounds = array<i64: 8, 10>}]} {
    %c0 = arith.constant 0 : index
    %c0_0 = arith.constant 0 : index
    %0 = vector.load %arg1[%c0, %c0_0] : memref<256x96xbf16, #tpu.memory_space<vmem>>, vector<256x96xbf16>
    %cst = arith.constant 0.000000e+00 : f32
    %1 = vector.broadcast %cst : f32 to vector<256x168xf32>
    %c0_1 = arith.constant 0 : index
    %c0_2 = arith.constant 0 : index
    %c0_3 = arith.constant 0 : index
    %2 = vector.load %arg2[%c0_1, %c0_2, %c0_3] : memref<5x96x168xbf16, #tpu.memory_space<vmem>>, vector<1x96x168xbf16>
    %3 = vector.shape_cast %2 : vector<1x96x168xbf16> to vector<96x168xbf16>
    %cst_4 = arith.constant dense<0.000000e+00> : vector<256x168xf32>
    %4 = tpu.matmul %0, %3, %cst_4 {dimension_numbers = #tpu.dot_dimension_numbers<[1], [0], [0], [1], [0, 0, 1, 1], [], []>} : vector<256x96xbf16>, vector<96x168xbf16>, vector<256x168xf32> -> vector<256x168xf32>
    %c4_i32 = arith.constant 4 : i32
    %5 = tpu.dynamic_rotate %4 by %c4_i32 dim 0 : vector<256x168xf32>, i32 -> vector<256x168xf32>
    %6 = arith.addf %1, %5 : vector<256x168xf32>
    %c1 = arith.constant 1 : index
    %c0_5 = arith.constant 0 : index
    %c0_6 = arith.constant 0 : index
    %7 = vector.load %arg2[%c1, %c0_5, %c0_6] : memref<5x96x168xbf16, #tpu.memory_space<vmem>>, vector<1x96x168xbf16>
    %8 = vector.shape_cast %7 : vector<1x96x168xbf16> to vector<96x168xbf16>
    %cst_7 = arith.constant dense<0.000000e+00> : vector<256x168xf32>
    %9 = tpu.matmul %0, %8, %cst_7 {dimension_numbers = #tpu.dot_dimension_numbers<[1], [0], [0], [1], [0, 0, 1, 1], [], []>} : vector<256x96xbf16>, vector<96x168xbf16>, vector<256x168xf32> -> vector<256x168xf32>
    %c3_i32 = arith.constant 3 : i32
    %10 = tpu.dynamic_rotate %9 by %c3_i32 dim 0 : vector<256x168xf32>, i32 -> vector<256x168xf32>
    %11 = arith.addf %6, %10 : vector<256x168xf32>
    %c2 = arith.constant 2 : index
    %c0_8 = arith.constant 0 : index
    %c0_9 = arith.constant 0 : index
    %12 = vector.load %arg2[%c2, %c0_8, %c0_9] : memref<5x96x168xbf16, #tpu.memory_space<vmem>>, vector<1x96x168xbf16>
    %13 = vector.shape_cast %12 : vector<1x96x168xbf16> to vector<96x168xbf16>
    %cst_10 = arith.constant dense<0.000000e+00> : vector<256x168xf32>
    %14 = tpu.matmul %0, %13, %cst_10 {dimension_numbers = #tpu.dot_dimension_numbers<[1], [0], [0], [1], [0, 0, 1, 1], [], []>} : vector<256x96xbf16>, vector<96x168xbf16>, vector<256x168xf32> -> vector<256x168xf32>
    %c2_i32 = arith.constant 2 : i32
    %15 = tpu.dynamic_rotate %14 by %c2_i32 dim 0 : vector<256x168xf32>, i32 -> vector<256x168xf32>
    %16 = arith.addf %11, %15 : vector<256x168xf32>
    %c3 = arith.constant 3 : index
    %c0_11 = arith.constant 0 : index
    %c0_12 = arith.constant 0 : index
    %17 = vector.load %arg2[%c3, %c0_11, %c0_12] : memref<5x96x168xbf16, #tpu.memory_space<vmem>>, vector<1x96x168xbf16>
    %18 = vector.shape_cast %17 : vector<1x96x168xbf16> to vector<96x168xbf16>
    %cst_13 = arith.constant dense<0.000000e+00> : vector<256x168xf32>
    %19 = tpu.matmul %0, %18, %cst_13 {dimension_numbers = #tpu.dot_dimension_numbers<[1], [0], [0], [1], [0, 0, 1, 1], [], []>} : vector<256x96xbf16>, vector<96x168xbf16>, vector<256x168xf32> -> vector<256x168xf32>
    %c1_i32 = arith.constant 1 : i32
    %20 = tpu.dynamic_rotate %19 by %c1_i32 dim 0 : vector<256x168xf32>, i32 -> vector<256x168xf32>
    %21 = arith.addf %16, %20 : vector<256x168xf32>
    %c4 = arith.constant 4 : index
    %c0_14 = arith.constant 0 : index
    %c0_15 = arith.constant 0 : index
    %22 = vector.load %arg2[%c4, %c0_14, %c0_15] : memref<5x96x168xbf16, #tpu.memory_space<vmem>>, vector<1x96x168xbf16>
    %23 = vector.shape_cast %22 : vector<1x96x168xbf16> to vector<96x168xbf16>
    %cst_16 = arith.constant dense<0.000000e+00> : vector<256x168xf32>
    %24 = tpu.matmul %0, %23, %cst_16 {dimension_numbers = #tpu.dot_dimension_numbers<[1], [0], [0], [1], [0, 0, 1, 1], [], []>} : vector<256x96xbf16>, vector<96x168xbf16>, vector<256x168xf32> -> vector<256x168xf32>
    %25 = arith.addf %21, %24 : vector<256x168xf32>
    %c0_17 = arith.constant 0 : index
    %c0_18 = arith.constant 0 : index
    %26 = vector.load %arg3[%c0_17, %c0_18] : memref<1x168xf32, #tpu.memory_space<vmem>>, vector<1x168xf32>
    %27 = vector.broadcast %26 : vector<1x168xf32> to vector<256x168xf32>
    %28 = arith.addf %25, %27 : vector<256x168xf32>
    %29 = math.tanh %28 : vector<256x168xf32>
    %30 = arith.truncf %29 : vector<256x168xf32> to vector<256x168xbf16>
    %c0_19 = arith.constant 0 : index
    %c0_20 = arith.constant 0 : index
    %31 = vector.load %arg4[%c0_19, %c0_20] : memref<112x256xbf16, #tpu.memory_space<vmem>>, vector<112x256xbf16>
    %cst_21 = arith.constant dense<0.000000e+00> : vector<112x168xf32>
    %32 = tpu.matmul %31, %30, %cst_21 {dimension_numbers = #tpu.dot_dimension_numbers<[1], [0], [0], [1], [0, 0, 1, 1], [], []>} : vector<112x256xbf16>, vector<256x168xbf16>, vector<112x168xf32> -> vector<112x168xf32>
    %33 = arith.truncf %32 : vector<112x168xf32> to vector<112x168xbf16>
    %c0_22 = arith.constant 0 : index
    %c0_23 = arith.constant 0 : index
    %34 = vector.load %arg5[%c0_22, %c0_23] : memref<168x84xbf16, #tpu.memory_space<vmem>>, vector<168x84xbf16>
    %cst_24 = arith.constant dense<0.000000e+00> : vector<112x84xf32>
    %35 = tpu.matmul %33, %34, %cst_24 {dimension_numbers = #tpu.dot_dimension_numbers<[1], [0], [0], [1], [0, 0, 1, 1], [], []>} : vector<112x168xbf16>, vector<168x84xbf16>, vector<112x84xf32> -> vector<112x84xf32>
    %36 = arith.truncf %35 : vector<112x84xf32> to vector<112x84xbf16>
    %cst_25 = arith.constant 0.000000e+00 : f32
    %37 = vector.broadcast %cst_25 : f32 to vector<112x160xf32>
    %c0_26 = arith.constant 0 : index
    %c0_27 = arith.constant 0 : index
    %c0_28 = arith.constant 0 : index
    %38 = vector.load %arg6[%c0_26, %c0_27, %c0_28] : memref<5x84x160xbf16, #tpu.memory_space<vmem>>, vector<1x84x160xbf16>
    %39 = vector.shape_cast %38 : vector<1x84x160xbf16> to vector<84x160xbf16>
    %cst_29 = arith.constant dense<0.000000e+00> : vector<112x160xf32>
    %40 = tpu.matmul %36, %39, %cst_29 {dimension_numbers = #tpu.dot_dimension_numbers<[1], [0], [0], [1], [0, 0, 1, 1], [], []>} : vector<112x84xbf16>, vector<84x160xbf16>, vector<112x160xf32> -> vector<112x160xf32>
    %c4_i32_30 = arith.constant 4 : i32
    %41 = tpu.dynamic_rotate %40 by %c4_i32_30 dim 0 : vector<112x160xf32>, i32 -> vector<112x160xf32>
    %42 = arith.addf %37, %41 : vector<112x160xf32>
    %c1_31 = arith.constant 1 : index
    %c0_32 = arith.constant 0 : index
    %c0_33 = arith.constant 0 : index
    %43 = vector.load %arg6[%c1_31, %c0_32, %c0_33] : memref<5x84x160xbf16, #tpu.memory_space<vmem>>, vector<1x84x160xbf16>
    %44 = vector.shape_cast %43 : vector<1x84x160xbf16> to vector<84x160xbf16>
    %cst_34 = arith.constant dense<0.000000e+00> : vector<112x160xf32>
    %45 = tpu.matmul %36, %44, %cst_34 {dimension_numbers = #tpu.dot_dimension_numbers<[1], [0], [0], [1], [0, 0, 1, 1], [], []>} : vector<112x84xbf16>, vector<84x160xbf16>, vector<112x160xf32> -> vector<112x160xf32>
    %c3_i32_35 = arith.constant 3 : i32
    %46 = tpu.dynamic_rotate %45 by %c3_i32_35 dim 0 : vector<112x160xf32>, i32 -> vector<112x160xf32>
    %47 = arith.addf %42, %46 : vector<112x160xf32>
    %c2_36 = arith.constant 2 : index
    %c0_37 = arith.constant 0 : index
    %c0_38 = arith.constant 0 : index
    %48 = vector.load %arg6[%c2_36, %c0_37, %c0_38] : memref<5x84x160xbf16, #tpu.memory_space<vmem>>, vector<1x84x160xbf16>
    %49 = vector.shape_cast %48 : vector<1x84x160xbf16> to vector<84x160xbf16>
    %cst_39 = arith.constant dense<0.000000e+00> : vector<112x160xf32>
    %50 = tpu.matmul %36, %49, %cst_39 {dimension_numbers = #tpu.dot_dimension_numbers<[1], [0], [0], [1], [0, 0, 1, 1], [], []>} : vector<112x84xbf16>, vector<84x160xbf16>, vector<112x160xf32> -> vector<112x160xf32>
    %c2_i32_40 = arith.constant 2 : i32
    %51 = tpu.dynamic_rotate %50 by %c2_i32_40 dim 0 : vector<112x160xf32>, i32 -> vector<112x160xf32>
    %52 = arith.addf %47, %51 : vector<112x160xf32>
    %c3_41 = arith.constant 3 : index
    %c0_42 = arith.constant 0 : index
    %c0_43 = arith.constant 0 : index
    %53 = vector.load %arg6[%c3_41, %c0_42, %c0_43] : memref<5x84x160xbf16, #tpu.memory_space<vmem>>, vector<1x84x160xbf16>
    %54 = vector.shape_cast %53 : vector<1x84x160xbf16> to vector<84x160xbf16>
    %cst_44 = arith.constant dense<0.000000e+00> : vector<112x160xf32>
    %55 = tpu.matmul %36, %54, %cst_44 {dimension_numbers = #tpu.dot_dimension_numbers<[1], [0], [0], [1], [0, 0, 1, 1], [], []>} : vector<112x84xbf16>, vector<84x160xbf16>, vector<112x160xf32> -> vector<112x160xf32>
    %c1_i32_45 = arith.constant 1 : i32
    %56 = tpu.dynamic_rotate %55 by %c1_i32_45 dim 0 : vector<112x160xf32>, i32 -> vector<112x160xf32>
    %57 = arith.addf %52, %56 : vector<112x160xf32>
    %c4_46 = arith.constant 4 : index
    %c0_47 = arith.constant 0 : index
    %c0_48 = arith.constant 0 : index
    %58 = vector.load %arg6[%c4_46, %c0_47, %c0_48] : memref<5x84x160xbf16, #tpu.memory_space<vmem>>, vector<1x84x160xbf16>
    %59 = vector.shape_cast %58 : vector<1x84x160xbf16> to vector<84x160xbf16>
    %cst_49 = arith.constant dense<0.000000e+00> : vector<112x160xf32>
    %60 = tpu.matmul %36, %59, %cst_49 {dimension_numbers = #tpu.dot_dimension_numbers<[1], [0], [0], [1], [0, 0, 1, 1], [], []>} : vector<112x84xbf16>, vector<84x160xbf16>, vector<112x160xf32> -> vector<112x160xf32>
    %61 = arith.addf %57, %60 : vector<112x160xf32>
    %c0_50 = arith.constant 0 : index
    %c0_51 = arith.constant 0 : index
    %62 = vector.load %arg7[%c0_50, %c0_51] : memref<1x160xf32, #tpu.memory_space<vmem>>, vector<1x160xf32>
    %63 = vector.broadcast %62 : vector<1x160xf32> to vector<112x160xf32>
    %64 = arith.addf %61, %63 : vector<112x160xf32>
    %65 = math.tanh %64 : vector<112x160xf32>
    %66 = arith.truncf %65 : vector<112x160xf32> to vector<112x160xbf16>
    %c0_52 = arith.constant 0 : index
    %c0_53 = arith.constant 0 : index
    %67 = vector.load %arg8[%c0_52, %c0_53] : memref<40x112xbf16, #tpu.memory_space<vmem>>, vector<40x112xbf16>
    %cst_54 = arith.constant dense<0.000000e+00> : vector<40x160xf32>
    %68 = tpu.matmul %67, %66, %cst_54 {dimension_numbers = #tpu.dot_dimension_numbers<[1], [0], [0], [1], [0, 0, 1, 1], [], []>} : vector<40x112xbf16>, vector<112x160xbf16>, vector<40x160xf32> -> vector<40x160xf32>
    %c0_55 = arith.constant 0 : index
    %c0_56 = arith.constant 0 : index
    %69 = vector.load %arg10[%c0_55, %c0_56] : memref<1x120xf32, #tpu.memory_space<vmem>>, vector<1x120xf32>
    %70 = vector.extract_strided_slice %68 {offsets = [0, 0], sizes = [8, 160], strides = [1, 1]} : vector<40x160xf32> to vector<8x160xf32>
    %c0_57 = arith.constant 0 : index
    %c0_58 = arith.constant 0 : index
    %c0_59 = arith.constant 0 : index
    %71 = vector.load %arg9[%c0_57, %c0_58, %c0_59] : memref<5x160x120xf32, #tpu.memory_space<vmem>>, vector<1x160x120xf32>
    %72 = vector.shape_cast %71 : vector<1x160x120xf32> to vector<160x120xf32>
    %cst_60 = arith.constant dense<0.000000e+00> : vector<8x120xf32>
    %73 = tpu.matmul %70, %72, %cst_60 {dimension_numbers = #tpu.dot_dimension_numbers<[1], [0], [0], [1], [0, 0, 1, 1], [], []>} : vector<8x160xf32>, vector<160x120xf32>, vector<8x120xf32> -> vector<8x120xf32>
    %74 = vector.broadcast %69 : vector<1x120xf32> to vector<8x120xf32>
    %75 = arith.addf %74, %73 : vector<8x120xf32>
    %76 = vector.extract_strided_slice %68 {offsets = [8, 0], sizes = [8, 160], strides = [1, 1]} : vector<40x160xf32> to vector<8x160xf32>
    %c1_61 = arith.constant 1 : index
    %c0_62 = arith.constant 0 : index
    %c0_63 = arith.constant 0 : index
    %77 = vector.load %arg9[%c1_61, %c0_62, %c0_63] : memref<5x160x120xf32, #tpu.memory_space<vmem>>, vector<1x160x120xf32>
    %78 = vector.shape_cast %77 : vector<1x160x120xf32> to vector<160x120xf32>
    %cst_64 = arith.constant dense<0.000000e+00> : vector<8x120xf32>
    %79 = tpu.matmul %76, %78, %cst_64 {dimension_numbers = #tpu.dot_dimension_numbers<[1], [0], [0], [1], [0, 0, 1, 1], [], []>} : vector<8x160xf32>, vector<160x120xf32>, vector<8x120xf32> -> vector<8x120xf32>
    %80 = arith.addf %75, %79 : vector<8x120xf32>
    %81 = vector.extract_strided_slice %68 {offsets = [16, 0], sizes = [8, 160], strides = [1, 1]} : vector<40x160xf32> to vector<8x160xf32>
    %c2_65 = arith.constant 2 : index
    %c0_66 = arith.constant 0 : index
    %c0_67 = arith.constant 0 : index
    %82 = vector.load %arg9[%c2_65, %c0_66, %c0_67] : memref<5x160x120xf32, #tpu.memory_space<vmem>>, vector<1x160x120xf32>
    %83 = vector.shape_cast %82 : vector<1x160x120xf32> to vector<160x120xf32>
    %cst_68 = arith.constant dense<0.000000e+00> : vector<8x120xf32>
    %84 = tpu.matmul %81, %83, %cst_68 {dimension_numbers = #tpu.dot_dimension_numbers<[1], [0], [0], [1], [0, 0, 1, 1], [], []>} : vector<8x160xf32>, vector<160x120xf32>, vector<8x120xf32> -> vector<8x120xf32>
    %85 = arith.addf %80, %84 : vector<8x120xf32>
    %86 = vector.extract_strided_slice %68 {offsets = [24, 0], sizes = [8, 160], strides = [1, 1]} : vector<40x160xf32> to vector<8x160xf32>
    %c3_69 = arith.constant 3 : index
    %c0_70 = arith.constant 0 : index
    %c0_71 = arith.constant 0 : index
    %87 = vector.load %arg9[%c3_69, %c0_70, %c0_71] : memref<5x160x120xf32, #tpu.memory_space<vmem>>, vector<1x160x120xf32>
    %88 = vector.shape_cast %87 : vector<1x160x120xf32> to vector<160x120xf32>
    %cst_72 = arith.constant dense<0.000000e+00> : vector<8x120xf32>
    %89 = tpu.matmul %86, %88, %cst_72 {dimension_numbers = #tpu.dot_dimension_numbers<[1], [0], [0], [1], [0, 0, 1, 1], [], []>} : vector<8x160xf32>, vector<160x120xf32>, vector<8x120xf32> -> vector<8x120xf32>
    %90 = arith.addf %85, %89 : vector<8x120xf32>
    %91 = vector.extract_strided_slice %68 {offsets = [32, 0], sizes = [8, 160], strides = [1, 1]} : vector<40x160xf32> to vector<8x160xf32>
    %c4_73 = arith.constant 4 : index
    %c0_74 = arith.constant 0 : index
    %c0_75 = arith.constant 0 : index
    %92 = vector.load %arg9[%c4_73, %c0_74, %c0_75] : memref<5x160x120xf32, #tpu.memory_space<vmem>>, vector<1x160x120xf32>
    %93 = vector.shape_cast %92 : vector<1x160x120xf32> to vector<160x120xf32>
    %cst_76 = arith.constant dense<0.000000e+00> : vector<8x120xf32>
    %94 = tpu.matmul %91, %93, %cst_76 {dimension_numbers = #tpu.dot_dimension_numbers<[1], [0], [0], [1], [0, 0, 1, 1], [], []>} : vector<8x160xf32>, vector<160x120xf32>, vector<8x120xf32> -> vector<8x120xf32>
    %95 = arith.addf %90, %94 : vector<8x120xf32>
    %96 = math.tanh %95 : vector<8x120xf32>
    %c0_77 = arith.constant 0 : index
    %c0_78 = arith.constant 0 : index
    %97 = vector.load %arg11[%c0_77, %c0_78] : memref<120x84xf32, #tpu.memory_space<vmem>>, vector<120x84xf32>
    %cst_79 = arith.constant dense<0.000000e+00> : vector<8x84xf32>
    %98 = tpu.matmul %96, %97, %cst_79 {dimension_numbers = #tpu.dot_dimension_numbers<[1], [0], [0], [1], [0, 0, 1, 1], [], []>} : vector<8x120xf32>, vector<120x84xf32>, vector<8x84xf32> -> vector<8x84xf32>
    %c0_80 = arith.constant 0 : index
    %c0_81 = arith.constant 0 : index
    %99 = vector.load %arg12[%c0_80, %c0_81] : memref<1x84xf32, #tpu.memory_space<vmem>>, vector<1x84xf32>
    %100 = vector.broadcast %99 : vector<1x84xf32> to vector<8x84xf32>
    %101 = arith.addf %98, %100 : vector<8x84xf32>
    %102 = math.tanh %101 : vector<8x84xf32>
    %c0_82 = arith.constant 0 : index
    %c0_83 = arith.constant 0 : index
    %103 = vector.load %arg13[%c0_82, %c0_83] : memref<84x10xf32, #tpu.memory_space<vmem>>, vector<84x10xf32>
    %cst_84 = arith.constant dense<0.000000e+00> : vector<8x10xf32>
    %104 = tpu.matmul %102, %103, %cst_84 {dimension_numbers = #tpu.dot_dimension_numbers<[1], [0], [0], [1], [0, 0, 1, 1], [], []>} : vector<8x84xf32>, vector<84x10xf32>, vector<8x10xf32> -> vector<8x10xf32>
    %c0_85 = arith.constant 0 : index
    %c0_86 = arith.constant 0 : index
    %105 = vector.load %arg14[%c0_85, %c0_86] : memref<1x10xf32, #tpu.memory_space<vmem>>, vector<1x10xf32>
    %106 = vector.broadcast %105 : vector<1x10xf32> to vector<8x10xf32>
    %107 = arith.addf %104, %106 : vector<8x10xf32>
    %c0_87 = arith.constant 0 : index
    %c0_88 = arith.constant 0 : index
    %108 = vector.load %arg15[%c0_87, %c0_88] : memref<8x10xf32, #tpu.memory_space<vmem>>, vector<8x10xf32>
    tpu.vector_store %arg15[%c0_87, %c0_88], %107 {strides = array<i32>} : memref<8x10xf32, #tpu.memory_space<vmem>>, vector<8x10xf32>,
    return
  }
  func.func @transform_0(%arg0: i32) -> (i32, i32) {
    %c0_i32 = arith.constant 0 : i32
    %c0_i32_0 = arith.constant 0 : i32
    return %arg0, %c0_i32 : i32, i32
  }
  func.func @transform_1(%arg0: i32) -> (i32, i32, i32) {
    %c0_i32 = arith.constant 0 : i32
    %c0_i32_0 = arith.constant 0 : i32
    %c0_i32_1 = arith.constant 0 : i32
    %c0_i32_2 = arith.constant 0 : i32
    return %c0_i32, %c0_i32_0, %c0_i32_1 : i32, i32, i32
  }
  func.func @transform_2(%arg0: i32) -> (i32, i32) {
    %c0_i32 = arith.constant 0 : i32
    %c0_i32_0 = arith.constant 0 : i32
    %c0_i32_1 = arith.constant 0 : i32
    return %c0_i32, %c0_i32_0 : i32, i32
  }
  func.func @transform_3(%arg0: i32) -> (i32, i32) {
    %c0_i32 = arith.constant 0 : i32
    %c0_i32_0 = arith.constant 0 : i32
    %c0_i32_1 = arith.constant 0 : i32
    return %c0_i32, %c0_i32_0 : i32, i32
  }
  func.func @transform_4(%arg0: i32) -> (i32, i32) {
    %c0_i32 = arith.constant 0 : i32
    %c0_i32_0 = arith.constant 0 : i32
    %c0_i32_1 = arith.constant 0 : i32
    return %c0_i32, %c0_i32_0 : i32, i32
  }
  func.func @transform_5(%arg0: i32) -> (i32, i32, i32) {
    %c0_i32 = arith.constant 0 : i32
    %c0_i32_0 = arith.constant 0 : i32
    %c0_i32_1 = arith.constant 0 : i32
    %c0_i32_2 = arith.constant 0 : i32
    return %c0_i32, %c0_i32_0, %c0_i32_1 : i32, i32, i32
  }
  func.func @transform_6(%arg0: i32) -> (i32, i32) {
    %c0_i32 = arith.constant 0 : i32
    %c0_i32_0 = arith.constant 0 : i32
    %c0_i32_1 = arith.constant 0 : i32
    return %c0_i32, %c0_i32_0 : i32, i32
  }
  func.func @transform_7(%arg0: i32) -> (i32, i32) {
    %c0_i32 = arith.constant 0 : i32
    %c0_i32_0 = arith.constant 0 : i32
    %c0_i32_1 = arith.constant 0 : i32
    return %c0_i32, %c0_i32_0 : i32, i32
  }
  func.func @transform_8(%arg0: i32) -> (i32, i32, i32) {
    %c0_i32 = arith.constant 0 : i32
    %c0_i32_0 = arith.constant 0 : i32
    %c0_i32_1 = arith.constant 0 : i32
    %c0_i32_2 = arith.constant 0 : i32
    return %c0_i32, %c0_i32_0, %c0_i32_1 : i32, i32, i32
  }
  func.func @transform_9(%arg0: i32) -> (i32, i32) {
    %c0_i32 = arith.constant 0 : i32
    %c0_i32_0 = arith.constant 0 : i32
    %c0_i32_1 = arith.constant 0 : i32
    return %c0_i32, %c0_i32_0 : i32, i32
  }
  func.func @transform_10(%arg0: i32) -> (i32, i32) {
    %c0_i32 = arith.constant 0 : i32
    %c0_i32_0 = arith.constant 0 : i32
    %c0_i32_1 = arith.constant 0 : i32
    return %c0_i32, %c0_i32_0 : i32, i32
  }
  func.func @transform_11(%arg0: i32) -> (i32, i32) {
    %c0_i32 = arith.constant 0 : i32
    %c0_i32_0 = arith.constant 0 : i32
    %c0_i32_1 = arith.constant 0 : i32
    return %c0_i32, %c0_i32_0 : i32, i32
  }
  func.func @transform_12(%arg0: i32) -> (i32, i32) {
    %c0_i32 = arith.constant 0 : i32
    %c0_i32_0 = arith.constant 0 : i32
    %c0_i32_1 = arith.constant 0 : i32
    return %c0_i32, %c0_i32_0 : i32, i32
  }
  func.func @transform_13(%arg0: i32) -> (i32, i32) {
    %c0_i32 = arith.constant 0 : i32
    %c0_i32_0 = arith.constant 0 : i32
    %c0_i32_1 = arith.constant 0 : i32
    return %c0_i32, %c0_i32_0 : i32, i32
  }
  func.func @transform_14(%arg0: i32) -> (i32, i32) {
    %c0_i32 = arith.constant 0 : i32
    %c0_i32_0 = arith.constant 0 : i32
    return %arg0, %c0_i32 : i32, i32
  }
}

</mosaic_0001>

<llo_original>
// kernel: lenet_tanh_forward.1
$region0: #{lenet_tanh_forward.1}
  #allocation0 [shape = 'u32[]', space=smem, size = 0x4, offset = 0x4, fixed_abs, tag = 'smem constant byte address 0x4 - core index']
  #allocation1 [shape = 'u32[144,128]{1,0:T(1,128)}', space=vmem, size = 0x12000, scoped, tag = 'internal scratch']
  %s0 = inlined_call_operand.vmem [shape: bf16[256,96], index: 0, kind: input, shape index: {}]
  %s1 = inlined_call_operand.vmem [shape: bf16[5,96,168], index: 1, kind: input, shape index: {}]
  %s2 = inlined_call_operand.vmem [shape: f32[1,168], index: 2, kind: input, shape index: {}]
  %s3 = inlined_call_operand.vmem [shape: bf16[112,256], index: 3, kind: input, shape index: {}]
  %s4 = inlined_call_operand.vmem [shape: bf16[168,84], index: 4, kind: input, shape index: {}]
  %s5 = inlined_call_operand.vmem [shape: bf16[5,84,160], index: 5, kind: input, shape index: {}]
  %s6 = inlined_call_operand.vmem [shape: f32[1,160], index: 6, kind: input, shape index: {}]
  %s7 = inlined_call_operand.vmem [shape: bf16[40,112], index: 7, kind: input, shape index: {}]
  %s8 = inlined_call_operand.vmem [shape: f32[5,160,120], index: 8, kind: input, shape index: {}]
  %s9 = inlined_call_operand.vmem [shape: f32[1,120], index: 9, kind: input, shape index: {}]
  %s10 = inlined_call_operand.vmem [shape: f32[120,84], index: 10, kind: input, shape index: {}]
  %s11 = inlined_call_operand.vmem [shape: f32[1,84], index: 11, kind: input, shape index: {}]
  %s12 = inlined_call_operand.vmem [shape: f32[84,10], index: 12, kind: input, shape index: {}]
  %s13 = inlined_call_operand.vmem [shape: f32[1,10], index: 13, kind: input, shape index: {}]
  %s14 = inlined_call_operand.vmem [shape: f32[8,10], index: 14, kind: output, shape index: {}]
  %s15 = sld [smem:[#allocation0]]
  $region66: #{lenet_tanh_forward.1} parent=0
    _
  %s17 = ssub.s32 1, %s15
  %s18 = scalar_select 0, %s17, %s15
  // Predicated region
  $region2: #{lenet_tanh_forward.1} parent=0 // pred_check
    _
  $region3: #{lenet_tanh_forward.1} parent=0 // pred_check_branch
    %20 = sbr.rel (0) target = $region5
  $region4: #{lenet_tanh_forward.1} parent=0 // pred_region
    _
  $region5: #{lenet_tanh_forward.1} parent=0 // pred_fallthru
    _
  // Predicated region
  $region6: #{lenet_tanh_forward.1} parent=0 // pred_check
    _
  $region7: #{lenet_tanh_forward.1} parent=0 // pred_check_branch
    %22 = sbr.rel (0) target = $region9
  $region8: #{lenet_tanh_forward.1} parent=0 // pred_region
    _
  $region9: #{lenet_tanh_forward.1} parent=0 // pred_fallthru
    _
  // Predicated region
  $region10: #{lenet_tanh_forward.1} parent=0 // pred_check
    _
  $region11: #{lenet_tanh_forward.1} parent=0 // pred_check_branch
    %24 = sbr.rel (0) target = $region13
  $region12: #{lenet_tanh_forward.1} parent=0 // pred_region
    _
  $region13: #{lenet_tanh_forward.1} parent=0 // pred_fallthru
    _
  // Predicated region
  $region14: #{lenet_tanh_forward.1} parent=0 // pred_check
    _
  $region15: #{lenet_tanh_forward.1} parent=0 // pred_check_branch
    %26 = sbr.rel (0) target = $region17
  $region16: #{lenet_tanh_forward.1} parent=0 // pred_region
    _
  $region17: #{lenet_tanh_forward.1} parent=0 // pred_fallthru
    _
  // Predicated region
  $region18: #{lenet_tanh_forward.1} parent=0 // pred_check
    _
  $region19: #{lenet_tanh_forward.1} parent=0 // pred_check_branch
    %28 = sbr.rel (0) target = $region21
  $region20: #{lenet_tanh_forward.1} parent=0 // pred_region
    _
  $region21: #{lenet_tanh_forward.1} parent=0 // pred_fallthru
    _
  // Predicated region
  $region22: #{lenet_tanh_forward.1} parent=0 // pred_check
    _
  $region23: #{lenet_tanh_forward.1} parent=0 // pred_check_branch
    %30 = sbr.rel (0) target = $region25
  $region24: #{lenet_tanh_forward.1} parent=0 // pred_region
    _
  $region25: #{lenet_tanh_forward.1} parent=0 // pred_fallthru
    _
  // Predicated region
  $region26: #{lenet_tanh_forward.1} parent=0 // pred_check
    _
  $region27: #{lenet_tanh_forward.1} parent=0 // pred_check_branch
    %32 = sbr.rel (0) target = $region29
  $region28: #{lenet_tanh_forward.1} parent=0 // pred_region
    _
  $region29: #{lenet_tanh_forward.1} parent=0 // pred_fallthru
    _
  // Predicated region
  $region30: #{lenet_tanh_forward.1} parent=0 // pred_check
    _
  $region31: #{lenet_tanh_forward.1} parent=0 // pred_check_branch
    %34 = sbr.rel (0) target = $region33
  $region32: #{lenet_tanh_forward.1} parent=0 // pred_region
    _
  $region33: #{lenet_tanh_forward.1} parent=0 // pred_fallthru
    _
  // Predicated region
  $region34: #{lenet_tanh_forward.1} parent=0 // pred_check
    _
  $region35: #{lenet_tanh_forward.1} parent=0 // pred_check_branch
    %36 = sbr.rel (0) target = $region37
  $region36: #{lenet_tanh_forward.1} parent=0 // pred_region
    _
  $region37: #{lenet_tanh_forward.1} parent=0 // pred_fallthru
    _
  // Predicated region
  $region38: #{lenet_tanh_forward.1} parent=0 // pred_check
    _
  $region39: #{lenet_tanh_forward.1} parent=0 // pred_check_branch
    %38 = sbr.rel (0) target = $region41
  $region40: #{lenet_tanh_forward.1} parent=0 // pred_region
    _
  $region41: #{lenet_tanh_forward.1} parent=0 // pred_fallthru
    _
  // Predicated region
  $region42: #{lenet_tanh_forward.1} parent=0 // pred_check
    _
  $region43: #{lenet_tanh_forward.1} parent=0 // pred_check_branch
    %40 = sbr.rel (0) target = $region45
  $region44: #{lenet_tanh_forward.1} parent=0 // pred_region
    _
  $region45: #{lenet_tanh_forward.1} parent=0 // pred_fallthru
    _
  // Predicated region
  $region46: #{lenet_tanh_forward.1} parent=0 // pred_check
    _
  $region47: #{lenet_tanh_forward.1} parent=0 // pred_check_branch
    %42 = sbr.rel (0) target = $region49
  $region48: #{lenet_tanh_forward.1} parent=0 // pred_region
    _
  $region49: #{lenet_tanh_forward.1} parent=0 // pred_fallthru
    _
  // Predicated region
  $region50: #{lenet_tanh_forward.1} parent=0 // pred_check
    _
  $region51: #{lenet_tanh_forward.1} parent=0 // pred_check_branch
    %44 = sbr.rel (0) target = $region53
  $region52: #{lenet_tanh_forward.1} parent=0 // pred_region
    _
  $region53: #{lenet_tanh_forward.1} parent=0 // pred_fallthru
    _
  // Predicated region
  $region54: #{lenet_tanh_forward.1} parent=0 // pred_check
    _
  $region55: #{lenet_tanh_forward.1} parent=0 // pred_check_branch
    %46 = sbr.rel (0) target = $region57
  $region56: #{lenet_tanh_forward.1} parent=0 // pred_region
    _
  $region57: #{lenet_tanh_forward.1} parent=0 // pred_fallthru
    _
  %v48 = vld [vmem:[%s0] sm:$0xf]
  %v49 = vld [vmem:[%s0 + $0x4] sm:$0xf]
  %v50 = vld [vmem:[%s0 + $0x8] sm:$0xf]
  %v51 = vld [vmem:[%s0 + $0xc] sm:$0xf]
  %v52 = vld [vmem:[%s0 + $0x10] sm:$0xf]
  %v53 = vld [vmem:[%s0 + $0x14] sm:$0xf]
  %v54 = vld [vmem:[%s0 + $0x18] sm:$0xf]
  %v55 = vld [vmem:[%s0 + $0x1c] sm:$0xf]
  %v56 = vld [vmem:[%s0 + $0x20] sm:$0xf]
  %v57 = vld [vmem:[%s0 + $0x24] sm:$0xf]
  %v58 = vld [vmem:[%s0 + $0x28] sm:$0xf]
  %v59 = vld [vmem:[%s0 + $0x2c] sm:$0xf]
  %v60 = vld [vmem:[%s0 + $0x30] sm:$0xf]
  %v61 = vld [vmem:[%s0 + $0x34] sm:$0xf]
  %v62 = vld [vmem:[%s0 + $0x38] sm:$0xf]
  %v63 = vld [vmem:[%s0 + $0x3c] sm:$0xf]
  %v64 = vld [vmem:[%s0 + $0x40] sm:$0xf]
  %v65 = vld [vmem:[%s0 + $0x44] sm:$0xf]
  %v66 = vld [vmem:[%s0 + $0x48] sm:$0xf]
  %v67 = vld [vmem:[%s0 + $0x4c] sm:$0xf]
  %v68 = vld [vmem:[%s0 + $0x50] sm:$0xf]
  %v69 = vld [vmem:[%s0 + $0x54] sm:$0xf]
  %v70 = vld [vmem:[%s0 + $0x58] sm:$0xf]
  %v71 = vld [vmem:[%s0 + $0x5c] sm:$0xf]
  %v72 = vld [vmem:[%s0 + $0x60] sm:$0xf]
  %v73 = vld [vmem:[%s0 + $0x64] sm:$0xf]
  %v74 = vld [vmem:[%s0 + $0x68] sm:$0xf]
  %v75 = vld [vmem:[%s0 + $0x6c] sm:$0xf]
  %v76 = vld [vmem:[%s0 + $0x70] sm:$0xf]
  %v77 = vld [vmem:[%s0 + $0x74] sm:$0xf]
  %v78 = vld [vmem:[%s0 + $0x78] sm:$0xf]
  %v79 = vld [vmem:[%s0 + $0x7c] sm:$0xf]
  %v80 = vld [vmem:[%s1] sm:$0xff]
  %v81 = vld [vmem:[%s1 + $0x8] sm:$0xff]
  %v82 = vld [vmem:[%s1 + $0x10] sm:$0xff]
  %v83 = vld [vmem:[%s1 + $0x18] sm:$0xff]
  %v84 = vld [vmem:[%s1 + $0x20] sm:$0xff]
  %v85 = vld [vmem:[%s1 + $0x28] sm:$0xff]
  %v86 = vld [vmem:[%s1 + $0x30] sm:$0xff]
  %v87 = vld [vmem:[%s1 + $0x38] sm:$0xff]
  %v88 = vld [vmem:[%s1 + $0x40] sm:$0xff]
  %v89 = vld [vmem:[%s1 + $0x48] sm:$0xff]
  %v90 = vld [vmem:[%s1 + $0x50] sm:$0xff]
  %v91 = vld [vmem:[%s1 + $0x58] sm:$0xff]
  %v124 = vunpack.c.l.b16 %v48
  %v125 = vunpack.c.l.b16 %v49
  %v126 = vunpack.c.l.b16 %v50
  %v127 = vunpack.c.l.b16 %v51
  %v128 = vunpack.c.l.b16 %v52
  %v129 = vunpack.c.l.b16 %v53
  %v130 = vunpack.c.l.b16 %v54
  %v131 = vunpack.c.l.b16 %v55
  %v132 = vunpack.c.l.b16 %v56
  %v133 = vunpack.c.l.b16 %v57
  %v134 = vunpack.c.l.b16 %v58
  %v135 = vunpack.c.l.b16 %v59
  %v136 = vunpack.c.l.b16 %v60
  %v137 = vunpack.c.l.b16 %v61
  %v138 = vunpack.c.l.b16 %v62
  %v139 = vunpack.c.l.b16 %v63
  %v140 = vunpack.c.l.b16 %v64
  %v141 = vunpack.c.l.b16 %v65
  %v142 = vunpack.c.l.b16 %v66
  %v143 = vunpack.c.l.b16 %v67
  %v144 = vunpack.c.l.b16 %v68
  %v145 = vunpack.c.l.b16 %v69
  %v146 = vunpack.c.l.b16 %v70
  %v147 = vunpack.c.l.b16 %v71
  %v148 = vunpack.c.l.b16 %v72
  %v149 = vunpack.c.l.b16 %v73
  %v150 = vunpack.c.l.b16 %v74
  %v151 = vunpack.c.l.b16 %v75
  %v152 = vunpack.c.l.b16 %v76
  %v153 = vunpack.c.l.b16 %v77
  %v154 = vunpack.c.l.b16 %v78
  %v155 = vunpack.c.l.b16 %v79
  %v156 = vpack.c.b16 %v125, %v124
  %v157 = vpack.c.b16 %v127, %v126
  %v158 = vpack.c.b16 %v129, %v128
  %v159 = vpack.c.b16 %v131, %v130
  %v160 = vpack.c.b16 %v133, %v132
  %v161 = vpack.c.b16 %v135, %v134
  %v162 = vpack.c.b16 %v137, %v136
  %v163 = vpack.c.b16 %v139, %v138
  %v164 = vpack.c.b16 %v141, %v140
  %v165 = vpack.c.b16 %v143, %v142
  %v166 = vpack.c.b16 %v145, %v144
  %v167 = vpack.c.b16 %v147, %v146
  %v168 = vpack.c.b16 %v149, %v148
  %v169 = vpack.c.b16 %v151, %v150
  %v170 = vpack.c.b16 %v153, %v152
  %v171 = vpack.c.b16 %v155, %v154
  %v184 = vunpack.c.l.b16 %v80
  %v185 = vunpack.c.h.b16 %v80
  %v186 = vunpack.c.l.b16 %v81
  %v187 = vunpack.c.h.b16 %v81
  %v188 = vunpack.c.l.b16 %v82
  %v189 = vunpack.c.h.b16 %v82
  %v190 = vunpack.c.l.b16 %v83
  %v191 = vunpack.c.h.b16 %v83
  %v192 = vunpack.c.l.b16 %v84
  %v193 = vunpack.c.h.b16 %v84
  %v194 = vunpack.c.l.b16 %v85
  %v195 = vunpack.c.h.b16 %v85
  %v196 = vunpack.c.l.b16 %v86
  %v197 = vunpack.c.h.b16 %v86
  %v198 = vunpack.c.l.b16 %v87
  %v199 = vunpack.c.h.b16 %v87
  %v200 = vunpack.c.l.b16 %v88
  %v201 = vunpack.c.h.b16 %v88
  %v202 = vunpack.c.l.b16 %v89
  %v203 = vunpack.c.h.b16 %v89
  %v204 = vunpack.c.l.b16 %v90
  %v205 = vunpack.c.h.b16 %v90
  %v206 = vunpack.c.l.b16 %v91
  %v207 = vunpack.c.h.b16 %v91
  %v208 = vpack.c.b16 %v186, %v184
  %v209 = vpack.c.b16 %v187, %v185
  %v210 = vpack.c.b16 %v190, %v188
  %v211 = vpack.c.b16 %v191, %v189
  %v212 = vpack.c.b16 %v194, %v192
  %v213 = vpack.c.b16 %v195, %v193
  %v214 = vpack.c.b16 %v198, %v196
  %v215 = vpack.c.b16 %v199, %v197
  %v216 = vpack.c.b16 %v202, %v200
  %v217 = vpack.c.b16 %v203, %v201
  %v218 = vpack.c.b16 %v206, %v204
  %v219 = vpack.c.b16 %v207, %v205
  %vm232 = vcmask 785408
  %v234 = vsel %vm232, %v156, 0
  %v237 = vsel %vm232, %v157, 0
  %v240 = vsel %vm232, %v158, 0
  %v243 = vsel %vm232, %v159, 0
  %v246 = vsel %vm232, %v160, 0
  %v249 = vsel %vm232, %v161, 0
  %v252 = vsel %vm232, %v162, 0
  %v255 = vsel %vm232, %v163, 0
  %v258 = vsel %vm232, %v164, 0
  %v261 = vsel %vm232, %v165, 0
  %v264 = vsel %vm232, %v166, 0
  %v267 = vsel %vm232, %v167, 0
  %v270 = vsel %vm232, %v168, 0
  %v273 = vsel %vm232, %v169, 0
  %v276 = vsel %vm232, %v170, 0
  %v279 = vsel %vm232, %v171, 0
  %281 = vmatprep.subr.bf16.mxu0 %v209
  %282 = vmatpush1.bf16.msra.mxu0 %v208
  %283 = vmatprep.subr.bf16.mxu0 %v211
  %284 = vmatpush1.bf16.msra.mxu0 %v210
  %285 = vmatprep.subr.bf16.mxu0 %v213
  %286 = vmatpush1.bf16.msra.mxu0 %v212
  %287 = vmatprep.subr.bf16.mxu0 %v215
  %288 = vmatpush1.bf16.msra.mxu0 %v214
  %289 = vmatprep.subr.bf16.mxu0 %v217
  %290 = vmatpush1.bf16.msra.mxu0 %v216
  %291 = vmatprep.subr.bf16.mxu0 %v219
  %292 = vmatpush1.bf16.msra.mxu0 %v218
  %293 = vmatprep.subr.bf16.mxu0 0
  %294 = vmatpush1.bf16.msra.mxu0 0
  %295 = vmatprep.subr.bf16.mxu0 0
  %296 = vmatpush1.bf16.msra.mxu0 0
  %297 = vmatprep.subr.bf16.mxu0 0
  %298 = vmatpush1.bf16.msra.mxu0 0
  %299 = vmatprep.subr.bf16.mxu0 0
  %300 = vmatpush1.bf16.msra.mxu0 0
  %301 = vmatprep.subr.bf16.mxu0 0
  %302 = vmatpush1.bf16.msra.mxu0 0
  %303 = vmatprep.subr.bf16.mxu0 0
  %304 = vmatpush1.bf16.msra.mxu0 0
  %305 = vmatprep.subr.bf16.mxu0 0
  %306 = vmatpush1.bf16.msra.mxu0 0
  %307 = vmatprep.subr.bf16.mxu0 0
  %308 = vmatpush1.bf16.msra.mxu0 0
  %309 = vmatprep.subr.bf16.mxu0 0
  %310 = vmatpush1.bf16.msra.mxu0 0
  %311 = vmatprep.subr.bf16.mxu0 0
  %312 = vmatpush1.bf16.msra.mxu0 0
  %313 = vmatprep.mubr.bf16.mxu0 0
  %314 = vmatmul.mubr.bf16.gmra.mrb[0].mxu0 %v234
  %v315 = vpop.f32.mrb[0].mxu0
  %v316 = vadd.f32 0.0, %v315
  %v317 = vpop.f32.mrb[0].mxu0
  %v318 = vadd.f32 0.0, %v317
  %v319 = vpop.f32.mrb[0].mxu0
  %v320 = vadd.f32 0.0, %v319
  %v321 = vpop.f32.mrb[0].mxu0
  %v322 = vadd.f32 0.0, %v321
  %323 = vmatprep.mubr.bf16.mxu0 0
  %324 = vmatmul.mubr.bf16.gmra.mrb[0].mxu0 %v237
  %v325 = vpop.f32.mrb[0].mxu0
  %v326 = vadd.f32 0.0, %v325
  %v327 = vpop.f32.mrb[0].mxu0
  %v328 = vadd.f32 0.0, %v327
  %v329 = vpop.f32.mrb[0].mxu0
  %v330 = vadd.f32 0.0, %v329
  %v331 = vpop.f32.mrb[0].mxu0
  %v332 = vadd.f32 0.0, %v331
  %333 = vmatprep.mubr.bf16.mxu0 0
  %334 = vmatmul.mubr.bf16.gmra.mrb[0].mxu0 %v240
  %v335 = vpop.f32.mrb[0].mxu0
  %v336 = vadd.f32 0.0, %v335
  %v337 = vpop.f32.mrb[0].mxu0
  %v338 = vadd.f32 0.0, %v337
  %v339 = vpop.f32.mrb[0].mxu0
  %v340 = vadd.f32 0.0, %v339
  %v341 = vpop.f32.mrb[0].mxu0
  %v342 = vadd.f32 0.0, %v341
  %343 = vmatprep.mubr.bf16.mxu0 0
  %344 = vmatmul.mubr.bf16.gmra.mrb[0].mxu0 %v243
  %v345 = vpop.f32.mrb[0].mxu0
  %v346 = vadd.f32 0.0, %v345
  %v347 = vpop.f32.mrb[0].mxu0
  %v348 = vadd.f32 0.0, %v347
  %v349 = vpop.f32.mrb[0].mxu0
  %v350 = vadd.f32 0.0, %v349
  %v351 = vpop.f32.mrb[0].mxu0
  %v352 = vadd.f32 0.0, %v351
  %353 = vmatprep.mubr.bf16.mxu0 0
  %354 = vmatmul.mubr.bf16.gmra.mrb[0].mxu0 %v246
  %v355 = vpop.f32.mrb[0].mxu0
  %v356 = vadd.f32 0.0, %v355
  %v357 = vpop.f32.mrb[0].mxu0
  %v358 = vadd.f32 0.0, %v357
  %v359 = vpop.f32.mrb[0].mxu0
  %v360 = vadd.f32 0.0, %v359
  %v361 = vpop.f32.mrb[0].mxu0
  %v362 = vadd.f32 0.0, %v361
  %363 = vmatprep.mubr.bf16.mxu0 0
  %364 = vmatmul.mubr.bf16.gmra.mrb[0].mxu0 %v249
  %v365 = vpop.f32.mrb[0].mxu0
  %v366 = vadd.f32 0.0, %v365
  %v367 = vpop.f32.mrb[0].mxu0
  %v368 = vadd.f32 0.0, %v367
  %v369 = vpop.f32.mrb[0].mxu0
  %v370 = vadd.f32 0.0, %v369
  %v371 = vpop.f32.mrb[0].mxu0
  %v372 = vadd.f32 0.0, %v371
  %373 = vmatprep.mubr.bf16.mxu0 0
  %374 = vmatmul.mubr.bf16.gmra.mrb[0].mxu0 %v252
  %v375 = vpop.f32.mrb[0].mxu0
  %v376 = vadd.f32 0.0, %v375
  %v377 = vpop.f32.mrb[0].mxu0
  %v378 = vadd.f32 0.0, %v377
  %v379 = vpop.f32.mrb[0].mxu0
  %v380 = vadd.f32 0.0, %v379
  %v381 = vpop.f32.mrb[0].mxu0
  %v382 = vadd.f32 0.0, %v381
  %383 = vmatprep.mubr.bf16.mxu0 0
  %384 = vmatmul.mubr.bf16.gmra.mrb[0].mxu0 %v255
  %v385 = vpop.f32.mrb[0].mxu0
  %v386 = vadd.f32 0.0, %v385
  %v387 = vpop.f32.mrb[0].mxu0
  %v388 = vadd.f32 0.0, %v387
  %v389 = vpop.f32.mrb[0].mxu0
  %v390 = vadd.f32 0.0, %v389
  %v391 = vpop.f32.mrb[0].mxu0
  %v392 = vadd.f32 0.0, %v391
  %393 = vmatprep.mubr.bf16.mxu0 0
  %394 = vmatmul.mubr.bf16.gmra.mrb[0].mxu0 %v258
  %v395 = vpop.f32.mrb[0].mxu0
  %v396 = vadd.f32 0.0, %v395
  %v397 = vpop.f32.mrb[0].mxu0
  %v398 = vadd.f32 0.0, %v397
  %v399 = vpop.f32.mrb[0].mxu0
  %v400 = vadd.f32 0.0, %v399
  %v401 = vpop.f32.mrb[0].mxu0
  %v402 = vadd.f32 0.0, %v401
  %403 = vmatprep.mubr.bf16.mxu0 0
  %404 = vmatmul.mubr.bf16.gmra.mrb[0].mxu0 %v261
  %v405 = vpop.f32.mrb[0].mxu0
  %v406 = vadd.f32 0.0, %v405
  %v407 = vpop.f32.mrb[0].mxu0
  %v408 = vadd.f32 0.0, %v407
  %v409 = vpop.f32.mrb[0].mxu0
  %v410 = vadd.f32 0.0, %v409
  %v411 = vpop.f32.mrb[0].mxu0
  %v412 = vadd.f32 0.0, %v411
  %413 = vmatprep.mubr.bf16.mxu0 0
  %414 = vmatmul.mubr.bf16.gmra.mrb[0].mxu0 %v264
  %v415 = vpop.f32.mrb[0].mxu0
  %v416 = vadd.f32 0.0, %v415
  %v417 = vpop.f32.mrb[0].mxu0
  %v418 = vadd.f32 0.0, %v417
  %v419 = vpop.f32.mrb[0].mxu0
  %v420 = vadd.f32 0.0, %v419
  %v421 = vpop.f32.mrb[0].mxu0
  %v422 = vadd.f32 0.0, %v421
  %423 = vmatprep.mubr.bf16.mxu0 0
  %424 = vmatmul.mubr.bf16.gmra.mrb[0].mxu0 %v267
  %v425 = vpop.f32.mrb[0].mxu0
  %v426 = vadd.f32 0.0, %v425
  %v427 = vpop.f32.mrb[0].mxu0
  %v428 = vadd.f32 0.0, %v427
  %v429 = vpop.f32.mrb[0].mxu0
  %v430 = vadd.f32 0.0, %v429
  %v431 = vpop.f32.mrb[0].mxu0
  %v432 = vadd.f32 0.0, %v431
  %433 = vmatprep.mubr.bf16.mxu0 0
  %434 = vmatmul.mubr.bf16.gmra.mrb[0].mxu0 %v270
  %v435 = vpop.f32.mrb[0].mxu0
  %v436 = vadd.f32 0.0, %v435
  %v437 = vpop.f32.mrb[0].mxu0
  %v438 = vadd.f32 0.0, %v437
  %v439 = vpop.f32.mrb[0].mxu0
  %v440 = vadd.f32 0.0, %v439
  %v441 = vpop.f32.mrb[0].mxu0
  %v442 = vadd.f32 0.0, %v441
  %443 = vmatprep.mubr.bf16.mxu0 0
  %444 = vmatmul.mubr.bf16.gmra.mrb[0].mxu0 %v273
  %v445 = vpop.f32.mrb[0].mxu0
  %v446 = vadd.f32 0.0, %v445
  %v447 = vpop.f32.mrb[0].mxu0
  %v448 = vadd.f32 0.0, %v447
  %v449 = vpop.f32.mrb[0].mxu0
  %v450 = vadd.f32 0.0, %v449
  %v451 = vpop.f32.mrb[0].mxu0
  %v452 = vadd.f32 0.0, %v451
  %453 = vmatprep.mubr.bf16.mxu0 0
  %454 = vmatmul.mubr.bf16.gmra.mrb[0].mxu0 %v276
  %v455 = vpop.f32.mrb[0].mxu0
  %v456 = vadd.f32 0.0, %v455
  %v457 = vpop.f32.mrb[0].mxu0
  %v458 = vadd.f32 0.0, %v457
  %v459 = vpop.f32.mrb[0].mxu0
  %v460 = vadd.f32 0.0, %v459
  %v461 = vpop.f32.mrb[0].mxu0
  %v462 = vadd.f32 0.0, %v461
  %463 = vmatprep.mubr.bf16.mxu0 0
  %464 = vmatmul.mubr.bf16.gmra.mrb[0].mxu0 %v279
  %v465 = vpop.f32.mrb[0].mxu0
  %v466 = vadd.f32 0.0, %v465
  %v467 = vpop.f32.mrb[0].mxu0
  %v468 = vadd.f32 0.0, %v467
  %v469 = vpop.f32.mrb[0].mxu0
  %v470 = vadd.f32 0.0, %v469
  %v471 = vpop.f32.mrb[0].mxu0
  %v472 = vadd.f32 0.0, %v471
  %473 = vdwg.mxu0
  %v474 = vrot.slane %v316, 4
  %v475 = vrot.slane %v318, 4
  %v476 = vrot.slane %v320, 4
  %v477 = vrot.slane %v322, 4
  %v478 = vrot.slane %v326, 4
  %v479 = vrot.slane %v328, 4
  %v480 = vrot.slane %v330, 4
  %v481 = vrot.slane %v332, 4
  %v482 = vrot.slane %v336, 4
  %v483 = vrot.slane %v338, 4
  %v484 = vrot.slane %v340, 4
  %v485 = vrot.slane %v342, 4
  %v486 = vrot.slane %v346, 4
  %v487 = vrot.slane %v348, 4
  %v488 = vrot.slane %v350, 4
  %v489 = vrot.slane %v352, 4
  %v490 = vrot.slane %v356, 4
  %v491 = vrot.slane %v358, 4
  %v492 = vrot.slane %v360, 4
  %v493 = vrot.slane %v362, 4
  %v494 = vrot.slane %v366, 4
  %v495 = vrot.slane %v368, 4
  %v496 = vrot.slane %v370, 4
  %v497 = vrot.slane %v372, 4
  %v498 = vrot.slane %v376, 4
  %v499 = vrot.slane %v378, 4
  %v500 = vrot.slane %v380, 4
  %v501 = vrot.slane %v382, 4
  %v502 = vrot.slane %v386, 4
  %v503 = vrot.slane %v388, 4
  %v504 = vrot.slane %v390, 4
  %v505 = vrot.slane %v392, 4
  %v506 = vrot.slane %v396, 4
  %v507 = vrot.slane %v398, 4
  %v508 = vrot.slane %v400, 4
  %v509 = vrot.slane %v402, 4
  %v510 = vrot.slane %v406, 4
  %v511 = vrot.slane %v408, 4
  %v512 = vrot.slane %v410, 4
  %v513 = vrot.slane %v412, 4
  %v514 = vrot.slane %v416, 4
  %v515 = vrot.slane %v418, 4
  %v516 = vrot.slane %v420, 4
  %v517 = vrot.slane %v422, 4
  %v518 = vrot.slane %v426, 4
  %v519 = vrot.slane %v428, 4
  %v520 = vrot.slane %v430, 4
  %v521 = vrot.slane %v432, 4
  %v522 = vrot.slane %v436, 4
  %v523 = vrot.slane %v438, 4
  %v524 = vrot.slane %v440, 4
  %v525 = vrot.slane %v442, 4
  %v526 = vrot.slane %v446, 4
  %v527 = vrot.slane %v448, 4
  %v528 = vrot.slane %v450, 4
  %v529 = vrot.slane %v452, 4
  %v530 = vrot.slane %v456, 4
  %v531 = vrot.slane %v458, 4
  %v532 = vrot.slane %v460, 4
  %v533 = vrot.slane %v462, 4
  %v534 = vrot.slane %v466, 4
  %v535 = vrot.slane %v468, 4
  %v536 = vrot.slane %v470, 4
  %v537 = vrot.slane %v472, 4
  %v538 = vlaneseq
  %v539 = vshrl.u32 %v538, 7
  %vm540 = vcmp.lt.s32.totalorder %v539, 4
  %v541 = vsel %vm540, %v534, %v536
  %v542 = vsel %vm540, %v535, %v537
  %v543 = vsel %vm540, %v532, %v534
  %v544 = vsel %vm540, %v533, %v535
  %v545 = vsel %vm540, %v530, %v532
  %v546 = vsel %vm540, %v531, %v533
  %v547 = vsel %vm540, %v528, %v530
  %v548 = vsel %vm540, %v529, %v531
  %v549 = vsel %vm540, %v526, %v528
  %v550 = vsel %vm540, %v527, %v529
  %v551 = vsel %vm540, %v524, %v526
  %v552 = vsel %vm540, %v525, %v527
  %v553 = vsel %vm540, %v522, %v524
  %v554 = vsel %vm540, %v523, %v525
  %v555 = vsel %vm540, %v520, %v522
  %v556 = vsel %vm540, %v521, %v523
  %v557 = vsel %vm540, %v518, %v520
  %v558 = vsel %vm540, %v519, %v521
  %v559 = vsel %vm540, %v516, %v518
  %v560 = vsel %vm540, %v517, %v519
  %v561 = vsel %vm540, %v514, %v516
  %v562 = vsel %vm540, %v515, %v517
  %v563 = vsel %vm540, %v512, %v514
  %v564 = vsel %vm540, %v513, %v515
  %v565 = vsel %vm540, %v510, %v512
  %v566 = vsel %vm540, %v511, %v513
  %v567 = vsel %vm540, %v508, %v510
  %v568 = vsel %vm540, %v509, %v511
  %v569 = vsel %vm540, %v506, %v508
  %v570 = vsel %vm540, %v507, %v509
  %v571 = vsel %vm540, %v504, %v506
  %v572 = vsel %vm540, %v505, %v507
  %v573 = vsel %vm540, %v502, %v504
  %v574 = vsel %vm540, %v503, %v505
  %v575 = vsel %vm540, %v500, %v502
  %v576 = vsel %vm540, %v501, %v503
  %v577 = vsel %vm540, %v498, %v500
  %v578 = vsel %vm540, %v499, %v501
  %v579 = vsel %vm540, %v496, %v498
  %v580 = vsel %vm540, %v497, %v499
  %v581 = vsel %vm540, %v494, %v496
  %v582 = vsel %vm540, %v495, %v497
  %v583 = vsel %vm540, %v492, %v494
  %v584 = vsel %vm540, %v493, %v495
  %v585 = vsel %vm540, %v490, %v492
  %v586 = vsel %vm540, %v491, %v493
  %v587 = vsel %vm540, %v488, %v490
  %v588 = vsel %vm540, %v489, %v491
  %v589 = vsel %vm540, %v486, %v488
  %v590 = vsel %vm540, %v487, %v489
  %v591 = vsel %vm540, %v484, %v486
  %v592 = vsel %vm540, %v485, %v487
  %v593 = vsel %vm540, %v482, %v484
  %v594 = vsel %vm540, %v483, %v485
  %v595 = vsel %vm540, %v480, %v482
  %v596 = vsel %vm540, %v481, %v483
  %v597 = vsel %vm540, %v478, %v480
  %v598 = vsel %vm540, %v479, %v481
  %v599 = vsel %vm540, %v476, %v478
  %v600 = vsel %vm540, %v477, %v479
  %v601 = vsel %vm540, %v474, %v476
  %v602 = vsel %vm540, %v475, %v477
  %v603 = vsel %vm540, %v536, %v474
  %v604 = vsel %vm540, %v537, %v475
  %v605 = vadd.f32 %v603, 0.0
  %v606 = vadd.f32 %v604, 0.0
  %v607 = vadd.f32 %v601, 0.0
  %v608 = vadd.f32 %v602, 0.0
  %v609 = vadd.f32 %v599, 0.0
  %v610 = vadd.f32 %v600, 0.0
  %v611 = vadd.f32 %v597, 0.0
  %v612 = vadd.f32 %v598, 0.0
  %v613 = vadd.f32 %v595, 0.0
  %v614 = vadd.f32 %v596, 0.0
  %v615 = vadd.f32 %v593, 0.0
  %v616 = vadd.f32 %v594, 0.0
  %v617 = vadd.f32 %v591, 0.0
  %v618 = vadd.f32 %v592, 0.0
  %v619 = vadd.f32 %v589, 0.0
  %v620 = vadd.f32 %v590, 0.0
  %v621 = vadd.f32 %v587, 0.0
  %v622 = vadd.f32 %v588, 0.0
  %v623 = vadd.f32 %v585, 0.0
  %v624 = vadd.f32 %v586, 0.0
  %v625 = vadd.f32 %v583, 0.0
  %v626 = vadd.f32 %v584, 0.0
  %v627 = vadd.f32 %v581, 0.0
  %v628 = vadd.f32 %v582, 0.0
  %v629 = vadd.f32 %v579, 0.0
  %v630 = vadd.f32 %v580, 0.0
  %v631 = vadd.f32 %v577, 0.0
  %v632 = vadd.f32 %v578, 0.0
  %v633 = vadd.f32 %v575, 0.0
  %v634 = vadd.f32 %v576, 0.0
  %v635 = vadd.f32 %v573, 0.0
  %v636 = vadd.f32 %v574, 0.0
  %v637 = vadd.f32 %v571, 0.0
  %v638 = vadd.f32 %v572, 0.0
  %v639 = vadd.f32 %v569, 0.0
  %v640 = vadd.f32 %v570, 0.0
  %v641 = vadd.f32 %v567, 0.0
  %v642 = vadd.f32 %v568, 0.0
  %v643 = vadd.f32 %v565, 0.0
  %v644 = vadd.f32 %v566, 0.0
  %v645 = vadd.f32 %v563, 0.0
  %v646 = vadd.f32 %v564, 0.0
  %v647 = vadd.f32 %v561, 0.0
  %v648 = vadd.f32 %v562, 0.0
  %v649 = vadd.f32 %v559, 0.0
  %v650 = vadd.f32 %v560, 0.0
  %v651 = vadd.f32 %v557, 0.0
  %v652 = vadd.f32 %v558, 0.0
  %v653 = vadd.f32 %v555, 0.0
  %v654 = vadd.f32 %v556, 0.0
  %v655 = vadd.f32 %v553, 0.0
  %v656 = vadd.f32 %v554, 0.0
  %v657 = vadd.f32 %v551, 0.0
  %v658 = vadd.f32 %v552, 0.0
  %v659 = vadd.f32 %v549, 0.0
  %v660 = vadd.f32 %v550, 0.0
  %v661 = vadd.f32 %v547, 0.0
  %v662 = vadd.f32 %v548, 0.0
  %v663 = vadd.f32 %v545, 0.0
  %v664 = vadd.f32 %v546, 0.0
  %v665 = vadd.f32 %v543, 0.0
  %v666 = vadd.f32 %v544, 0.0
  %v667 = vadd.f32 %v541, 0.0
  %v668 = vadd.f32 %v542, 0.0
  %s669 = scalar_lea.vmem %s1, 96
  %v670 = vld [vmem:[%s669] sm:$0xff]
  %v671 = vld [vmem:[%s669 + $0x8] sm:$0xff]
  %v672 = vld [vmem:[%s669 + $0x10] sm:$0xff]
  %v673 = vld [vmem:[%s669 + $0x18] sm:$0xff]
  %v674 = vld [vmem:[%s669 + $0x20] sm:$0xff]
  %v675 = vld [vmem:[%s669 + $0x28] sm:$0xff]
  %v676 = vld [vmem:[%s669 + $0x30] sm:$0xff]
  %v677 = vld [vmem:[%s669 + $0x38] sm:$0xff]
  %v678 = vld [vmem:[%s669 + $0x40] sm:$0xff]
  %v679 = vld [vmem:[%s669 + $0x48] sm:$0xff]
  %v680 = vld [vmem:[%s669 + $0x50] sm:$0xff]
  %v681 = vld [vmem:[%s669 + $0x58] sm:$0xff]
  %v694 = vunpack.c.l.b16 %v670
  %v695 = vunpack.c.h.b16 %v670
  %v696 = vunpack.c.l.b16 %v671
  %v697 = vunpack.c.h.b16 %v671
  %v698 = vunpack.c.l.b16 %v672
  %v699 = vunpack.c.h.b16 %v672
  %v700 = vunpack.c.l.b16 %v673
  %v701 = vunpack.c.h.b16 %v673
  %v702 = vunpack.c.l.b16 %v674
  %v703 = vunpack.c.h.b16 %v674
  %v704 = vunpack.c.l.b16 %v675
  %v705 = vunpack.c.h.b16 %v675
  %v706 = vunpack.c.l.b16 %v676
  %v707 = vunpack.c.h.b16 %v676
  %v708 = vunpack.c.l.b16 %v677
  %v709 = vunpack.c.h.b16 %v677
  %v710 = vunpack.c.l.b16 %v678
  %v711 = vunpack.c.h.b16 %v678
  %v712 = vunpack.c.l.b16 %v679
  %v713 = vunpack.c.h.b16 %v679
  %v714 = vunpack.c.l.b16 %v680
  %v715 = vunpack.c.h.b16 %v680
  %v716 = vunpack.c.l.b16 %v681
  %v717 = vunpack.c.h.b16 %v681
  %v718 = vpack.c.b16 %v696, %v694
  %v719 = vpack.c.b16 %v697, %v695
  %v720 = vpack.c.b16 %v700, %v698
  %v721 = vpack.c.b16 %v701, %v699
  %v722 = vpack.c.b16 %v704, %v702
  %v723 = vpack.c.b16 %v705, %v703
  %v724 = vpack.c.b16 %v708, %v706
  %v725 = vpack.c.b16 %v709, %v707
  %v726 = vpack.c.b16 %v712, %v710
  %v727 = vpack.c.b16 %v713, %v711
  %v728 = vpack.c.b16 %v716, %v714
  %v729 = vpack.c.b16 %v717, %v715
  %742 = vmatprep.subr.bf16.mxu0 %v719
  %743 = vmatpush1.bf16.msra.mxu0 %v718
  %744 = vmatprep.subr.bf16.mxu0 %v721
  %745 = vmatpush1.bf16.msra.mxu0 %v720
  %746 = vmatprep.subr.bf16.mxu0 %v723
  %747 = vmatpush1.bf16.msra.mxu0 %v722
  %748 = vmatprep.subr.bf16.mxu0 %v725
  %749 = vmatpush1.bf16.msra.mxu0 %v724
  %750 = vmatprep.subr.bf16.mxu0 %v727
  %751 = vmatpush1.bf16.msra.mxu0 %v726
  %752 = vmatprep.subr.bf16.mxu0 %v729
  %753 = vmatpush1.bf16.msra.mxu0 %v728
  %754 = vmatprep.subr.bf16.mxu0 0
  %755 = vmatpush1.bf16.msra.mxu0 0
  %756 = vmatprep.subr.bf16.mxu0 0
  %757 = vmatpush1.bf16.msra.mxu0 0
  %758 = vmatprep.subr.bf16.mxu0 0
  %759 = vmatpush1.bf16.msra.mxu0 0
  %760 = vmatprep.subr.bf16.mxu0 0
  %761 = vmatpush1.bf16.msra.mxu0 0
  %762 = vmatprep.subr.bf16.mxu0 0
  %763 = vmatpush1.bf16.msra.mxu0 0
  %764 = vmatprep.subr.bf16.mxu0 0
  %765 = vmatpush1.bf16.msra.mxu0 0
  %766 = vmatprep.subr.bf16.mxu0 0
  %767 = vmatpush1.bf16.msra.mxu0 0
  %768 = vmatprep.subr.bf16.mxu0 0
  %769 = vmatpush1.bf16.msra.mxu0 0
  %770 = vmatprep.subr.bf16.mxu0 0
  %771 = vmatpush1.bf16.msra.mxu0 0
  %772 = vmatprep.subr.bf16.mxu0 0
  %773 = vmatpush1.bf16.msra.mxu0 0
  %774 = vmatprep.mubr.bf16.mxu0 0
  %775 = vmatmul.mubr.bf16.gmra.mrb[0].mxu0 %v234
  %v776 = vpop.f32.mrb[0].mxu0
  %v777 = vadd.f32 0.0, %v776
  %v778 = vpop.f32.mrb[0].mxu0
  %v779 = vadd.f32 0.0, %v778
  %v780 = vpop.f32.mrb[0].mxu0
  %v781 = vadd.f32 0.0, %v780
  %v782 = vpop.f32.mrb[0].mxu0
  %v783 = vadd.f32 0.0, %v782
  %784 = vmatprep.mubr.bf16.mxu0 0
  %785 = vmatmul.mubr.bf16.gmra.mrb[0].mxu0 %v237
  %v786 = vpop.f32.mrb[0].mxu0
  %v787 = vadd.f32 0.0, %v786
  %v788 = vpop.f32.mrb[0].mxu0
  %v789 = vadd.f32 0.0, %v788
  %v790 = vpop.f32.mrb[0].mxu0
  %v791 = vadd.f32 0.0, %v790
  %v792 = vpop.f32.mrb[0].mxu0
  %v793 = vadd.f32 0.0, %v792
  %794 = vmatprep.mubr.bf16.mxu0 0
  %795 = vmatmul.mubr.bf16.gmra.mrb[0].mxu0 %v240
  %v796 = vpop.f32.mrb[0].mxu0
  %v797 = vadd.f32 0.0, %v796
  %v798 = vpop.f32.mrb[0].mxu0
  %v799 = vadd.f32 0.0, %v798
  %v800 = vpop.f32.mrb[0].mxu0
  %v801 = vadd.f32 0.0, %v800
  %v802 = vpop.f32.mrb[0].mxu0
  %v803 = vadd.f32 0.0, %v802
  %804 = vmatprep.mubr.bf16.mxu0 0
  %805 = vmatmul.mubr.bf16.gmra.mrb[0].mxu0 %v243
  %v806 = vpop.f32.mrb[0].mxu0
  %v807 = vadd.f32 0.0, %v806
  %v808 = vpop.f32.mrb[0].mxu0
  %v809 = vadd.f32 0.0, %v808
  %v810 = vpop.f32.mrb[0].mxu0
  %v811 = vadd.f32 0.0, %v810
  %v812 = vpop.f32.mrb[0].mxu0
  %v813 = vadd.f32 0.0, %v812
  %814 = vmatprep.mubr.bf16.mxu0 0
  %815 = vmatmul.mubr.bf16.gmra.mrb[0].mxu0 %v246
  %v816 = vpop.f32.mrb[0].mxu0
  %v817 = vadd.f32 0.0, %v816
  %v818 = vpop.f32.mrb[0].mxu0
  %v819 = vadd.f32 0.0, %v818
  %v820 = vpop.f32.mrb[0].mxu0
  %v821 = vadd.f32 0.0, %v820
  %v822 = vpop.f32.mrb[0].mxu0
  %v823 = vadd.f32 0.0, %v822
  %824 = vmatprep.mubr.bf16.mxu0 0
  %825 = vmatmul.mubr.bf16.gmra.mrb[0].mxu0 %v249
  %v826 = vpop.f32.mrb[0].mxu0
  %v827 = vadd.f32 0.0, %v826
  %v828 = vpop.f32.mrb[0].mxu0
  %v829 = vadd.f32 0.0, %v828
  %v830 = vpop.f32.mrb[0].mxu0
  %v831 = vadd.f32 0.0, %v830
  %v832 = vpop.f32.mrb[0].mxu0
  %v833 = vadd.f32 0.0, %v832
  %834 = vmatprep.mubr.bf16.mxu0 0
  %835 = vmatmul.mubr.bf16.gmra.mrb[0].mxu0 %v252
  %v836 = vpop.f32.mrb[0].mxu0
  %v837 = vadd.f32 0.0, %v836
  %v838 = vpop.f32.mrb[0].mxu0
  %v839 = vadd.f32 0.0, %v838
  %v840 = vpop.f32.mrb[0].mxu0
  %v841 = vadd.f32 0.0, %v840
  %v842 = vpop.f32.mrb[0].mxu0
  %v843 = vadd.f32 0.0, %v842
  %844 = vmatprep.mubr.bf16.mxu0 0
  %845 = vmatmul.mubr.bf16.gmra.mrb[0].mxu0 %v255
  %v846 = vpop.f32.mrb[0].mxu0
  %v847 = vadd.f32 0.0, %v846
  %v848 = vpop.f32.mrb[0].mxu0
  %v849 = vadd.f32 0.0, %v848
  %v850 = vpop.f32.mrb[0].mxu0
  %v851 = vadd.f32 0.0, %v850
  %v852 = vpop.f32.mrb[0].mxu0
  %v853 = vadd.f32 0.0, %v852
  %854 = vmatprep.mubr.bf16.mxu0 0
  %855 = vmatmul.mubr.bf16.gmra.mrb[0].mxu0 %v258
  %v856 = vpop.f32.mrb[0].mxu0
  %v857 = vadd.f32 0.0, %v856
  %v858 = vpop.f32.mrb[0].mxu0
  %v859 = vadd.f32 0.0, %v858
  %v860 = vpop.f32.mrb[0].mxu0
  %v861 = vadd.f32 0.0, %v860
  %v862 = vpop.f32.mrb[0].mxu0
  %v863 = vadd.f32 0.0, %v862
  %864 = vmatprep.mubr.bf16.mxu0 0
  %865 = vmatmul.mubr.bf16.gmra.mrb[0].mxu0 %v261
  %v866 = vpop.f32.mrb[0].mxu0
  %v867 = vadd.f32 0.0, %v866
  %v868 = vpop.f32.mrb[0].mxu0
  %v869 = vadd.f32 0.0, %v868
  %v870 = vpop.f32.mrb[0].mxu0
  %v871 = vadd.f32 0.0, %v870
  %v872 = vpop.f32.mrb[0].mxu0
  %v873 = vadd.f32 0.0, %v872
  %874 = vmatprep.mubr.bf16.mxu0 0
  %875 = vmatmul.mubr.bf16.gmra.mrb[0].mxu0 %v264
  %v876 = vpop.f32.mrb[0].mxu0
  %v877 = vadd.f32 0.0, %v876
  %v878 = vpop.f32.mrb[0].mxu0
  %v879 = vadd.f32 0.0, %v878
  %v880 = vpop.f32.mrb[0].mxu0
  %v881 = vadd.f32 0.0, %v880
  %v882 = vpop.f32.mrb[0].mxu0
  %v883 = vadd.f32 0.0, %v882
  %884 = vmatprep.mubr.bf16.mxu0 0
  %885 = vmatmul.mubr.bf16.gmra.mrb[0].mxu0 %v267
  %v886 = vpop.f32.mrb[0].mxu0
  %v887 = vadd.f32 0.0, %v886
  %v888 = vpop.f32.mrb[0].mxu0
  %v889 = vadd.f32 0.0, %v888
  %v890 = vpop.f32.mrb[0].mxu0
  %v891 = vadd.f32 0.0, %v890
  %v892 = vpop.f32.mrb[0].mxu0
  %v893 = vadd.f32 0.0, %v892
  %894 = vmatprep.mubr.bf16.mxu0 0
  %895 = vmatmul.mubr.bf16.gmra.mrb[0].mxu0 %v270
  %v896 = vpop.f32.mrb[0].mxu0
  %v897 = vadd.f32 0.0, %v896
  %v898 = vpop.f32.mrb[0].mxu0
  %v899 = vadd.f32 0.0, %v898
  %v900 = vpop.f32.mrb[0].mxu0
  %v901 = vadd.f32 0.0, %v900
  %v902 = vpop.f32.mrb[0].mxu0
  %v903 = vadd.f32 0.0, %v902
  %904 = vmatprep.mubr.bf16.mxu0 0
  %905 = vmatmul.mubr.bf16.gmra.mrb[0].mxu0 %v273
  %v906 = vpop.f32.mrb[0].mxu0
  %v907 = vadd.f32 0.0, %v906
  %v908 = vpop.f32.mrb[0].mxu0
  %v909 = vadd.f32 0.0, %v908
  %v910 = vpop.f32.mrb[0].mxu0
  %v911 = vadd.f32 0.0, %v910
  %v912 = vpop.f32.mrb[0].mxu0
  %v913 = vadd.f32 0.0, %v912
  %914 = vmatprep.mubr.bf16.mxu0 0
  %915 = vmatmul.mubr.bf16.gmra.mrb[0].mxu0 %v276
  %v916 = vpop.f32.mrb[0].mxu0
  %v917 = vadd.f32 0.0, %v916
  %v918 = vpop.f32.mrb[0].mxu0
  %v919 = vadd.f32 0.0, %v918
  %v920 = vpop.f32.mrb[0].mxu0
  %v921 = vadd.f32 0.0, %v920
  %v922 = vpop.f32.mrb[0].mxu0
  %v923 = vadd.f32 0.0, %v922
  %924 = vmatprep.mubr.bf16.mxu0 0
  %925 = vmatmul.mubr.bf16.gmra.mrb[0].mxu0 %v279
  %v926 = vpop.f32.mrb[0].mxu0
  %v927 = vadd.f32 0.0, %v926
  %v928 = vpop.f32.mrb[0].mxu0
  %v929 = vadd.f32 0.0, %v928
  %v930 = vpop.f32.mrb[0].mxu0
  %v931 = vadd.f32 0.0, %v930
  %v932 = vpop.f32.mrb[0].mxu0
  %v933 = vadd.f32 0.0, %v932
  %934 = vdwg.mxu0
  %v935 = vrot.slane %v777, 5
  %v936 = vrot.slane %v779, 5
  %v937 = vrot.slane %v781, 5
  %v938 = vrot.slane %v783, 5
  %v939 = vrot.slane %v787, 5
  %v940 = vrot.slane %v789, 5
  %v941 = vrot.slane %v791, 5
  %v942 = vrot.slane %v793, 5
  %v943 = vrot.slane %v797, 5
  %v944 = vrot.slane %v799, 5
  %v945 = vrot.slane %v801, 5
  %v946 = vrot.slane %v803, 5
  %v947 = vrot.slane %v807, 5
  %v948 = vrot.slane %v809, 5
  %v949 = vrot.slane %v811, 5
  %v950 = vrot.slane %v813, 5
  %v951 = vrot.slane %v817, 5
  %v952 = vrot.slane %v819, 5
  %v953 = vrot.slane %v821, 5
  %v954 = vrot.slane %v823, 5
  %v955 = vrot.slane %v827, 5
  %v956 = vrot.slane %v829, 5
  %v957 = vrot.slane %v831, 5
  %v958 = vrot.slane %v833, 5
  %v959 = vrot.slane %v837, 5
  %v960 = vrot.slane %v839, 5
  %v961 = vrot.slane %v841, 5
  %v962 = vrot.slane %v843, 5
  %v963 = vrot.slane %v847, 5
  %v964 = vrot.slane %v849, 5
  %v965 = vrot.slane %v851, 5
  %v966 = vrot.slane %v853, 5
  %v967 = vrot.slane %v857, 5
  %v968 = vrot.slane %v859, 5
  %v969 = vrot.slane %v861, 5
  %v970 = vrot.slane %v863, 5
  %v971 = vrot.slane %v867, 5
  %v972 = vrot.slane %v869, 5
  %v973 = vrot.slane %v871, 5
  %v974 = vrot.slane %v873, 5
  %v975 = vrot.slane %v877, 5
  %v976 = vrot.slane %v879, 5
  %v977 = vrot.slane %v881, 5
  %v978 = vrot.slane %v883, 5
  %v979 = vrot.slane %v887, 5
  %v980 = vrot.slane %v889, 5
  %v981 = vrot.slane %v891, 5
  %v982 = vrot.slane %v893, 5
  %v983 = vrot.slane %v897, 5
  %v984 = vrot.slane %v899, 5
  %v985 = vrot.slane %v901, 5
  %v986 = vrot.slane %v903, 5
  %v987 = vrot.slane %v907, 5
  %v988 = vrot.slane %v909, 5
  %v989 = vrot.slane %v911, 5
  %v990 = vrot.slane %v913, 5
  %v991 = vrot.slane %v917, 5
  %v992 = vrot.slane %v919, 5
  %v993 = vrot.slane %v921, 5
  %v994 = vrot.slane %v923, 5
  %v995 = vrot.slane %v927, 5
  %v996 = vrot.slane %v929, 5
  %v997 = vrot.slane %v931, 5
  %v998 = vrot.slane %v933, 5
  %vm999 = vcmp.lt.s32.totalorder %v539, 3
  %v1000 = vsel %vm999, %v995, %v997
  %v1001 = vsel %vm999, %v996, %v998
  %v1002 = vsel %vm999, %v993, %v995
  %v1003 = vsel %vm999, %v994, %v996
  %v1004 = vsel %vm999, %v991, %v993
  %v1005 = vsel %vm999, %v992, %v994
  %v1006 = vsel %vm999, %v989, %v991
  %v1007 = vsel %vm999, %v990, %v992
  %v1008 = vsel %vm999, %v987, %v989
  %v1009 = vsel %vm999, %v988, %v990
  %v1010 = vsel %vm999, %v985, %v987
  %v1011 = vsel %vm999, %v986, %v988
  %v1012 = vsel %vm999, %v983, %v985
  %v1013 = vsel %vm999, %v984, %v986
  %v1014 = vsel %vm999, %v981, %v983
  %v1015 = vsel %vm999, %v982, %v984
  %v1016 = vsel %vm999, %v979, %v981
  %v1017 = vsel %vm999, %v980, %v982
  %v1018 = vsel %vm999, %v977, %v979
  %v1019 = vsel %vm999, %v978, %v980
  %v1020 = vsel %vm999, %v975, %v977
  %v1021 = vsel %vm999, %v976, %v978
  %v1022 = vsel %vm999, %v973, %v975
  %v1023 = vsel %vm999, %v974, %v976
  %v1024 = vsel %vm999, %v971, %v973
  %v1025 = vsel %vm999, %v972, %v974
  %v1026 = vsel %vm999, %v969, %v971
  %v1027 = vsel %vm999, %v970, %v972
  %v1028 = vsel %vm999, %v967, %v969
  %v1029 = vsel %vm999, %v968, %v970
  %v1030 = vsel %vm999, %v965, %v967
  %v1031 = vsel %vm999, %v966, %v968
  %v1032 = vsel %vm999, %v963, %v965
  %v1033 = vsel %vm999, %v964, %v966
  %v1034 = vsel %vm999, %v961, %v963
  %v1035 = vsel %vm999, %v962, %v964
  %v1036 = vsel %vm999, %v959, %v961
  %v1037 = vsel %vm999, %v960, %v962
  %v1038 = vsel %vm999, %v957, %v959
  %v1039 = vsel %vm999, %v958, %v960
  %v1040 = vsel %vm999, %v955, %v957
  %v1041 = vsel %vm999, %v956, %v958
  %v1042 = vsel %vm999, %v953, %v955
  %v1043 = vsel %vm999, %v954, %v956
  %v1044 = vsel %vm999, %v951, %v953
  %v1045 = vsel %vm999, %v952, %v954
  %v1046 = vsel %vm999, %v949, %v951
  %v1047 = vsel %vm999, %v950, %v952
  %v1048 = vsel %vm999, %v947, %v949
  %v1049 = vsel %vm999, %v948, %v950
  %v1050 = vsel %vm999, %v945, %v947
  %v1051 = vsel %vm999, %v946, %v948
  %v1052 = vsel %vm999, %v943, %v945
  %v1053 = vsel %vm999, %v944, %v946
  %v1054 = vsel %vm999, %v941, %v943
  %v1055 = vsel %vm999, %v942, %v944
  %v1056 = vsel %vm999, %v939, %v941
  %v1057 = vsel %vm999, %v940, %v942
  %v1058 = vsel %vm999, %v937, %v939
  %v1059 = vsel %vm999, %v938, %v940
  %v1060 = vsel %vm999, %v935, %v937
  %v1061 = vsel %vm999, %v936, %v938
  %v1062 = vsel %vm999, %v997, %v935
  %v1063 = vsel %vm999, %v998, %v936
  %v1064 = vadd.f32 %v605, %v1062
  %v1065 = vadd.f32 %v606, %v1063
  %v1066 = vadd.f32 %v607, %v1060
  %v1067 = vadd.f32 %v608, %v1061
  %v1068 = vadd.f32 %v609, %v1058
  %v1069 = vadd.f32 %v610, %v1059
  %v1070 = vadd.f32 %v611, %v1056
  %v1071 = vadd.f32 %v612, %v1057
  %v1072 = vadd.f32 %v613, %v1054
  %v1073 = vadd.f32 %v614, %v1055
  %v1074 = vadd.f32 %v615, %v1052
  %v1075 = vadd.f32 %v616, %v1053
  %v1076 = vadd.f32 %v617, %v1050
  %v1077 = vadd.f32 %v618, %v1051
  %v1078 = vadd.f32 %v619, %v1048
  %v1079 = vadd.f32 %v620, %v1049
  %v1080 = vadd.f32 %v621, %v1046
  %v1081 = vadd.f32 %v622, %v1047
  %v1082 = vadd.f32 %v623, %v1044
  %v1083 = vadd.f32 %v624, %v1045
  %v1084 = vadd.f32 %v625, %v1042
  %v1085 = vadd.f32 %v626, %v1043
  %v1086 = vadd.f32 %v627, %v1040
  %v1087 = vadd.f32 %v628, %v1041
  %v1088 = vadd.f32 %v629, %v1038
  %v1089 = vadd.f32 %v630, %v1039
  %v1090 = vadd.f32 %v631, %v1036
  %v1091 = vadd.f32 %v632, %v1037
  %v1092 = vadd.f32 %v633, %v1034
  %v1093 = vadd.f32 %v634, %v1035
  %v1094 = vadd.f32 %v635, %v1032
  %v1095 = vadd.f32 %v636, %v1033
  %v1096 = vadd.f32 %v637, %v1030
  %v1097 = vadd.f32 %v638, %v1031
  %v1098 = vadd.f32 %v639, %v1028
  %v1099 = vadd.f32 %v640, %v1029
  %v1100 = vadd.f32 %v641, %v1026
  %v1101 = vadd.f32 %v642, %v1027
  %v1102 = vadd.f32 %v643, %v1024
  %v1103 = vadd.f32 %v644, %v1025
  %v1104 = vadd.f32 %v645, %v1022
  %v1105 = vadd.f32 %v646, %v1023
  %v1106 = vadd.f32 %v647, %v1020
  %v1107 = vadd.f32 %v648, %v1021
  %v1108 = vadd.f32 %v649, %v1018
  %v1109 = vadd.f32 %v650, %v1019
  %v1110 = vadd.f32 %v651, %v1016
  %v1111 = vadd.f32 %v652, %v1017
  %v1112 = vadd.f32 %v653, %v1014
  %v1113 = vadd.f32 %v654, %v1015
  %v1114 = vadd.f32 %v655, %v1012
  %v1115 = vadd.f32 %v656, %v1013
  %v1116 = vadd.f32 %v657, %v1010
  %v1117 = vadd.f32 %v658, %v1011
  %v1118 = vadd.f32 %v659, %v1008
  %v1119 = vadd.f32 %v660, %v1009
  %v1120 = vadd.f32 %v661, %v1006
  %v1121 = vadd.f32 %v662, %v1007
  %v1122 = vadd.f32 %v663, %v1004
  %v1123 = vadd.f32 %v664, %v1005
  %v1124 = vadd.f32 %v665, %v1002
  %v1125 = vadd.f32 %v666, %v1003
  %v1126 = vadd.f32 %v667, %v1000
  %v1127 = vadd.f32 %v668, %v1001
  %s1128 = scalar_lea.vmem %s1, 192
  %v1129 = vld [vmem:[%s1128] sm:$0xff]
  %v1130 = vld [vmem:[%s1128 + $0x8] sm:$0xff]
  %v1131 = vld [vmem:[%s1128 + $0x10] sm:$0xff]
  %v1132 = vld [vmem:[%s1128 + $0x18] sm:$0xff]
  %v1133 = vld [vmem:[%s1128 + $0x20] sm:$0xff]
  %v1134 = vld [vmem:[%s1128 + $0x28] sm:$0xff]
  %v1135 = vld [vmem:[%s1128 + $0x30] sm:$0xff]
  %v1136 = vld [vmem:[%s1128 + $0x38] sm:$0xff]
  %v1137 = vld [vmem:[%s1128 + $0x40] sm:$0xff]
  %v1138 = vld [vmem:[%s1128 + $0x48] sm:$0xff]
  %v1139 = vld [vmem:[%s1128 + $0x50] sm:$0xff]
  %v1140 = vld [vmem:[%s1128 + $0x58] sm:$0xff]
  %v1153 = vunpack.c.l.b16 %v1129
  %v1154 = vunpack.c.h.b16 %v1129
  %v1155 = vunpack.c.l.b16 %v1130
  %v1156 = vunpack.c.h.b16 %v1130
  %v1157 = vunpack.c.l.b16 %v1131
  %v1158 = vunpack.c.h.b16 %v1131
  %v1159 = vunpack.c.l.b16 %v1132
  %v1160 = vunpack.c.h.b16 %v1132
  %v1161 = vunpack.c.l.b16 %v1133
  %v1162 = vunpack.c.h.b16 %v1133
  %v1163 = vunpack.c.l.b16 %v1134
  %v1164 = vunpack.c.h.b16 %v1134
  %v1165 = vunpack.c.l.b16 %v1135
  %v1166 = vunpack.c.h.b16 %v1135
  %v1167 = vunpack.c.l.b16 %v1136
  %v1168 = vunpack.c.h.b16 %v1136
  %v1169 = vunpack.c.l.b16 %v1137
  %v1170 = vunpack.c.h.b16 %v1137
  %v1171 = vunpack.c.l.b16 %v1138
  %v1172 = vunpack.c.h.b16 %v1138
  %v1173 = vunpack.c.l.b16 %v1139
  %v1174 = vunpack.c.h.b16 %v1139
  %v1175 = vunpack.c.l.b16 %v1140
  %v1176 = vunpack.c.h.b16 %v1140
  %v1177 = vpack.c.b16 %v1155, %v1153
  %v1178 = vpack.c.b16 %v1156, %v1154
  %v1179 = vpack.c.b16 %v1159, %v1157
  %v1180 = vpack.c.b16 %v1160, %v1158
  %v1181 = vpack.c.b16 %v1163, %v1161
  %v1182 = vpack.c.b16 %v1164, %v1162
  %v1183 = vpack.c.b16 %v1167, %v1165
  %v1184 = vpack.c.b16 %v1168, %v1166
  %v1185 = vpack.c.b16 %v1171, %v1169
  %v1186 = vpack.c.b16 %v1172, %v1170
  %v1187 = vpack.c.b16 %v1175, %v1173
  %v1188 = vpack.c.b16 %v1176, %v1174
  %1201 = vmatprep.subr.bf16.mxu0 %v1178
  %1202 = vmatpush1.bf16.msra.mxu0 %v1177
  %1203 = vmatprep.subr.bf16.mxu0 %v1180
  %1204 = vmatpush1.bf16.msra.mxu0 %v1179
  %1205 = vmatprep.subr.bf16.mxu0 %v1182
  %1206 = vmatpush1.bf16.msra.mxu0 %v1181
  %1207 = vmatprep.subr.bf16.mxu0 %v1184
  %1208 = vmatpush1.bf16.msra.mxu0 %v1183
  %1209 = vmatprep.subr.bf16.mxu0 %v1186
  %1210 = vmatpush1.bf16.msra.mxu0 %v1185
  %1211 = vmatprep.subr.bf16.mxu0 %v1188
  %1212 = vmatpush1.bf16.msra.mxu0 %v1187
  %1213 = vmatprep.subr.bf16.mxu0 0
  %1214 = vmatpush1.bf16.msra.mxu0 0
  %1215 = vmatprep.subr.bf16.mxu0 0
  %1216 = vmatpush1.bf16.msra.mxu0 0
  %1217 = vmatprep.subr.bf16.mxu0 0
  %1218 = vmatpush1.bf16.msra.mxu0 0
  %1219 = vmatprep.subr.bf16.mxu0 0
  %1220 = vmatpush1.bf16.msra.mxu0 0
  %1221 = vmatprep.subr.bf16.mxu0 0
  %1222 = vmatpush1.bf16.msra.mxu0 0
  %1223 = vmatprep.subr.bf16.mxu0 0
  %1224 = vmatpush1.bf16.msra.mxu0 0
  %1225 = vmatprep.subr.bf16.mxu0 0
  %1226 = vmatpush1.bf16.msra.mxu0 0
  %1227 = vmatprep.subr.bf16.mxu0 0
  %1228 = vmatpush1.bf16.msra.mxu0 0
  %1229 = vmatprep.subr.bf16.mxu0 0
  %1230 = vmatpush1.bf16.msra.mxu0 0
  %1231 = vmatprep.subr.bf16.mxu0 0
  %1232 = vmatpush1.bf16.msra.mxu0 0
  %1233 = vmatprep.mubr.bf16.mxu0 0
  %1234 = vmatmul.mubr.bf16.gmra.mrb[0].mxu0 %v234
  %v1235 = vpop.f32.mrb[0].mxu0
  %v1236 = vadd.f32 0.0, %v1235
  %v1237 = vpop.f32.mrb[0].mxu0
  %v1238 = vadd.f32 0.0, %v1237
  %v1239 = vpop.f32.mrb[0].mxu0
  %v1240 = vadd.f32 0.0, %v1239
  %v1241 = vpop.f32.mrb[0].mxu0
  %v1242 = vadd.f32 0.0, %v1241
  %1243 = vmatprep.mubr.bf16.mxu0 0
  %1244 = vmatmul.mubr.bf16.gmra.mrb[0].mxu0 %v237
  %v1245 = vpop.f32.mrb[0].mxu0
  %v1246 = vadd.f32 0.0, %v1245
  %v1247 = vpop.f32.mrb[0].mxu0
  %v1248 = vadd.f32 0.0, %v1247
  %v1249 = vpop.f32.mrb[0].mxu0
  %v1250 = vadd.f32 0.0, %v1249
  %v1251 = vpop.f32.mrb[0].mxu0
  %v1252 = vadd.f32 0.0, %v1251
  %1253 = vmatprep.mubr.bf16.mxu0 0
  %1254 = vmatmul.mubr.bf16.gmra.mrb[0].mxu0 %v240
  %v1255 = vpop.f32.mrb[0].mxu0
  %v1256 = vadd.f32 0.0, %v1255
  %v1257 = vpop.f32.mrb[0].mxu0
  %v1258 = vadd.f32 0.0, %v1257
  %v1259 = vpop.f32.mrb[0].mxu0
  %v1260 = vadd.f32 0.0, %v1259
  %v1261 = vpop.f32.mrb[0].mxu0
  %v1262 = vadd.f32 0.0, %v1261
  %1263 = vmatprep.mubr.bf16.mxu0 0
  %1264 = vmatmul.mubr.bf16.gmra.mrb[0].mxu0 %v243
  %v1265 = vpop.f32.mrb[0].mxu0
  %v1266 = vadd.f32 0.0, %v1265
  %v1267 = vpop.f32.mrb[0].mxu0
  %v1268 = vadd.f32 0.0, %v1267
  %v1269 = vpop.f32.mrb[0].mxu0
  %v1270 = vadd.f32 0.0, %v1269
  %v1271 = vpop.f32.mrb[0].mxu0
  %v1272 = vadd.f32 0.0, %v1271
  %1273 = vmatprep.mubr.bf16.mxu0 0
  %1274 = vmatmul.mubr.bf16.gmra.mrb[0].mxu0 %v246
  %v1275 = vpop.f32.mrb[0].mxu0
  %v1276 = vadd.f32 0.0, %v1275
  %v1277 = vpop.f32.mrb[0].mxu0
  %v1278 = vadd.f32 0.0, %v1277
  %v1279 = vpop.f32.mrb[0].mxu0
  %v1280 = vadd.f32 0.0, %v1279
  %v1281 = vpop.f32.mrb[0].mxu0
  %v1282 = vadd.f32 0.0, %v1281
  %1283 = vmatprep.mubr.bf16.mxu0 0
  %1284 = vmatmul.mubr.bf16.gmra.mrb[0].mxu0 %v249
  %v1285 = vpop.f32.mrb[0].mxu0
  %v1286 = vadd.f32 0.0, %v1285
  %v1287 = vpop.f32.mrb[0].mxu0
  %v1288 = vadd.f32 0.0, %v1287
  %v1289 = vpop.f32.mrb[0].mxu0
  %v1290 = vadd.f32 0.0, %v1289
  %v1291 = vpop.f32.mrb[0].mxu0
  %v1292 = vadd.f32 0.0, %v1291
  %1293 = vmatprep.mubr.bf16.mxu0 0
  %1294 = vmatmul.mubr.bf16.gmra.mrb[0].mxu0 %v252
  %v1295 = vpop.f32.mrb[0].mxu0
  %v1296 = vadd.f32 0.0, %v1295
  %v1297 = vpop.f32.mrb[0].mxu0
  %v1298 = vadd.f32 0.0, %v1297
  %v1299 = vpop.f32.mrb[0].mxu0
  %v1300 = vadd.f32 0.0, %v1299
  %v1301 = vpop.f32.mrb[0].mxu0
  %v1302 = vadd.f32 0.0, %v1301
  %1303 = vmatprep.mubr.bf16.mxu0 0
  %1304 = vmatmul.mubr.bf16.gmra.mrb[0].mxu0 %v255
  %v1305 = vpop.f32.mrb[0].mxu0
  %v1306 = vadd.f32 0.0, %v1305
  %v1307 = vpop.f32.mrb[0].mxu0
  %v1308 = vadd.f32 0.0, %v1307
  %v1309 = vpop.f32.mrb[0].mxu0
  %v1310 = vadd.f32 0.0, %v1309
  %v1311 = vpop.f32.mrb[0].mxu0
  %v1312 = vadd.f32 0.0, %v1311
  %1313 = vmatprep.mubr.bf16.mxu0 0
  %1314 = vmatmul.mubr.bf16.gmra.mrb[0].mxu0 %v258
  %v1315 = vpop.f32.mrb[0].mxu0
  %v1316 = vadd.f32 0.0, %v1315
  %v1317 = vpop.f32.mrb[0].mxu0
  %v1318 = vadd.f32 0.0, %v1317
  %v1319 = vpop.f32.mrb[0].mxu0
  %v1320 = vadd.f32 0.0, %v1319
  %v1321 = vpop.f32.mrb[0].mxu0
  %v1322 = vadd.f32 0.0, %v1321
  %1323 = vmatprep.mubr.bf16.mxu0 0
  %1324 = vmatmul.mubr.bf16.gmra.mrb[0].mxu0 %v261
  %v1325 = vpop.f32.mrb[0].mxu0
  %v1326 = vadd.f32 0.0, %v1325
  %v1327 = vpop.f32.mrb[0].mxu0
  %v1328 = vadd.f32 0.0, %v1327
  %v1329 = vpop.f32.mrb[0].mxu0
  %v1330 = vadd.f32 0.0, %v1329
  %v1331 = vpop.f32.mrb[0].mxu0
  %v1332 = vadd.f32 0.0, %v1331
  %1333 = vmatprep.mubr.bf16.mxu0 0
  %1334 = vmatmul.mubr.bf16.gmra.mrb[0].mxu0 %v264
  %v1335 = vpop.f32.mrb[0].mxu0
  %v1336 = vadd.f32 0.0, %v1335
  %v1337 = vpop.f32.mrb[0].mxu0
  %v1338 = vadd.f32 0.0, %v1337
  %v1339 = vpop.f32.mrb[0].mxu0
  %v1340 = vadd.f32 0.0, %v1339
  %v1341 = vpop.f32.mrb[0].mxu0
  %v1342 = vadd.f32 0.0, %v1341
  %1343 = vmatprep.mubr.bf16.mxu0 0
  %1344 = vmatmul.mubr.bf16.gmra.mrb[0].mxu0 %v267
  %v1345 = vpop.f32.mrb[0].mxu0
  %v1346 = vadd.f32 0.0, %v1345
  %v1347 = vpop.f32.mrb[0].mxu0
  %v1348 = vadd.f32 0.0, %v1347
  %v1349 = vpop.f32.mrb[0].mxu0
  %v1350 = vadd.f32 0.0, %v1349
  %v1351 = vpop.f32.mrb[0].mxu0
  %v1352 = vadd.f32 0.0, %v1351
  %1353 = vmatprep.mubr.bf16.mxu0 0
  %1354 = vmatmul.mubr.bf16.gmra.mrb[0].mxu0 %v270
  %v1355 = vpop.f32.mrb[0].mxu0
  %v1356 = vadd.f32 0.0, %v1355
  %v1357 = vpop.f32.mrb[0].mxu0
  %v1358 = vadd.f32 0.0, %v1357
  %v1359 = vpop.f32.mrb[0].mxu0
  %v1360 = vadd.f32 0.0, %v1359
  %v1361 = vpop.f32.mrb[0].mxu0
  %v1362 = vadd.f32 0.0, %v1361
  %1363 = vmatprep.mubr.bf16.mxu0 0
  %1364 = vmatmul.mubr.bf16.gmra.mrb[0].mxu0 %v273
  %v1365 = vpop.f32.mrb[0].mxu0
  %v1366 = vadd.f32 0.0, %v1365
  %v1367 = vpop.f32.mrb[0].mxu0
  %v1368 = vadd.f32 0.0, %v1367
  %v1369 = vpop.f32.mrb[0].mxu0
  %v1370 = vadd.f32 0.0, %v1369
  %v1371 = vpop.f32.mrb[0].mxu0
  %v1372 = vadd.f32 0.0, %v1371
  %1373 = vmatprep.mubr.bf16.mxu0 0
  %1374 = vmatmul.mubr.bf16.gmra.mrb[0].mxu0 %v276
  %v1375 = vpop.f32.mrb[0].mxu0
  %v1376 = vadd.f32 0.0, %v1375
  %v1377 = vpop.f32.mrb[0].mxu0
  %v1378 = vadd.f32 0.0, %v1377
  %v1379 = vpop.f32.mrb[0].mxu0
  %v1380 = vadd.f32 0.0, %v1379
  %v1381 = vpop.f32.mrb[0].mxu0
  %v1382 = vadd.f32 0.0, %v1381
  %1383 = vmatprep.mubr.bf16.mxu0 0
  %1384 = vmatmul.mubr.bf16.gmra.mrb[0].mxu0 %v279
  %v1385 = vpop.f32.mrb[0].mxu0
  %v1386 = vadd.f32 0.0, %v1385
  %v1387 = vpop.f32.mrb[0].mxu0
  %v1388 = vadd.f32 0.0, %v1387
  %v1389 = vpop.f32.mrb[0].mxu0
  %v1390 = vadd.f32 0.0, %v1389
  %v1391 = vpop.f32.mrb[0].mxu0
  %v1392 = vadd.f32 0.0, %v1391
  %1393 = vdwg.mxu0
  %v1394 = vrot.slane %v1236, 6
  %v1395 = vrot.slane %v1238, 6
  %v1396 = vrot.slane %v1240, 6
  %v1397 = vrot.slane %v1242, 6
  %v1398 = vrot.slane %v1246, 6
  %v1399 = vrot.slane %v1248, 6
  %v1400 = vrot.slane %v1250, 6
  %v1401 = vrot.slane %v1252, 6
  %v1402 = vrot.slane %v1256, 6
  %v1403 = vrot.slane %v1258, 6
  %v1404 = vrot.slane %v1260, 6
  %v1405 = vrot.slane %v1262, 6
  %v1406 = vrot.slane %v1266, 6
  %v1407 = vrot.slane %v1268, 6
  %v1408 = vrot.slane %v1270, 6
  %v1409 = vrot.slane %v1272, 6
  %v1410 = vrot.slane %v1276, 6
  %v1411 = vrot.slane %v1278, 6
  %v1412 = vrot.slane %v1280, 6
  %v1413 = vrot.slane %v1282, 6
  %v1414 = vrot.slane %v1286, 6
  %v1415 = vrot.slane %v1288, 6
  %v1416 = vrot.slane %v1290, 6
  %v1417 = vrot.slane %v1292, 6
  %v1418 = vrot.slane %v1296, 6
  %v1419 = vrot.slane %v1298, 6
  %v1420 = vrot.slane %v1300, 6
  %v1421 = vrot.slane %v1302, 6
  %v1422 = vrot.slane %v1306, 6
  %v1423 = vrot.slane %v1308, 6
  %v1424 = vrot.slane %v1310, 6
  %v1425 = vrot.slane %v1312, 6
  %v1426 = vrot.slane %v1316, 6
  %v1427 = vrot.slane %v1318, 6
  %v1428 = vrot.slane %v1320, 6
  %v1429 = vrot.slane %v1322, 6
  %v1430 = vrot.slane %v1326, 6
  %v1431 = vrot.slane %v1328, 6
  %v1432 = vrot.slane %v1330, 6
  %v1433 = vrot.slane %v1332, 6
  %v1434 = vrot.slane %v1336, 6
  %v1435 = vrot.slane %v1338, 6
  %v1436 = vrot.slane %v1340, 6
  %v1437 = vrot.slane %v1342, 6
  %v1438 = vrot.slane %v1346, 6
  %v1439 = vrot.slane %v1348, 6
  %v1440 = vrot.slane %v1350, 6
  %v1441 = vrot.slane %v1352, 6
  %v1442 = vrot.slane %v1356, 6
  %v1443 = vrot.slane %v1358, 6
  %v1444 = vrot.slane %v1360, 6
  %v1445 = vrot.slane %v1362, 6
  %v1446 = vrot.slane %v1366, 6
  %v1447 = vrot.slane %v1368, 6
  %v1448 = vrot.slane %v1370, 6
  %v1449 = vrot.slane %v1372, 6
  %v1450 = vrot.slane %v1376, 6
  %v1451 = vrot.slane %v1378, 6
  %v1452 = vrot.slane %v1380, 6
  %v1453 = vrot.slane %v1382, 6
  %v1454 = vrot.slane %v1386, 6
  %v1455 = vrot.slane %v1388, 6
  %v1456 = vrot.slane %v1390, 6
  %v1457 = vrot.slane %v1392, 6
  %vm1458 = vcmp.lt.s32.totalorder %v539, 2
  %v1459 = vsel %vm1458, %v1454, %v1456
  %v1460 = vsel %vm1458, %v1455, %v1457
  %v1461 = vsel %vm1458, %v1452, %v1454
  %v1462 = vsel %vm1458, %v1453, %v1455
  %v1463 = vsel %vm1458, %v1450, %v1452
  %v1464 = vsel %vm1458, %v1451, %v1453
  %v1465 = vsel %vm1458, %v1448, %v1450
  %v1466 = vsel %vm1458, %v1449, %v1451
  %v1467 = vsel %vm1458, %v1446, %v1448
  %v1468 = vsel %vm1458, %v1447, %v1449
  %v1469 = vsel %vm1458, %v1444, %v1446
  %v1470 = vsel %vm1458, %v1445, %v1447
  %v1471 = vsel %vm1458, %v1442, %v1444
  %v1472 = vsel %vm1458, %v1443, %v1445
  %v1473 = vsel %vm1458, %v1440, %v1442
  %v1474 = vsel %vm1458, %v1441, %v1443
  %v1475 = vsel %vm1458, %v1438, %v1440
  %v1476 = vsel %vm1458, %v1439, %v1441
  %v1477 = vsel %vm1458, %v1436, %v1438
  %v1478 = vsel %vm1458, %v1437, %v1439
  %v1479 = vsel %vm1458, %v1434, %v1436
  %v1480 = vsel %vm1458, %v1435, %v1437
  %v1481 = vsel %vm1458, %v1432, %v1434
  %v1482 = vsel %vm1458, %v1433, %v1435
  %v1483 = vsel %vm1458, %v1430, %v1432
  %v1484 = vsel %vm1458, %v1431, %v1433
  %v1485 = vsel %vm1458, %v1428, %v1430
  %v1486 = vsel %vm1458, %v1429, %v1431
  %v1487 = vsel %vm1458, %v1426, %v1428
  %v1488 = vsel %vm1458, %v1427, %v1429
  %v1489 = vsel %vm1458, %v1424, %v1426
  %v1490 = vsel %vm1458, %v1425, %v1427
  %v1491 = vsel %vm1458, %v1422, %v1424
  %v1492 = vsel %vm1458, %v1423, %v1425
  %v1493 = vsel %vm1458, %v1420, %v1422
  %v1494 = vsel %vm1458, %v1421, %v1423
  %v1495 = vsel %vm1458, %v1418, %v1420
  %v1496 = vsel %vm1458, %v1419, %v1421
  %v1497 = vsel %vm1458, %v1416, %v1418
  %v1498 = vsel %vm1458, %v1417, %v1419
  %v1499 = vsel %vm1458, %v1414, %v1416
  %v1500 = vsel %vm1458, %v1415, %v1417
  %v1501 = vsel %vm1458, %v1412, %v1414
  %v1502 = vsel %vm1458, %v1413, %v1415
  %v1503 = vsel %vm1458, %v1410, %v1412
  %v1504 = vsel %vm1458, %v1411, %v1413
  %v1505 = vsel %vm1458, %v1408, %v1410
  %v1506 = vsel %vm1458, %v1409, %v1411
  %v1507 = vsel %vm1458, %v1406, %v1408
  %v1508 = vsel %vm1458, %v1407, %v1409
  %v1509 = vsel %vm1458, %v1404, %v1406
  %v1510 = vsel %vm1458, %v1405, %v1407
  %v1511 = vsel %vm1458, %v1402, %v1404
  %v1512 = vsel %vm1458, %v1403, %v1405
  %v1513 = vsel %vm1458, %v1400, %v1402
  %v1514 = vsel %vm1458, %v1401, %v1403
  %v1515 = vsel %vm1458, %v1398, %v1400
  %v1516 = vsel %vm1458, %v1399, %v1401
  %v1517 = vsel %vm1458, %v1396, %v1398
  %v1518 = vsel %vm1458, %v1397, %v1399
  %v1519 = vsel %vm1458, %v1394, %v1396
  %v1520 = vsel %vm1458, %v1395, %v1397
  %v1521 = vsel %vm1458, %v1456, %v1394
  %v1522 = vsel %vm1458, %v1457, %v1395
  %v1523 = vadd.f32 %v1064, %v1521
  %v1524 = vadd.f32 %v1065, %v1522
  %v1525 = vadd.f32 %v1066, %v1519
  %v1526 = vadd.f32 %v1067, %v1520
  %v1527 = vadd.f32 %v1068, %v1517
  %v1528 = vadd.f32 %v1069, %v1518
  %v1529 = vadd.f32 %v1070, %v1515
  %v1530 = vadd.f32 %v1071, %v1516
  %v1531 = vadd.f32 %v1072, %v1513
  %v1532 = vadd.f32 %v1073, %v1514
  %v1533 = vadd.f32 %v1074, %v1511
  %v1534 = vadd.f32 %v1075, %v1512
  %v1535 = vadd.f32 %v1076, %v1509
  %v1536 = vadd.f32 %v1077, %v1510
  %v1537 = vadd.f32 %v1078, %v1507
  %v1538 = vadd.f32 %v1079, %v1508
  %v1539 = vadd.f32 %v1080, %v1505
  %v1540 = vadd.f32 %v1081, %v1506
  %v1541 = vadd.f32 %v1082, %v1503
  %v1542 = vadd.f32 %v1083, %v1504
  %v1543 = vadd.f32 %v1084, %v1501
  %v1544 = vadd.f32 %v1085, %v1502
  %v1545 = vadd.f32 %v1086, %v1499
  %v1546 = vadd.f32 %v1087, %v1500
  %v1547 = vadd.f32 %v1088, %v1497
  %v1548 = vadd.f32 %v1089, %v1498
  %v1549 = vadd.f32 %v1090, %v1495
  %v1550 = vadd.f32 %v1091, %v1496
  %v1551 = vadd.f32 %v1092, %v1493
  %v1552 = vadd.f32 %v1093, %v1494
  %v1553 = vadd.f32 %v1094, %v1491
  %v1554 = vadd.f32 %v1095, %v1492
  %v1555 = vadd.f32 %v1096, %v1489
  %v1556 = vadd.f32 %v1097, %v1490
  %v1557 = vadd.f32 %v1098, %v1487
  %v1558 = vadd.f32 %v1099, %v1488
  %v1559 = vadd.f32 %v1100, %v1485
  %v1560 = vadd.f32 %v1101, %v1486
  %v1561 = vadd.f32 %v1102, %v1483
  %v1562 = vadd.f32 %v1103, %v1484
  %v1563 = vadd.f32 %v1104, %v1481
  %v1564 = vadd.f32 %v1105, %v1482
  %v1565 = vadd.f32 %v1106, %v1479
  %v1566 = vadd.f32 %v1107, %v1480
  %v1567 = vadd.f32 %v1108, %v1477
  %v1568 = vadd.f32 %v1109, %v1478
  %v1569 = vadd.f32 %v1110, %v1475
  %v1570 = vadd.f32 %v1111, %v1476
  %v1571 = vadd.f32 %v1112, %v1473
  %v1572 = vadd.f32 %v1113, %v1474
  %v1573 = vadd.f32 %v1114, %v1471
  %v1574 = vadd.f32 %v1115, %v1472
  %v1575 = vadd.f32 %v1116, %v1469
  %v1576 = vadd.f32 %v1117, %v1470
  %v1577 = vadd.f32 %v1118, %v1467
  %v1578 = vadd.f32 %v1119, %v1468
  %v1579 = vadd.f32 %v1120, %v1465
  %v1580 = vadd.f32 %v1121, %v1466
  %v1581 = vadd.f32 %v1122, %v1463
  %v1582 = vadd.f32 %v1123, %v1464
  %v1583 = vadd.f32 %v1124, %v1461
  %v1584 = vadd.f32 %v1125, %v1462
  %v1585 = vadd.f32 %v1126, %v1459
  %v1586 = vadd.f32 %v1127, %v1460
  %s1587 = scalar_lea.vmem %s1, 288
  %v1588 = vld [vmem:[%s1587] sm:$0xff]
  %v1589 = vld [vmem:[%s1587 + $0x8] sm:$0xff]
  %v1590 = vld [vmem:[%s1587 + $0x10] sm:$0xff]
  %v1591 = vld [vmem:[%s1587 + $0x18] sm:$0xff]
  %v1592 = vld [vmem:[%s1587 + $0x20] sm:$0xff]
  %v1593 = vld [vmem:[%s1587 + $0x28] sm:$0xff]
  %v1594 = vld [vmem:[%s1587 + $0x30] sm:$0xff]
  %v1595 = vld [vmem:[%s1587 + $0x38] sm:$0xff]
  %v1596 = vld [vmem:[%s1587 + $0x40] sm:$0xff]
  %v1597 = vld [vmem:[%s1587 + $0x48] sm:$0xff]
  %v1598 = vld [vmem:[%s1587 + $0x50] sm:$0xff]
  %v1599 = vld [vmem:[%s1587 + $0x58] sm:$0xff]
  %v1612 = vunpack.c.l.b16 %v1588
  %v1613 = vunpack.c.h.b16 %v1588
  %v1614 = vunpack.c.l.b16 %v1589
  %v1615 = vunpack.c.h.b16 %v1589
  %v1616 = vunpack.c.l.b16 %v1590
  %v1617 = vunpack.c.h.b16 %v1590
  %v1618 = vunpack.c.l.b16 %v1591
  %v1619 = vunpack.c.h.b16 %v1591
  %v1620 = vunpack.c.l.b16 %v1592
  %v1621 = vunpack.c.h.b16 %v1592
  %v1622 = vunpack.c.l.b16 %v1593
  %v1623 = vunpack.c.h.b16 %v1593
  %v1624 = vunpack.c.l.b16 %v1594
  %v1625 = vunpack.c.h.b16 %v1594
  %v1626 = vunpack.c.l.b16 %v1595
  %v1627 = vunpack.c.h.b16 %v1595
  %v1628 = vunpack.c.l.b16 %v1596
  %v1629 = vunpack.c.h.b16 %v1596
  %v1630 = vunpack.c.l.b16 %v1597
  %v1631 = vunpack.c.h.b16 %v1597
  %v1632 = vunpack.c.l.b16 %v1598
  %v1633 = vunpack.c.h.b16 %v1598
  %v1634 = vunpack.c.l.b16 %v1599
  %v1635 = vunpack.c.h.b16 %v1599
  %v1636 = vpack.c.b16 %v1614, %v1612
  %v1637 = vpack.c.b16 %v1615, %v1613
  %v1638 = vpack.c.b16 %v1618, %v1616
  %v1639 = vpack.c.b16 %v1619, %v1617
  %v1640 = vpack.c.b16 %v1622, %v1620
  %v1641 = vpack.c.b16 %v1623, %v1621
  %v1642 = vpack.c.b16 %v1626, %v1624
  %v1643 = vpack.c.b16 %v1627, %v1625
  %v1644 = vpack.c.b16 %v1630, %v1628
  %v1645 = vpack.c.b16 %v1631, %v1629
  %v1646 = vpack.c.b16 %v1634, %v1632
  %v1647 = vpack.c.b16 %v1635, %v1633
  %1660 = vmatprep.subr.bf16.mxu0 %v1637
  %1661 = vmatpush1.bf16.msra.mxu0 %v1636
  %1662 = vmatprep.subr.bf16.mxu0 %v1639
  %1663 = vmatpush1.bf16.msra.mxu0 %v1638
  %1664 = vmatprep.subr.bf16.mxu0 %v1641
  %1665 = vmatpush1.bf16.msra.mxu0 %v1640
  %1666 = vmatprep.subr.bf16.mxu0 %v1643
  %1667 = vmatpush1.bf16.msra.mxu0 %v1642
  %1668 = vmatprep.subr.bf16.mxu0 %v1645
  %1669 = vmatpush1.bf16.msra.mxu0 %v1644
  %1670 = vmatprep.subr.bf16.mxu0 %v1647
  %1671 = vmatpush1.bf16.msra.mxu0 %v1646
  %1672 = vmatprep.subr.bf16.mxu0 0
  %1673 = vmatpush1.bf16.msra.mxu0 0
  %1674 = vmatprep.subr.bf16.mxu0 0
  %1675 = vmatpush1.bf16.msra.mxu0 0
  %1676 = vmatprep.subr.bf16.mxu0 0
  %1677 = vmatpush1.bf16.msra.mxu0 0
  %1678 = vmatprep.subr.bf16.mxu0 0
  %1679 = vmatpush1.bf16.msra.mxu0 0
  %1680 = vmatprep.subr.bf16.mxu0 0
  %1681 = vmatpush1.bf16.msra.mxu0 0
  %1682 = vmatprep.subr.bf16.mxu0 0
  %1683 = vmatpush1.bf16.msra.mxu0 0
  %1684 = vmatprep.subr.bf16.mxu0 0
  %1685 = vmatpush1.bf16.msra.mxu0 0
  %1686 = vmatprep.subr.bf16.mxu0 0
  %1687 = vmatpush1.bf16.msra.mxu0 0
  %1688 = vmatprep.subr.bf16.mxu0 0
  %1689 = vmatpush1.bf16.msra.mxu0 0
  %1690 = vmatprep.subr.bf16.mxu0 0
  %1691 = vmatpush1.bf16.msra.mxu0 0
  %1692 = vmatprep.mubr.bf16.mxu0 0
  %1693 = vmatmul.mubr.bf16.gmra.mrb[0].mxu0 %v234
  %v1694 = vpop.f32.mrb[0].mxu0
  %v1695 = vadd.f32 0.0, %v1694
  %v1696 = vpop.f32.mrb[0].mxu0
  %v1697 = vadd.f32 0.0, %v1696
  %v1698 = vpop.f32.mrb[0].mxu0
  %v1699 = vadd.f32 0.0, %v1698
  %v1700 = vpop.f32.mrb[0].mxu0
  %v1701 = vadd.f32 0.0, %v1700
  %1702 = vmatprep.mubr.bf16.mxu0 0
  %1703 = vmatmul.mubr.bf16.gmra.mrb[0].mxu0 %v237
  %v1704 = vpop.f32.mrb[0].mxu0
  %v1705 = vadd.f32 0.0, %v1704
  %v1706 = vpop.f32.mrb[0].mxu0
  %v1707 = vadd.f32 0.0, %v1706
  %v1708 = vpop.f32.mrb[0].mxu0
  %v1709 = vadd.f32 0.0, %v1708
  %v1710 = vpop.f32.mrb[0].mxu0
  %v1711 = vadd.f32 0.0, %v1710
  %1712 = vmatprep.mubr.bf16.mxu0 0
  %1713 = vmatmul.mubr.bf16.gmra.mrb[0].mxu0 %v240
  %v1714 = vpop.f32.mrb[0].mxu0
  %v1715 = vadd.f32 0.0, %v1714
  %v1716 = vpop.f32.mrb[0].mxu0
  %v1717 = vadd.f32 0.0, %v1716
  %v1718 = vpop.f32.mrb[0].mxu0
  %v1719 = vadd.f32 0.0, %v1718
  %v1720 = vpop.f32.mrb[0].mxu0
  %v1721 = vadd.f32 0.0, %v1720
  %1722 = vmatprep.mubr.bf16.mxu0 0
  %1723 = vmatmul.mubr.bf16.gmra.mrb[0].mxu0 %v243
  %v1724 = vpop.f32.mrb[0].mxu0
  %v1725 = vadd.f32 0.0, %v1724
  %v1726 = vpop.f32.mrb[0].mxu0
  %v1727 = vadd.f32 0.0, %v1726
  %v1728 = vpop.f32.mrb[0].mxu0
  %v1729 = vadd.f32 0.0, %v1728
  %v1730 = vpop.f32.mrb[0].mxu0
  %v1731 = vadd.f32 0.0, %v1730
  %1732 = vmatprep.mubr.bf16.mxu0 0
  %1733 = vmatmul.mubr.bf16.gmra.mrb[0].mxu0 %v246
  %v1734 = vpop.f32.mrb[0].mxu0
  %v1735 = vadd.f32 0.0, %v1734
  %v1736 = vpop.f32.mrb[0].mxu0
  %v1737 = vadd.f32 0.0, %v1736
  %v1738 = vpop.f32.mrb[0].mxu0
  %v1739 = vadd.f32 0.0, %v1738
  %v1740 = vpop.f32.mrb[0].mxu0
  %v1741 = vadd.f32 0.0, %v1740
  %1742 = vmatprep.mubr.bf16.mxu0 0
  %1743 = vmatmul.mubr.bf16.gmra.mrb[0].mxu0 %v249
  %v1744 = vpop.f32.mrb[0].mxu0
  %v1745 = vadd.f32 0.0, %v1744
  %v1746 = vpop.f32.mrb[0].mxu0
  %v1747 = vadd.f32 0.0, %v1746
  %v1748 = vpop.f32.mrb[0].mxu0
  %v1749 = vadd.f32 0.0, %v1748
  %v1750 = vpop.f32.mrb[0].mxu0
  %v1751 = vadd.f32 0.0, %v1750
  %1752 = vmatprep.mubr.bf16.mxu0 0
  %1753 = vmatmul.mubr.bf16.gmra.mrb[0].mxu0 %v252
  %v1754 = vpop.f32.mrb[0].mxu0
  %v1755 = vadd.f32 0.0, %v1754
  %v1756 = vpop.f32.mrb[0].mxu0
  %v1757 = vadd.f32 0.0, %v1756
  %v1758 = vpop.f32.mrb[0].mxu0
  %v1759 = vadd.f32 0.0, %v1758
  %v1760 = vpop.f32.mrb[0].mxu0
  %v1761 = vadd.f32 0.0, %v1760
  %1762 = vmatprep.mubr.bf16.mxu0 0
  %1763 = vmatmul.mubr.bf16.gmra.mrb[0].mxu0 %v255
  %v1764 = vpop.f32.mrb[0].mxu0
  %v1765 = vadd.f32 0.0, %v1764
  %v1766 = vpop.f32.mrb[0].mxu0
  %v1767 = vadd.f32 0.0, %v1766
  %v1768 = vpop.f32.mrb[0].mxu0
  %v1769 = vadd.f32 0.0, %v1768
  %v1770 = vpop.f32.mrb[0].mxu0
  %v1771 = vadd.f32 0.0, %v1770
  %1772 = vmatprep.mubr.bf16.mxu0 0
  %1773 = vmatmul.mubr.bf16.gmra.mrb[0].mxu0 %v258
  %v1774 = vpop.f32.mrb[0].mxu0
  %v1775 = vadd.f32 0.0, %v1774
  %v1776 = vpop.f32.mrb[0].mxu0
  %v1777 = vadd.f32 0.0, %v1776
  %v1778 = vpop.f32.mrb[0].mxu0
  %v1779 = vadd.f32 0.0, %v1778
  %v1780 = vpop.f32.mrb[0].mxu0
  %v1781 = vadd.f32 0.0, %v1780
  %1782 = vmatprep.mubr.bf16.mxu0 0
  %1783 = vmatmul.mubr.bf16.gmra.mrb[0].mxu0 %v261
  %v1784 = vpop.f32.mrb[0].mxu0
  %v1785 = vadd.f32 0.0, %v1784
  %v1786 = vpop.f32.mrb[0].mxu0
  %v1787 = vadd.f32 0.0, %v1786
  %v1788 = vpop.f32.mrb[0].mxu0
  %v1789 = vadd.f32 0.0, %v1788
  %v1790 = vpop.f32.mrb[0].mxu0
  %v1791 = vadd.f32 0.0, %v1790
  %1792 = vmatprep.mubr.bf16.mxu0 0
  %1793 = vmatmul.mubr.bf16.gmra.mrb[0].mxu0 %v264
  %v1794 = vpop.f32.mrb[0].mxu0
  %v1795 = vadd.f32 0.0, %v1794
  %v1796 = vpop.f32.mrb[0].mxu0
  %v1797 = vadd.f32 0.0, %v1796
  %v1798 = vpop.f32.mrb[0].mxu0
  %v1799 = vadd.f32 0.0, %v1798
  %v1800 = vpop.f32.mrb[0].mxu0
  %v1801 = vadd.f32 0.0, %v1800
  %1802 = vmatprep.mubr.bf16.mxu0 0
  %1803 = vmatmul.mubr.bf16.gmra.mrb[0].mxu0 %v267
  %v1804 = vpop.f32.mrb[0].mxu0
  %v1805 = vadd.f32 0.0, %v1804
  %v1806 = vpop.f32.mrb[0].mxu0
  %v1807 = vadd.f32 0.0, %v1806
  %v1808 = vpop.f32.mrb[0].mxu0
  %v1809 = vadd.f32 0.0, %v1808
  %v1810 = vpop.f32.mrb[0].mxu0
  %v1811 = vadd.f32 0.0, %v1810
  %1812 = vmatprep.mubr.bf16.mxu0 0
  %1813 = vmatmul.mubr.bf16.gmra.mrb[0].mxu0 %v270
  %v1814 = vpop.f32.mrb[0].mxu0
  %v1815 = vadd.f32 0.0, %v1814
  %v1816 = vpop.f32.mrb[0].mxu0
  %v1817 = vadd.f32 0.0, %v1816
  %v1818 = vpop.f32.mrb[0].mxu0
  %v1819 = vadd.f32 0.0, %v1818
  %v1820 = vpop.f32.mrb[0].mxu0
  %v1821 = vadd.f32 0.0, %v1820
  %1822 = vmatprep.mubr.bf16.mxu0 0
  %1823 = vmatmul.mubr.bf16.gmra.mrb[0].mxu0 %v273
  %v1824 = vpop.f32.mrb[0].mxu0
  %v1825 = vadd.f32 0.0, %v1824
  %v1826 = vpop.f32.mrb[0].mxu0
  %v1827 = vadd.f32 0.0, %v1826
  %v1828 = vpop.f32.mrb[0].mxu0
  %v1829 = vadd.f32 0.0, %v1828
  %v1830 = vpop.f32.mrb[0].mxu0
  %v1831 = vadd.f32 0.0, %v1830
  %1832 = vmatprep.mubr.bf16.mxu0 0
  %1833 = vmatmul.mubr.bf16.gmra.mrb[0].mxu0 %v276
  %v1834 = vpop.f32.mrb[0].mxu0
  %v1835 = vadd.f32 0.0, %v1834
  %v1836 = vpop.f32.mrb[0].mxu0
  %v1837 = vadd.f32 0.0, %v1836
  %v1838 = vpop.f32.mrb[0].mxu0
  %v1839 = vadd.f32 0.0, %v1838
  %v1840 = vpop.f32.mrb[0].mxu0
  %v1841 = vadd.f32 0.0, %v1840
  %1842 = vmatprep.mubr.bf16.mxu0 0
  %1843 = vmatmul.mubr.bf16.gmra.mrb[0].mxu0 %v279
  %v1844 = vpop.f32.mrb[0].mxu0
  %v1845 = vadd.f32 0.0, %v1844
  %v1846 = vpop.f32.mrb[0].mxu0
  %v1847 = vadd.f32 0.0, %v1846
  %v1848 = vpop.f32.mrb[0].mxu0
  %v1849 = vadd.f32 0.0, %v1848
  %v1850 = vpop.f32.mrb[0].mxu0
  %v1851 = vadd.f32 0.0, %v1850
  %1852 = vdwg.mxu0
  %v1853 = vrot.slane %v1695, 7
  %v1854 = vrot.slane %v1697, 7
  %v1855 = vrot.slane %v1699, 7
  %v1856 = vrot.slane %v1701, 7
  %v1857 = vrot.slane %v1705, 7
  %v1858 = vrot.slane %v1707, 7
  %v1859 = vrot.slane %v1709, 7
  %v1860 = vrot.slane %v1711, 7
  %v1861 = vrot.slane %v1715, 7
  %v1862 = vrot.slane %v1717, 7
  %v1863 = vrot.slane %v1719, 7
  %v1864 = vrot.slane %v1721, 7
  %v1865 = vrot.slane %v1725, 7
  %v1866 = vrot.slane %v1727, 7
  %v1867 = vrot.slane %v1729, 7
  %v1868 = vrot.slane %v1731, 7
  %v1869 = vrot.slane %v1735, 7
  %v1870 = vrot.slane %v1737, 7
  %v1871 = vrot.slane %v1739, 7
  %v1872 = vrot.slane %v1741, 7
  %v1873 = vrot.slane %v1745, 7
  %v1874 = vrot.slane %v1747, 7
  %v1875 = vrot.slane %v1749, 7
  %v1876 = vrot.slane %v1751, 7
  %v1877 = vrot.slane %v1755, 7
  %v1878 = vrot.slane %v1757, 7
  %v1879 = vrot.slane %v1759, 7
  %v1880 = vrot.slane %v1761, 7
  %v1881 = vrot.slane %v1765, 7
  %v1882 = vrot.slane %v1767, 7
  %v1883 = vrot.slane %v1769, 7
  %v1884 = vrot.slane %v1771, 7
  %v1885 = vrot.slane %v1775, 7
  %v1886 = vrot.slane %v1777, 7
  %v1887 = vrot.slane %v1779, 7
  %v1888 = vrot.slane %v1781, 7
  %v1889 = vrot.slane %v1785, 7
  %v1890 = vrot.slane %v1787, 7
  %v1891 = vrot.slane %v1789, 7
  %v1892 = vrot.slane %v1791, 7
  %v1893 = vrot.slane %v1795, 7
  %v1894 = vrot.slane %v1797, 7
  %v1895 = vrot.slane %v1799, 7
  %v1896 = vrot.slane %v1801, 7
  %v1897 = vrot.slane %v1805, 7
  %v1898 = vrot.slane %v1807, 7
  %v1899 = vrot.slane %v1809, 7
  %v1900 = vrot.slane %v1811, 7
  %v1901 = vrot.slane %v1815, 7
  %v1902 = vrot.slane %v1817, 7
  %v1903 = vrot.slane %v1819, 7
  %v1904 = vrot.slane %v1821, 7
  %v1905 = vrot.slane %v1825, 7
  %v1906 = vrot.slane %v1827, 7
  %v1907 = vrot.slane %v1829, 7
  %v1908 = vrot.slane %v1831, 7
  %v1909 = vrot.slane %v1835, 7
  %v1910 = vrot.slane %v1837, 7
  %v1911 = vrot.slane %v1839, 7
  %v1912 = vrot.slane %v1841, 7
  %v1913 = vrot.slane %v1845, 7
  %v1914 = vrot.slane %v1847, 7
  %v1915 = vrot.slane %v1849, 7
  %v1916 = vrot.slane %v1851, 7
  %vm1917 = vcmp.lt.s32.totalorder %v539, 1
  %v1918 = vsel %vm1917, %v1913, %v1915
  %v1919 = vsel %vm1917, %v1914, %v1916
  %v1920 = vsel %vm1917, %v1911, %v1913
  %v1921 = vsel %vm1917, %v1912, %v1914
  %v1922 = vsel %vm1917, %v1909, %v1911
  %v1923 = vsel %vm1917, %v1910, %v1912
  %v1924 = vsel %vm1917, %v1907, %v1909
  %v1925 = vsel %vm1917, %v1908, %v1910
  %v1926 = vsel %vm1917, %v1905, %v1907
  %v1927 = vsel %vm1917, %v1906, %v1908
  %v1928 = vsel %vm1917, %v1903, %v1905
  %v1929 = vsel %vm1917, %v1904, %v1906
  %v1930 = vsel %vm1917, %v1901, %v1903
  %v1931 = vsel %vm1917, %v1902, %v1904
  %v1932 = vsel %vm1917, %v1899, %v1901
  %v1933 = vsel %vm1917, %v1900, %v1902
  %v1934 = vsel %vm1917, %v1897, %v1899
  %v1935 = vsel %vm1917, %v1898, %v1900
  %v1936 = vsel %vm1917, %v1895, %v1897
  %v1937 = vsel %vm1917, %v1896, %v1898
  %v1938 = vsel %vm1917, %v1893, %v1895
  %v1939 = vsel %vm1917, %v1894, %v1896
  %v1940 = vsel %vm1917, %v1891, %v1893
  %v1941 = vsel %vm1917, %v1892, %v1894
  %v1942 = vsel %vm1917, %v1889, %v1891
  %v1943 = vsel %vm1917, %v1890, %v1892
  %v1944 = vsel %vm1917, %v1887, %v1889
  %v1945 = vsel %vm1917, %v1888, %v1890
  %v1946 = vsel %vm1917, %v1885, %v1887
  %v1947 = vsel %vm1917, %v1886, %v1888
  %v1948 = vsel %vm1917, %v1883, %v1885
  %v1949 = vsel %vm1917, %v1884, %v1886
  %v1950 = vsel %vm1917, %v1881, %v1883
  %v1951 = vsel %vm1917, %v1882, %v1884
  %v1952 = vsel %vm1917, %v1879, %v1881
  %v1953 = vsel %vm1917, %v1880, %v1882
  %v1954 = vsel %vm1917, %v1877, %v1879
  %v1955 = vsel %vm1917, %v1878, %v1880
  %v1956 = vsel %vm1917, %v1875, %v1877
  %v1957 = vsel %vm1917, %v1876, %v1878
  %v1958 = vsel %vm1917, %v1873, %v1875
  %v1959 = vsel %vm1917, %v1874, %v1876
  %v1960 = vsel %vm1917, %v1871, %v1873
  %v1961 = vsel %vm1917, %v1872, %v1874
  %v1962 = vsel %vm1917, %v1869, %v1871
  %v1963 = vsel %vm1917, %v1870, %v1872
  %v1964 = vsel %vm1917, %v1867, %v1869
  %v1965 = vsel %vm1917, %v1868, %v1870
  %v1966 = vsel %vm1917, %v1865, %v1867
  %v1967 = vsel %vm1917, %v1866, %v1868
  %v1968 = vsel %vm1917, %v1863, %v1865
  %v1969 = vsel %vm1917, %v1864, %v1866
  %v1970 = vsel %vm1917, %v1861, %v1863
  %v1971 = vsel %vm1917, %v1862, %v1864
  %v1972 = vsel %vm1917, %v1859, %v1861
  %v1973 = vsel %vm1917, %v1860, %v1862
  %v1974 = vsel %vm1917, %v1857, %v1859
  %v1975 = vsel %vm1917, %v1858, %v1860
  %v1976 = vsel %vm1917, %v1855, %v1857
  %v1977 = vsel %vm1917, %v1856, %v1858
  %v1978 = vsel %vm1917, %v1853, %v1855
  %v1979 = vsel %vm1917, %v1854, %v1856
  %v1980 = vsel %vm1917, %v1915, %v1853
  %v1981 = vsel %vm1917, %v1916, %v1854
  %v1982 = vadd.f32 %v1523, %v1980
  %v1983 = vadd.f32 %v1524, %v1981
  %v1984 = vadd.f32 %v1525, %v1978
  %v1985 = vadd.f32 %v1526, %v1979
  %v1986 = vadd.f32 %v1527, %v1976
  %v1987 = vadd.f32 %v1528, %v1977
  %v1988 = vadd.f32 %v1529, %v1974
  %v1989 = vadd.f32 %v1530, %v1975
  %v1990 = vadd.f32 %v1531, %v1972
  %v1991 = vadd.f32 %v1532, %v1973
  %v1992 = vadd.f32 %v1533, %v1970
  %v1993 = vadd.f32 %v1534, %v1971
  %v1994 = vadd.f32 %v1535, %v1968
  %v1995 = vadd.f32 %v1536, %v1969
  %v1996 = vadd.f32 %v1537, %v1966
  %v1997 = vadd.f32 %v1538, %v1967
  %v1998 = vadd.f32 %v1539, %v1964
  %v1999 = vadd.f32 %v1540, %v1965
  %v2000 = vadd.f32 %v1541, %v1962
  %v2001 = vadd.f32 %v1542, %v1963
  %v2002 = vadd.f32 %v1543, %v1960
  %v2003 = vadd.f32 %v1544, %v1961
  %v2004 = vadd.f32 %v1545, %v1958
  %v2005 = vadd.f32 %v1546, %v1959
  %v2006 = vadd.f32 %v1547, %v1956
  %v2007 = vadd.f32 %v1548, %v1957
  %v2008 = vadd.f32 %v1549, %v1954
  %v2009 = vadd.f32 %v1550, %v1955
  %v2010 = vadd.f32 %v1551, %v1952
  %v2011 = vadd.f32 %v1552, %v1953
  %v2012 = vadd.f32 %v1553, %v1950
  %v2013 = vadd.f32 %v1554, %v1951
  %v2014 = vadd.f32 %v1555, %v1948
  %v2015 = vadd.f32 %v1556, %v1949
  %v2016 = vadd.f32 %v1557, %v1946
  %v2017 = vadd.f32 %v1558, %v1947
  %v2018 = vadd.f32 %v1559, %v1944
  %v2019 = vadd.f32 %v1560, %v1945
  %v2020 = vadd.f32 %v1561, %v1942
  %v2021 = vadd.f32 %v1562, %v1943
  %v2022 = vadd.f32 %v1563, %v1940
  %v2023 = vadd.f32 %v1564, %v1941
  %v2024 = vadd.f32 %v1565, %v1938
  %v2025 = vadd.f32 %v1566, %v1939
  %v2026 = vadd.f32 %v1567, %v1936
  %v2027 = vadd.f32 %v1568, %v1937
  %v2028 = vadd.f32 %v1569, %v1934
  %v2029 = vadd.f32 %v1570, %v1935
  %v2030 = vadd.f32 %v1571, %v1932
  %v2031 = vadd.f32 %v1572, %v1933
  %v2032 = vadd.f32 %v1573, %v1930
  %v2033 = vadd.f32 %v1574, %v1931
  %v2034 = vadd.f32 %v1575, %v1928
  %v2035 = vadd.f32 %v1576, %v1929
  %v2036 = vadd.f32 %v1577, %v1926
  %v2037 = vadd.f32 %v1578, %v1927
  %v2038 = vadd.f32 %v1579, %v1924
  %v2039 = vadd.f32 %v1580, %v1925
  %v2040 = vadd.f32 %v1581, %v1922
  %v2041 = vadd.f32 %v1582, %v1923
  %v2042 = vadd.f32 %v1583, %v1920
  %v2043 = vadd.f32 %v1584, %v1921
  %v2044 = vadd.f32 %v1585, %v1918
  %v2045 = vadd.f32 %v1586, %v1919
  %s2046 = scalar_lea.vmem %s1, 384
  %v2047 = vld [vmem:[%s2046] sm:$0xff]
  %v2048 = vld [vmem:[%s2046 + $0x8] sm:$0xff]
  %v2049 = vld [vmem:[%s2046 + $0x10] sm:$0xff]
  %v2050 = vld [vmem:[%s2046 + $0x18] sm:$0xff]
  %v2051 = vld [vmem:[%s2046 + $0x20] sm:$0xff]
  %v2052 = vld [vmem:[%s2046 + $0x28] sm:$0xff]
  %v2053 = vld [vmem:[%s2046 + $0x30] sm:$0xff]
  %v2054 = vld [vmem:[%s2046 + $0x38] sm:$0xff]
  %v2055 = vld [vmem:[%s2046 + $0x40] sm:$0xff]
  %v2056 = vld [vmem:[%s2046 + $0x48] sm:$0xff]
  %v2057 = vld [vmem:[%s2046 + $0x50] sm:$0xff]
  %v2058 = vld [vmem:[%s2046 + $0x58] sm:$0xff]
  %v2071 = vunpack.c.l.b16 %v2047
  %v2072 = vunpack.c.h.b16 %v2047
  %v2073 = vunpack.c.l.b16 %v2048
  %v2074 = vunpack.c.h.b16 %v2048
  %v2075 = vunpack.c.l.b16 %v2049
  %v2076 = vunpack.c.h.b16 %v2049
  %v2077 = vunpack.c.l.b16 %v2050
  %v2078 = vunpack.c.h.b16 %v2050
  %v2079 = vunpack.c.l.b16 %v2051
  %v2080 = vunpack.c.h.b16 %v2051
  %v2081 = vunpack.c.l.b16 %v2052
  %v2082 = vunpack.c.h.b16 %v2052
  %v2083 = vunpack.c.l.b16 %v2053
  %v2084 = vunpack.c.h.b16 %v2053
  %v2085 = vunpack.c.l.b16 %v2054
  %v2086 = vunpack.c.h.b16 %v2054
  %v2087 = vunpack.c.l.b16 %v2055
  %v2088 = vunpack.c.h.b16 %v2055
  %v2089 = vunpack.c.l.b16 %v2056
  %v2090 = vunpack.c.h.b16 %v2056
  %v2091 = vunpack.c.l.b16 %v2057
  %v2092 = vunpack.c.h.b16 %v2057
  %v2093 = vunpack.c.l.b16 %v2058
  %v2094 = vunpack.c.h.b16 %v2058
  %v2095 = vpack.c.b16 %v2073, %v2071
  %v2096 = vpack.c.b16 %v2074, %v2072
  %v2097 = vpack.c.b16 %v2077, %v2075
  %v2098 = vpack.c.b16 %v2078, %v2076
  %v2099 = vpack.c.b16 %v2081, %v2079
  %v2100 = vpack.c.b16 %v2082, %v2080
  %v2101 = vpack.c.b16 %v2085, %v2083
  %v2102 = vpack.c.b16 %v2086, %v2084
  %v2103 = vpack.c.b16 %v2089, %v2087
  %v2104 = vpack.c.b16 %v2090, %v2088
  %v2105 = vpack.c.b16 %v2093, %v2091
  %v2106 = vpack.c.b16 %v2094, %v2092
  %2119 = vmatprep.subr.bf16.mxu0 %v2096
  %2120 = vmatpush1.bf16.msra.mxu0 %v2095
  %2121 = vmatprep.subr.bf16.mxu0 %v2098
  %2122 = vmatpush1.bf16.msra.mxu0 %v2097
  %2123 = vmatprep.subr.bf16.mxu0 %v2100
  %2124 = vmatpush1.bf16.msra.mxu0 %v2099
  %2125 = vmatprep.subr.bf16.mxu0 %v2102
  %2126 = vmatpush1.bf16.msra.mxu0 %v2101
  %2127 = vmatprep.subr.bf16.mxu0 %v2104
  %2128 = vmatpush1.bf16.msra.mxu0 %v2103
  %2129 = vmatprep.subr.bf16.mxu0 %v2106
  %2130 = vmatpush1.bf16.msra.mxu0 %v2105
  %2131 = vmatprep.subr.bf16.mxu0 0
  %2132 = vmatpush1.bf16.msra.mxu0 0
  %2133 = vmatprep.subr.bf16.mxu0 0
  %2134 = vmatpush1.bf16.msra.mxu0 0
  %2135 = vmatprep.subr.bf16.mxu0 0
  %2136 = vmatpush1.bf16.msra.mxu0 0
  %2137 = vmatprep.subr.bf16.mxu0 0
  %2138 = vmatpush1.bf16.msra.mxu0 0
  %2139 = vmatprep.subr.bf16.mxu0 0
  %2140 = vmatpush1.bf16.msra.mxu0 0
  %2141 = vmatprep.subr.bf16.mxu0 0
  %2142 = vmatpush1.bf16.msra.mxu0 0
  %2143 = vmatprep.subr.bf16.mxu0 0
  %2144 = vmatpush1.bf16.msra.mxu0 0
  %2145 = vmatprep.subr.bf16.mxu0 0
  %2146 = vmatpush1.bf16.msra.mxu0 0
  %2147 = vmatprep.subr.bf16.mxu0 0
  %2148 = vmatpush1.bf16.msra.mxu0 0
  %2149 = vmatprep.subr.bf16.mxu0 0
  %2150 = vmatpush1.bf16.msra.mxu0 0
  %2151 = vmatprep.mubr.bf16.mxu0 0
  %2152 = vmatmul.mubr.bf16.gmra.mrb[0].mxu0 %v234
  %v2153 = vpop.f32.mrb[0].mxu0
  %v2154 = vadd.f32 0.0, %v2153
  %v2155 = vpop.f32.mrb[0].mxu0
  %v2156 = vadd.f32 0.0, %v2155
  %v2157 = vpop.f32.mrb[0].mxu0
  %v2158 = vadd.f32 0.0, %v2157
  %v2159 = vpop.f32.mrb[0].mxu0
  %v2160 = vadd.f32 0.0, %v2159
  %2161 = vmatprep.mubr.bf16.mxu0 0
  %2162 = vmatmul.mubr.bf16.gmra.mrb[0].mxu0 %v237
  %v2163 = vpop.f32.mrb[0].mxu0
  %v2164 = vadd.f32 0.0, %v2163
  %v2165 = vpop.f32.mrb[0].mxu0
  %v2166 = vadd.f32 0.0, %v2165
  %v2167 = vpop.f32.mrb[0].mxu0
  %v2168 = vadd.f32 0.0, %v2167
  %v2169 = vpop.f32.mrb[0].mxu0
  %v2170 = vadd.f32 0.0, %v2169
  %2171 = vmatprep.mubr.bf16.mxu0 0
  %2172 = vmatmul.mubr.bf16.gmra.mrb[0].mxu0 %v240
  %v2173 = vpop.f32.mrb[0].mxu0
  %v2174 = vadd.f32 0.0, %v2173
  %v2175 = vpop.f32.mrb[0].mxu0
  %v2176 = vadd.f32 0.0, %v2175
  %v2177 = vpop.f32.mrb[0].mxu0
  %v2178 = vadd.f32 0.0, %v2177
  %v2179 = vpop.f32.mrb[0].mxu0
  %v2180 = vadd.f32 0.0, %v2179
  %2181 = vmatprep.mubr.bf16.mxu0 0
  %2182 = vmatmul.mubr.bf16.gmra.mrb[0].mxu0 %v243
  %v2183 = vpop.f32.mrb[0].mxu0
  %v2184 = vadd.f32 0.0, %v2183
  %v2185 = vpop.f32.mrb[0].mxu0
  %v2186 = vadd.f32 0.0, %v2185
  %v2187 = vpop.f32.mrb[0].mxu0
  %v2188 = vadd.f32 0.0, %v2187
  %v2189 = vpop.f32.mrb[0].mxu0
  %v2190 = vadd.f32 0.0, %v2189
  %2191 = vmatprep.mubr.bf16.mxu0 0
  %2192 = vmatmul.mubr.bf16.gmra.mrb[0].mxu0 %v246
  %v2193 = vpop.f32.mrb[0].mxu0
  %v2194 = vadd.f32 0.0, %v2193
  %v2195 = vpop.f32.mrb[0].mxu0
  %v2196 = vadd.f32 0.0, %v2195
  %v2197 = vpop.f32.mrb[0].mxu0
  %v2198 = vadd.f32 0.0, %v2197
  %v2199 = vpop.f32.mrb[0].mxu0
  %v2200 = vadd.f32 0.0, %v2199
  %2201 = vmatprep.mubr.bf16.mxu0 0
  %2202 = vmatmul.mubr.bf16.gmra.mrb[0].mxu0 %v249
  %v2203 = vpop.f32.mrb[0].mxu0
  %v2204 = vadd.f32 0.0, %v2203
  %v2205 = vpop.f32.mrb[0].mxu0
  %v2206 = vadd.f32 0.0, %v2205
  %v2207 = vpop.f32.mrb[0].mxu0
  %v2208 = vadd.f32 0.0, %v2207
  %v2209 = vpop.f32.mrb[0].mxu0
  %v2210 = vadd.f32 0.0, %v2209
  %2211 = vmatprep.mubr.bf16.mxu0 0
  %2212 = vmatmul.mubr.bf16.gmra.mrb[0].mxu0 %v252
  %v2213 = vpop.f32.mrb[0].mxu0
  %v2214 = vadd.f32 0.0, %v2213
  %v2215 = vpop.f32.mrb[0].mxu0
  %v2216 = vadd.f32 0.0, %v2215
  %v2217 = vpop.f32.mrb[0].mxu0
  %v2218 = vadd.f32 0.0, %v2217
  %v2219 = vpop.f32.mrb[0].mxu0
  %v2220 = vadd.f32 0.0, %v2219
  %2221 = vmatprep.mubr.bf16.mxu0 0
  %2222 = vmatmul.mubr.bf16.gmra.mrb[0].mxu0 %v255
  %v2223 = vpop.f32.mrb[0].mxu0
  %v2224 = vadd.f32 0.0, %v2223
  %v2225 = vpop.f32.mrb[0].mxu0
  %v2226 = vadd.f32 0.0, %v2225
  %v2227 = vpop.f32.mrb[0].mxu0
  %v2228 = vadd.f32 0.0, %v2227
  %v2229 = vpop.f32.mrb[0].mxu0
  %v2230 = vadd.f32 0.0, %v2229
  %2231 = vmatprep.mubr.bf16.mxu0 0
  %2232 = vmatmul.mubr.bf16.gmra.mrb[0].mxu0 %v258
  %v2233 = vpop.f32.mrb[0].mxu0
  %v2234 = vadd.f32 0.0, %v2233
  %v2235 = vpop.f32.mrb[0].mxu0
  %v2236 = vadd.f32 0.0, %v2235
  %v2237 = vpop.f32.mrb[0].mxu0
  %v2238 = vadd.f32 0.0, %v2237
  %v2239 = vpop.f32.mrb[0].mxu0
  %v2240 = vadd.f32 0.0, %v2239
  %2241 = vmatprep.mubr.bf16.mxu0 0
  %2242 = vmatmul.mubr.bf16.gmra.mrb[0].mxu0 %v261
  %v2243 = vpop.f32.mrb[0].mxu0
  %v2244 = vadd.f32 0.0, %v2243
  %v2245 = vpop.f32.mrb[0].mxu0
  %v2246 = vadd.f32 0.0, %v2245
  %v2247 = vpop.f32.mrb[0].mxu0
  %v2248 = vadd.f32 0.0, %v2247
  %v2249 = vpop.f32.mrb[0].mxu0
  %v2250 = vadd.f32 0.0, %v2249
  %2251 = vmatprep.mubr.bf16.mxu0 0
  %2252 = vmatmul.mubr.bf16.gmra.mrb[0].mxu0 %v264
  %v2253 = vpop.f32.mrb[0].mxu0
  %v2254 = vadd.f32 0.0, %v2253
  %v2255 = vpop.f32.mrb[0].mxu0
  %v2256 = vadd.f32 0.0, %v2255
  %v2257 = vpop.f32.mrb[0].mxu0
  %v2258 = vadd.f32 0.0, %v2257
  %v2259 = vpop.f32.mrb[0].mxu0
  %v2260 = vadd.f32 0.0, %v2259
  %2261 = vmatprep.mubr.bf16.mxu0 0
  %2262 = vmatmul.mubr.bf16.gmra.mrb[0].mxu0 %v267
  %v2263 = vpop.f32.mrb[0].mxu0
  %v2264 = vadd.f32 0.0, %v2263
  %v2265 = vpop.f32.mrb[0].mxu0
  %v2266 = vadd.f32 0.0, %v2265
  %v2267 = vpop.f32.mrb[0].mxu0
  %v2268 = vadd.f32 0.0, %v2267
  %v2269 = vpop.f32.mrb[0].mxu0
  %v2270 = vadd.f32 0.0, %v2269
  %2271 = vmatprep.mubr.bf16.mxu0 0
  %2272 = vmatmul.mubr.bf16.gmra.mrb[0].mxu0 %v270
  %v2273 = vpop.f32.mrb[0].mxu0
  %v2274 = vadd.f32 0.0, %v2273
  %v2275 = vpop.f32.mrb[0].mxu0
  %v2276 = vadd.f32 0.0, %v2275
  %v2277 = vpop.f32.mrb[0].mxu0
  %v2278 = vadd.f32 0.0, %v2277
  %v2279 = vpop.f32.mrb[0].mxu0
  %v2280 = vadd.f32 0.0, %v2279
  %2281 = vmatprep.mubr.bf16.mxu0 0
  %2282 = vmatmul.mubr.bf16.gmra.mrb[0].mxu0 %v273
  %v2283 = vpop.f32.mrb[0].mxu0
  %v2284 = vadd.f32 0.0, %v2283
  %v2285 = vpop.f32.mrb[0].mxu0
  %v2286 = vadd.f32 0.0, %v2285
  %v2287 = vpop.f32.mrb[0].mxu0
  %v2288 = vadd.f32 0.0, %v2287
  %v2289 = vpop.f32.mrb[0].mxu0
  %v2290 = vadd.f32 0.0, %v2289
  %2291 = vmatprep.mubr.bf16.mxu0 0
  %2292 = vmatmul.mubr.bf16.gmra.mrb[0].mxu0 %v276
  %v2293 = vpop.f32.mrb[0].mxu0
  %v2294 = vadd.f32 0.0, %v2293
  %v2295 = vpop.f32.mrb[0].mxu0
  %v2296 = vadd.f32 0.0, %v2295
  %v2297 = vpop.f32.mrb[0].mxu0
  %v2298 = vadd.f32 0.0, %v2297
  %v2299 = vpop.f32.mrb[0].mxu0
  %v2300 = vadd.f32 0.0, %v2299
  %2301 = vmatprep.mubr.bf16.mxu0 0
  %2302 = vmatmul.mubr.bf16.gmra.mrb[0].mxu0 %v279
  %v2303 = vpop.f32.mrb[0].mxu0
  %v2304 = vadd.f32 0.0, %v2303
  %v2305 = vpop.f32.mrb[0].mxu0
  %v2306 = vadd.f32 0.0, %v2305
  %v2307 = vpop.f32.mrb[0].mxu0
  %v2308 = vadd.f32 0.0, %v2307
  %v2309 = vpop.f32.mrb[0].mxu0
  %v2310 = vadd.f32 0.0, %v2309
  %2311 = vdwg.mxu0
  %v2312 = vadd.f32 %v1982, %v2154
  %v2313 = vadd.f32 %v1983, %v2156
  %v2314 = vadd.f32 %v1984, %v2158
  %v2315 = vadd.f32 %v1985, %v2160
  %v2316 = vadd.f32 %v1986, %v2164
  %v2317 = vadd.f32 %v1987, %v2166
  %v2318 = vadd.f32 %v1988, %v2168
  %v2319 = vadd.f32 %v1989, %v2170
  %v2320 = vadd.f32 %v1990, %v2174
  %v2321 = vadd.f32 %v1991, %v2176
  %v2322 = vadd.f32 %v1992, %v2178
  %v2323 = vadd.f32 %v1993, %v2180
  %v2324 = vadd.f32 %v1994, %v2184
  %v2325 = vadd.f32 %v1995, %v2186
  %v2326 = vadd.f32 %v1996, %v2188
  %v2327 = vadd.f32 %v1997, %v2190
  %v2328 = vadd.f32 %v1998, %v2194
  %v2329 = vadd.f32 %v1999, %v2196
  %v2330 = vadd.f32 %v2000, %v2198
  %v2331 = vadd.f32 %v2001, %v2200
  %v2332 = vadd.f32 %v2002, %v2204
  %v2333 = vadd.f32 %v2003, %v2206
  %v2334 = vadd.f32 %v2004, %v2208
  %v2335 = vadd.f32 %v2005, %v2210
  %v2336 = vadd.f32 %v2006, %v2214
  %v2337 = vadd.f32 %v2007, %v2216
  %v2338 = vadd.f32 %v2008, %v2218
  %v2339 = vadd.f32 %v2009, %v2220
  %v2340 = vadd.f32 %v2010, %v2224
  %v2341 = vadd.f32 %v2011, %v2226
  %v2342 = vadd.f32 %v2012, %v2228
  %v2343 = vadd.f32 %v2013, %v2230
  %v2344 = vadd.f32 %v2014, %v2234
  %v2345 = vadd.f32 %v2015, %v2236
  %v2346 = vadd.f32 %v2016, %v2238
  %v2347 = vadd.f32 %v2017, %v2240
  %v2348 = vadd.f32 %v2018, %v2244
  %v2349 = vadd.f32 %v2019, %v2246
  %v2350 = vadd.f32 %v2020, %v2248
  %v2351 = vadd.f32 %v2021, %v2250
  %v2352 = vadd.f32 %v2022, %v2254
  %v2353 = vadd.f32 %v2023, %v2256
  %v2354 = vadd.f32 %v2024, %v2258
  %v2355 = vadd.f32 %v2025, %v2260
  %v2356 = vadd.f32 %v2026, %v2264
  %v2357 = vadd.f32 %v2027, %v2266
  %v2358 = vadd.f32 %v2028, %v2268
  %v2359 = vadd.f32 %v2029, %v2270
  %v2360 = vadd.f32 %v2030, %v2274
  %v2361 = vadd.f32 %v2031, %v2276
  %v2362 = vadd.f32 %v2032, %v2278
  %v2363 = vadd.f32 %v2033, %v2280
  %v2364 = vadd.f32 %v2034, %v2284
  %v2365 = vadd.f32 %v2035, %v2286
  %v2366 = vadd.f32 %v2036, %v2288
  %v2367 = vadd.f32 %v2037, %v2290
  %v2368 = vadd.f32 %v2038, %v2294
  %v2369 = vadd.f32 %v2039, %v2296
  %v2370 = vadd.f32 %v2040, %v2298
  %v2371 = vadd.f32 %v2041, %v2300
  %v2372 = vadd.f32 %v2042, %v2304
  %v2373 = vadd.f32 %v2043, %v2306
  %v2374 = vadd.f32 %v2044, %v2308
  %v2375 = vadd.f32 %v2045, %v2310
  %v2376 = vld [vmem:[%s2] sm:$0x3]
  %v2378 = vlaneseq
  %v2379 = vshrl.u32 %v2378, 7
  %v2380 = vsub.s32 0, %v2379
  %v2381 = vrot.slane %v2376, %v2380
  %v2382 = vlaneseq
  %v2383 = vshrl.u32 %v2382, 7
  %v2384 = vsub.s32 1, %v2383
  %v2385 = vrot.slane %v2376, %v2384
  %v2388 = vadd.f32 %v2312, %v2381
  %v2389 = vadd.f32 %v2313, %v2385
  %v2390 = vadd.f32 %v2314, %v2381
  %v2391 = vadd.f32 %v2315, %v2385
  %v2392 = vadd.f32 %v2316, %v2381
  %v2393 = vadd.f32 %v2317, %v2385
  %v2394 = vadd.f32 %v2318, %v2381
  %v2395 = vadd.f32 %v2319, %v2385
  %v2396 = vadd.f32 %v2320, %v2381
  %v2397 = vadd.f32 %v2321, %v2385
  %v2398 = vadd.f32 %v2322, %v2381
  %v2399 = vadd.f32 %v2323, %v2385
  %v2400 = vadd.f32 %v2324, %v2381
  %v2401 = vadd.f32 %v2325, %v2385
  %v2402 = vadd.f32 %v2326, %v2381
  %v2403 = vadd.f32 %v2327, %v2385
  %v2404 = vadd.f32 %v2328, %v2381
  %v2405 = vadd.f32 %v2329, %v2385
  %v2406 = vadd.f32 %v2330, %v2381
  %v2407 = vadd.f32 %v2331, %v2385
  %v2408 = vadd.f32 %v2332, %v2381
  %v2409 = vadd.f32 %v2333, %v2385
  %v2410 = vadd.f32 %v2334, %v2381
  %v2411 = vadd.f32 %v2335, %v2385
  %v2412 = vadd.f32 %v2336, %v2381
  %v2413 = vadd.f32 %v2337, %v2385
  %v2414 = vadd.f32 %v2338, %v2381
  %v2415 = vadd.f32 %v2339, %v2385
  %v2416 = vadd.f32 %v2340, %v2381
  %v2417 = vadd.f32 %v2341, %v2385
  %v2418 = vadd.f32 %v2342, %v2381
  %v2419 = vadd.f32 %v2343, %v2385
  %v2420 = vadd.f32 %v2344, %v2381
  %v2421 = vadd.f32 %v2345, %v2385
  %v2422 = vadd.f32 %v2346, %v2381
  %v2423 = vadd.f32 %v2347, %v2385
  %v2424 = vadd.f32 %v2348, %v2381
  %v2425 = vadd.f32 %v2349, %v2385
  %v2426 = vadd.f32 %v2350, %v2381
  %v2427 = vadd.f32 %v2351, %v2385
  %v2428 = vadd.f32 %v2352, %v2381
  %v2429 = vadd.f32 %v2353, %v2385
  %v2430 = vadd.f32 %v2354, %v2381
  %v2431 = vadd.f32 %v2355, %v2385
  %v2432 = vadd.f32 %v2356, %v2381
  %v2433 = vadd.f32 %v2357, %v2385
  %v2434 = vadd.f32 %v2358, %v2381
  %v2435 = vadd.f32 %v2359, %v2385
  %v2436 = vadd.f32 %v2360, %v2381
  %v2437 = vadd.f32 %v2361, %v2385
  %v2438 = vadd.f32 %v2362, %v2381
  %v2439 = vadd.f32 %v2363, %v2385
  %v2440 = vadd.f32 %v2364, %v2381
  %v2441 = vadd.f32 %v2365, %v2385
  %v2442 = vadd.f32 %v2366, %v2381
  %v2443 = vadd.f32 %v2367, %v2385
  %v2444 = vadd.f32 %v2368, %v2381
  %v2445 = vadd.f32 %v2369, %v2385
  %v2446 = vadd.f32 %v2370, %v2381
  %v2447 = vadd.f32 %v2371, %v2385
  %v2448 = vadd.f32 %v2372, %v2381
  %v2449 = vadd.f32 %v2373, %v2385
  %v2450 = vadd.f32 %v2374, %v2381
  %v2451 = vadd.f32 %v2375, %v2385
  %v2452 = vtanh.pop %v2388
  %v2453 = vtanh.pop %v2389
  %v2454 = vtanh.pop %v2390
  %v2455 = vtanh.pop %v2391
  %v2456 = vtanh.pop %v2392
  %v2457 = vtanh.pop %v2393
  %v2458 = vtanh.pop %v2394
  %v2459 = vtanh.pop %v2395
  %v2460 = vtanh.pop %v2396
  %v2461 = vtanh.pop %v2397
  %v2462 = vtanh.pop %v2398
  %v2463 = vtanh.pop %v2399
  %v2464 = vtanh.pop %v2400
  %v2465 = vtanh.pop %v2401
  %v2466 = vtanh.pop %v2402
  %v2467 = vtanh.pop %v2403
  %v2468 = vtanh.pop %v2404
  %v2469 = vtanh.pop %v2405
  %v2470 = vtanh.pop %v2406
  %v2471 = vtanh.pop %v2407
  %v2472 = vtanh.pop %v2408
  %v2473 = vtanh.pop %v2409
  %v2474 = vtanh.pop %v2410
  %v2475 = vtanh.pop %v2411
  %v2476 = vtanh.pop %v2412
  %v2477 = vtanh.pop %v2413
  %v2478 = vtanh.pop %v2414
  %v2479 = vtanh.pop %v2415
  %v2480 = vtanh.pop %v2416
  %v2481 = vtanh.pop %v2417
  %v2482 = vtanh.pop %v2418
  %v2483 = vtanh.pop %v2419
  %v2484 = vtanh.pop %v2420
  %v2485 = vtanh.pop %v2421
  %v2486 = vtanh.pop %v2422
  %v2487 = vtanh.pop %v2423
  %v2488 = vtanh.pop %v2424
  %v2489 = vtanh.pop %v2425
  %v2490 = vtanh.pop %v2426
  %v2491 = vtanh.pop %v2427
  %v2492 = vtanh.pop %v2428
  %v2493 = vtanh.pop %v2429
  %v2494 = vtanh.pop %v2430
  %v2495 = vtanh.pop %v2431
  %v2496 = vtanh.pop %v2432
  %v2497 = vtanh.pop %v2433
  %v2498 = vtanh.pop %v2434
  %v2499 = vtanh.pop %v2435
  %v2500 = vtanh.pop %v2436
  %v2501 = vtanh.pop %v2437
  %v2502 = vtanh.pop %v2438
  %v2503 = vtanh.pop %v2439
  %v2504 = vtanh.pop %v2440
  %v2505 = vtanh.pop %v2441
  %v2506 = vtanh.pop %v2442
  %v2507 = vtanh.pop %v2443
  %v2508 = vtanh.pop %v2444
  %v2509 = vtanh.pop %v2445
  %v2510 = vtanh.pop %v2446
  %v2511 = vtanh.pop %v2447
  %v2512 = vtanh.pop %v2448
  %v2513 = vtanh.pop %v2449
  %v2514 = vtanh.pop %v2450
  %v2515 = vtanh.pop %v2451
  %v2516 = vpack.c.bf16 %v2454, %v2452
  %v2517 = vpack.c.bf16 %v2455, %v2453
  %v2518 = vpack.c.bf16 %v2458, %v2456
  %v2519 = vpack.c.bf16 %v2459, %v2457
  %v2520 = vpack.c.bf16 %v2462, %v2460
  %v2521 = vpack.c.bf16 %v2463, %v2461
  %v2522 = vpack.c.bf16 %v2466, %v2464
  %v2523 = vpack.c.bf16 %v2467, %v2465
  %v2524 = vpack.c.bf16 %v2470, %v2468
  %v2525 = vpack.c.bf16 %v2471, %v2469
  %v2526 = vpack.c.bf16 %v2474, %v2472
  %v2527 = vpack.c.bf16 %v2475, %v2473
  %v2528 = vpack.c.bf16 %v2478, %v2476
  %v2529 = vpack.c.bf16 %v2479, %v2477
  %v2530 = vpack.c.bf16 %v2482, %v2480
  %v2531 = vpack.c.bf16 %v2483, %v2481
  %v2532 = vpack.c.bf16 %v2486, %v2484
  %v2533 = vpack.c.bf16 %v2487, %v2485
  %v2534 = vpack.c.bf16 %v2490, %v2488
  %v2535 = vpack.c.bf16 %v2491, %v2489
  %v2536 = vpack.c.bf16 %v2494, %v2492
  %v2537 = vpack.c.bf16 %v2495, %v2493
  %v2538 = vpack.c.bf16 %v2498, %v2496
  %v2539 = vpack.c.bf16 %v2499, %v2497
  %v2540 = vpack.c.bf16 %v2502, %v2500
  %v2541 = vpack.c.bf16 %v2503, %v2501
  %v2542 = vpack.c.bf16 %v2506, %v2504
  %v2543 = vpack.c.bf16 %v2507, %v2505
  %v2544 = vpack.c.bf16 %v2510, %v2508
  %v2545 = vpack.c.bf16 %v2511, %v2509
  %v2546 = vpack.c.bf16 %v2514, %v2512
  %v2547 = vpack.c.bf16 %v2515, %v2513
  %v2548 = vld [vmem:[%s3] sm:$0xff]
  %v2549 = vld [vmem:[%s3 + $0x8] sm:$0xff]
  %v2550 = vld [vmem:[%s3 + $0x10] sm:$0xff]
  %v2551 = vld [vmem:[%s3 + $0x18] sm:$0xff]
  %v2552 = vld [vmem:[%s3 + $0x20] sm:$0xff]
  %v2553 = vld [vmem:[%s3 + $0x28] sm:$0xff]
  %v2554 = vld [vmem:[%s3 + $0x30] sm:$0xff]
  %v2555 = vld [vmem:[%s3 + $0x38] sm:$0xff]
  %v2556 = vld [vmem:[%s3 + $0x40] sm:$0xff]
  %v2557 = vld [vmem:[%s3 + $0x48] sm:$0xff]
  %v2558 = vld [vmem:[%s3 + $0x50] sm:$0xff]
  %v2559 = vld [vmem:[%s3 + $0x58] sm:$0xff]
  %v2560 = vld [vmem:[%s3 + $0x60] sm:$0xff]
  %v2561 = vld [vmem:[%s3 + $0x68] sm:$0xff]
  %v2576 = vunpack.c.l.b16 %v2548
  %v2577 = vunpack.c.h.b16 %v2548
  %v2578 = vunpack.c.l.b16 %v2549
  %v2579 = vunpack.c.h.b16 %v2549
  %v2580 = vunpack.c.l.b16 %v2550
  %v2581 = vunpack.c.h.b16 %v2550
  %v2582 = vunpack.c.l.b16 %v2551
  %v2583 = vunpack.c.h.b16 %v2551
  %v2584 = vunpack.c.l.b16 %v2552
  %v2585 = vunpack.c.h.b16 %v2552
  %v2586 = vunpack.c.l.b16 %v2553
  %v2587 = vunpack.c.h.b16 %v2553
  %v2588 = vunpack.c.l.b16 %v2554
  %v2589 = vunpack.c.h.b16 %v2554
  %v2590 = vunpack.c.l.b16 %v2555
  %v2591 = vunpack.c.h.b16 %v2555
  %v2592 = vunpack.c.l.b16 %v2556
  %v2593 = vunpack.c.h.b16 %v2556
  %v2594 = vunpack.c.l.b16 %v2557
  %v2595 = vunpack.c.h.b16 %v2557
  %v2596 = vunpack.c.l.b16 %v2558
  %v2597 = vunpack.c.h.b16 %v2558
  %v2598 = vunpack.c.l.b16 %v2559
  %v2599 = vunpack.c.h.b16 %v2559
  %v2600 = vunpack.c.l.b16 %v2560
  %v2601 = vunpack.c.h.b16 %v2560
  %v2602 = vunpack.c.l.b16 %v2561
  %v2603 = vunpack.c.h.b16 %v2561
  %v2604 = vpack.c.b16 %v2578, %v2576
  %v2605 = vpack.c.b16 %v2579, %v2577
  %v2606 = vpack.c.b16 %v2582, %v2580
  %v2607 = vpack.c.b16 %v2583, %v2581
  %v2608 = vpack.c.b16 %v2586, %v2584
  %v2609 = vpack.c.b16 %v2587, %v2585
  %v2610 = vpack.c.b16 %v2590, %v2588
  %v2611 = vpack.c.b16 %v2591, %v2589
  %v2612 = vpack.c.b16 %v2594, %v2592
  %v2613 = vpack.c.b16 %v2595, %v2593
  %v2614 = vpack.c.b16 %v2598, %v2596
  %v2615 = vpack.c.b16 %v2599, %v2597
  %v2616 = vpack.c.b16 %v2602, %v2600
  %v2617 = vpack.c.b16 %v2603, %v2601
  %2632 = vmatprep.subr.bf16.mxu0 %v2517
  %2633 = vmatpush1.bf16.msra.mxu0 %v2516
  %2634 = vmatprep.subr.bf16.mxu0 %v2519
  %2635 = vmatpush1.bf16.msra.mxu0 %v2518
  %2636 = vmatprep.subr.bf16.mxu0 %v2521
  %2637 = vmatpush1.bf16.msra.mxu0 %v2520
  %2638 = vmatprep.subr.bf16.mxu0 %v2523
  %2639 = vmatpush1.bf16.msra.mxu0 %v2522
  %2640 = vmatprep.subr.bf16.mxu0 %v2525
  %2641 = vmatpush1.bf16.msra.mxu0 %v2524
  %2642 = vmatprep.subr.bf16.mxu0 %v2527
  %2643 = vmatpush1.bf16.msra.mxu0 %v2526
  %2644 = vmatprep.subr.bf16.mxu0 %v2529
  %2645 = vmatpush1.bf16.msra.mxu0 %v2528
  %2646 = vmatprep.subr.bf16.mxu0 %v2531
  %2647 = vmatpush1.bf16.msra.mxu0 %v2530
  %2648 = vmatprep.subr.bf16.mxu0 %v2533
  %2649 = vmatpush1.bf16.msra.mxu0 %v2532
  %2650 = vmatprep.subr.bf16.mxu0 %v2535
  %2651 = vmatpush1.bf16.msra.mxu0 %v2534
  %2652 = vmatprep.subr.bf16.mxu0 %v2537
  %2653 = vmatpush1.bf16.msra.mxu0 %v2536
  %2654 = vmatprep.subr.bf16.mxu0 %v2539
  %2655 = vmatpush1.bf16.msra.mxu0 %v2538
  %2656 = vmatprep.subr.bf16.mxu0 %v2541
  %2657 = vmatpush1.bf16.msra.mxu0 %v2540
  %2658 = vmatprep.subr.bf16.mxu0 %v2543
  %2659 = vmatpush1.bf16.msra.mxu0 %v2542
  %2660 = vmatprep.subr.bf16.mxu0 %v2545
  %2661 = vmatpush1.bf16.msra.mxu0 %v2544
  %2662 = vmatprep.subr.bf16.mxu0 %v2547
  %2663 = vmatpush1.bf16.msra.mxu0 %v2546
  %2664 = vmatprep.mubr.bf16.mxu0 %v2605
  %2665 = vmatmul.mubr.bf16.gmra.mrb[0].mxu0 %v2604
  %v2666 = vpop.f32.mrb[0].mxu0
  %v2667 = vadd.f32 0.0, %v2666
  %v2668 = vpop.f32.mrb[0].mxu0
  %v2669 = vadd.f32 0.0, %v2668
  %v2670 = vpop.f32.mrb[0].mxu0
  %v2671 = vadd.f32 0.0, %v2670
  %v2672 = vpop.f32.mrb[0].mxu0
  %v2673 = vadd.f32 0.0, %v2672
  %2674 = vmatprep.mubr.bf16.mxu0 %v2607
  %2675 = vmatmul.mubr.bf16.gmra.mrb[0].mxu0 %v2606
  %v2676 = vpop.f32.mrb[0].mxu0
  %v2677 = vadd.f32 0.0, %v2676
  %v2678 = vpop.f32.mrb[0].mxu0
  %v2679 = vadd.f32 0.0, %v2678
  %v2680 = vpop.f32.mrb[0].mxu0
  %v2681 = vadd.f32 0.0, %v2680
  %v2682 = vpop.f32.mrb[0].mxu0
  %v2683 = vadd.f32 0.0, %v2682
  %2684 = vmatprep.mubr.bf16.mxu0 %v2609
  %2685 = vmatmul.mubr.bf16.gmra.mrb[0].mxu0 %v2608
  %v2686 = vpop.f32.mrb[0].mxu0
  %v2687 = vadd.f32 0.0, %v2686
  %v2688 = vpop.f32.mrb[0].mxu0
  %v2689 = vadd.f32 0.0, %v2688
  %v2690 = vpop.f32.mrb[0].mxu0
  %v2691 = vadd.f32 0.0, %v2690
  %v2692 = vpop.f32.mrb[0].mxu0
  %v2693 = vadd.f32 0.0, %v2692
  %2694 = vmatprep.mubr.bf16.mxu0 %v2611
  %2695 = vmatmul.mubr.bf16.gmra.mrb[0].mxu0 %v2610
  %v2696 = vpop.f32.mrb[0].mxu0
  %v2697 = vadd.f32 0.0, %v2696
  %v2698 = vpop.f32.mrb[0].mxu0
  %v2699 = vadd.f32 0.0, %v2698
  %v2700 = vpop.f32.mrb[0].mxu0
  %v2701 = vadd.f32 0.0, %v2700
  %v2702 = vpop.f32.mrb[0].mxu0
  %v2703 = vadd.f32 0.0, %v2702
  %2704 = vmatprep.mubr.bf16.mxu0 %v2613
  %2705 = vmatmul.mubr.bf16.gmra.mrb[0].mxu0 %v2612
  %v2706 = vpop.f32.mrb[0].mxu0
  %v2707 = vadd.f32 0.0, %v2706
  %v2708 = vpop.f32.mrb[0].mxu0
  %v2709 = vadd.f32 0.0, %v2708
  %v2710 = vpop.f32.mrb[0].mxu0
  %v2711 = vadd.f32 0.0, %v2710
  %v2712 = vpop.f32.mrb[0].mxu0
  %v2713 = vadd.f32 0.0, %v2712
  %2714 = vmatprep.mubr.bf16.mxu0 %v2615
  %2715 = vmatmul.mubr.bf16.gmra.mrb[0].mxu0 %v2614
  %v2716 = vpop.f32.mrb[0].mxu0
  %v2717 = vadd.f32 0.0, %v2716
  %v2718 = vpop.f32.mrb[0].mxu0
  %v2719 = vadd.f32 0.0, %v2718
  %v2720 = vpop.f32.mrb[0].mxu0
  %v2721 = vadd.f32 0.0, %v2720
  %v2722 = vpop.f32.mrb[0].mxu0
  %v2723 = vadd.f32 0.0, %v2722
  %2724 = vmatprep.mubr.bf16.mxu0 %v2617
  %2725 = vmatmul.mubr.bf16.gmra.mrb[0].mxu0 %v2616
  %v2726 = vpop.f32.mrb[0].mxu0
  %v2727 = vadd.f32 0.0, %v2726
  %v2728 = vpop.f32.mrb[0].mxu0
  %v2729 = vadd.f32 0.0, %v2728
  %v2730 = vpop.f32.mrb[0].mxu0
  %v2731 = vadd.f32 0.0, %v2730
  %v2732 = vpop.f32.mrb[0].mxu0
  %v2733 = vadd.f32 0.0, %v2732
  %2734 = vdwg.mxu0
  %v2735 = vpack.c.bf16 %v2671, %v2667
  %v2736 = vpack.c.bf16 %v2673, %v2669
  %v2737 = vpack.c.bf16 %v2681, %v2677
  %v2738 = vpack.c.bf16 %v2683, %v2679
  %v2739 = vpack.c.bf16 %v2691, %v2687
  %v2740 = vpack.c.bf16 %v2693, %v2689
  %v2741 = vpack.c.bf16 %v2701, %v2697
  %v2742 = vpack.c.bf16 %v2703, %v2699
  %v2743 = vpack.c.bf16 %v2711, %v2707
  %v2744 = vpack.c.bf16 %v2713, %v2709
  %v2745 = vpack.c.bf16 %v2721, %v2717
  %v2746 = vpack.c.bf16 %v2723, %v2719
  %v2747 = vpack.c.bf16 %v2731, %v2727
  %v2748 = vpack.c.bf16 %v2733, %v2729
  %v2749 = vld [vmem:[%s4] sm:$0xf]
  %v2750 = vld [vmem:[%s4 + $0x4] sm:$0xf]
  %v2751 = vld [vmem:[%s4 + $0x8] sm:$0xf]
  %v2752 = vld [vmem:[%s4 + $0xc] sm:$0xf]
  %v2753 = vld [vmem:[%s4 + $0x10] sm:$0xf]
  %v2754 = vld [vmem:[%s4 + $0x14] sm:$0xf]
  %v2755 = vld [vmem:[%s4 + $0x18] sm:$0xf]
  %v2756 = vld [vmem:[%s4 + $0x1c] sm:$0xf]
  %v2757 = vld [vmem:[%s4 + $0x20] sm:$0xf]
  %v2758 = vld [vmem:[%s4 + $0x24] sm:$0xf]
  %v2759 = vld [vmem:[%s4 + $0x28] sm:$0xf]
  %v2760 = vld [vmem:[%s4 + $0x2c] sm:$0xf]
  %v2761 = vld [vmem:[%s4 + $0x30] sm:$0xf]
  %v2762 = vld [vmem:[%s4 + $0x34] sm:$0xf]
  %v2763 = vld [vmem:[%s4 + $0x38] sm:$0xf]
  %v2764 = vld [vmem:[%s4 + $0x3c] sm:$0xf]
  %v2765 = vld [vmem:[%s4 + $0x40] sm:$0xf]
  %v2766 = vld [vmem:[%s4 + $0x44] sm:$0xf]
  %v2767 = vld [vmem:[%s4 + $0x48] sm:$0xf]
  %v2768 = vld [vmem:[%s4 + $0x4c] sm:$0xf]
  %v2769 = vld [vmem:[%s4 + $0x50] sm:$0xf]
  %v2791 = vunpack.c.l.b16 %v2749
  %v2792 = vunpack.c.l.b16 %v2750
  %v2793 = vunpack.c.l.b16 %v2751
  %v2794 = vunpack.c.l.b16 %v2752
  %v2795 = vunpack.c.l.b16 %v2753
  %v2796 = vunpack.c.l.b16 %v2754
  %v2797 = vunpack.c.l.b16 %v2755
  %v2798 = vunpack.c.l.b16 %v2756
  %v2799 = vunpack.c.l.b16 %v2757
  %v2800 = vunpack.c.l.b16 %v2758
  %v2801 = vunpack.c.l.b16 %v2759
  %v2802 = vunpack.c.l.b16 %v2760
  %v2803 = vunpack.c.l.b16 %v2761
  %v2804 = vunpack.c.l.b16 %v2762
  %v2805 = vunpack.c.l.b16 %v2763
  %v2806 = vunpack.c.l.b16 %v2764
  %v2807 = vunpack.c.l.b16 %v2765
  %v2808 = vunpack.c.l.b16 %v2766
  %v2809 = vunpack.c.l.b16 %v2767
  %v2810 = vunpack.c.l.b16 %v2768
  %v2811 = vunpack.c.l.b16 %v2769
  %v2812 = vpack.c.b16 %v2792, %v2791
  %v2813 = vpack.c.b16 %v2794, %v2793
  %v2814 = vpack.c.b16 %v2796, %v2795
  %v2815 = vpack.c.b16 %v2798, %v2797
  %v2816 = vpack.c.b16 %v2800, %v2799
  %v2817 = vpack.c.b16 %v2802, %v2801
  %v2818 = vpack.c.b16 %v2804, %v2803
  %v2819 = vpack.c.b16 %v2806, %v2805
  %v2820 = vpack.c.b16 %v2808, %v2807
  %v2821 = vpack.c.b16 %v2810, %v2809
  %v2822 = vpack.c.b16 %v2811, %v2811
  %vm2833 = vcmask 326656
  %v2835 = vsel %vm2833, %v2736, 0
  %v2838 = vsel %vm2833, %v2738, 0
  %v2841 = vsel %vm2833, %v2740, 0
  %v2844 = vsel %vm2833, %v2742, 0
  %v2847 = vsel %vm2833, %v2744, 0
  %v2850 = vsel %vm2833, %v2746, 0
  %v2853 = vsel %vm2833, %v2748, 0
  %vm2855 = vcmask 1043456
  %v2857 = vsel %vm2855, %v2822, 0
  %2859 = vmatprep.subr.bf16.mxu0 0
  %2860 = vmatpush1.bf16.msra.mxu0 %v2812
  %2861 = vmatprep.subr.bf16.mxu0 0
  %2862 = vmatpush1.bf16.msra.mxu0 %v2813
  %2863 = vmatprep.subr.bf16.mxu0 0
  %2864 = vmatpush1.bf16.msra.mxu0 %v2814
  %2865 = vmatprep.subr.bf16.mxu0 0
  %2866 = vmatpush1.bf16.msra.mxu0 %v2815
  %2867 = vmatprep.subr.bf16.mxu0 0
  %2868 = vmatpush1.bf16.msra.mxu0 %v2816
  %2869 = vmatprep.subr.bf16.mxu0 0
  %2870 = vmatpush1.bf16.msra.mxu0 %v2817
  %2871 = vmatprep.subr.bf16.mxu0 0
  %2872 = vmatpush1.bf16.msra.mxu0 %v2818
  %2873 = vmatprep.subr.bf16.mxu0 0
  %2874 = vmatpush1.bf16.msra.mxu0 %v2819
  %2875 = vmatprep.subr.bf16.mxu0 0
  %2876 = vmatpush1.bf16.msra.mxu0 %v2820
  %2877 = vmatprep.subr.bf16.mxu0 0
  %2878 = vmatpush1.bf16.msra.mxu0 %v2821
  %2879 = vmatprep.subr.bf16.mxu0 0
  %2880 = vmatpush1.bf16.msra.mxu0 %v2857
  %2881 = vmatprep.subr.bf16.mxu0 0
  %2882 = vmatpush1.bf16.msra.mxu0 0
  %2883 = vmatprep.subr.bf16.mxu0 0
  %2884 = vmatpush1.bf16.msra.mxu0 0
  %2885 = vmatprep.subr.bf16.mxu0 0
  %2886 = vmatpush1.bf16.msra.mxu0 0
  %2887 = vmatprep.subr.bf16.mxu0 0
  %2888 = vmatpush1.bf16.msra.mxu0 0
  %2889 = vmatprep.subr.bf16.mxu0 0
  %2890 = vmatpush1.bf16.msra.mxu0 0
  %2891 = vmatprep.mubr.bf16.mxu0 %v2835
  %2892 = vmatmul.mubr.bf16.gmra.mrb[0].mxu0 %v2735
  %v2893 = vpop.f32.mrb[0].mxu0
  %v2894 = vadd.f32 0.0, %v2893
  %v2895 = vpop.f32.mrb[0].mxu0
  %v2896 = vpop.f32.mrb[0].mxu0
  %v2897 = vadd.f32 0.0, %v2896
  %v2898 = vpop.f32.mrb[0].mxu0
  %2899 = vmatprep.mubr.bf16.mxu0 %v2838
  %2900 = vmatmul.mubr.bf16.gmra.mrb[0].mxu0 %v2737
  %v2901 = vpop.f32.mrb[0].mxu0
  %v2902 = vadd.f32 0.0, %v2901
  %v2903 = vpop.f32.mrb[0].mxu0
  %v2904 = vpop.f32.mrb[0].mxu0
  %v2905 = vadd.f32 0.0, %v2904
  %v2906 = vpop.f32.mrb[0].mxu0
  %2907 = vmatprep.mubr.bf16.mxu0 %v2841
  %2908 = vmatmul.mubr.bf16.gmra.mrb[0].mxu0 %v2739
  %v2909 = vpop.f32.mrb[0].mxu0
  %v2910 = vadd.f32 0.0, %v2909
  %v2911 = vpop.f32.mrb[0].mxu0
  %v2912 = vpop.f32.mrb[0].mxu0
  %v2913 = vadd.f32 0.0, %v2912
  %v2914 = vpop.f32.mrb[0].mxu0
  %2915 = vmatprep.mubr.bf16.mxu0 %v2844
  %2916 = vmatmul.mubr.bf16.gmra.mrb[0].mxu0 %v2741
  %v2917 = vpop.f32.mrb[0].mxu0
  %v2918 = vadd.f32 0.0, %v2917
  %v2919 = vpop.f32.mrb[0].mxu0
  %v2920 = vpop.f32.mrb[0].mxu0
  %v2921 = vadd.f32 0.0, %v2920
  %v2922 = vpop.f32.mrb[0].mxu0
  %2923 = vmatprep.mubr.bf16.mxu0 %v2847
  %2924 = vmatmul.mubr.bf16.gmra.mrb[0].mxu0 %v2743
  %v2925 = vpop.f32.mrb[0].mxu0
  %v2926 = vadd.f32 0.0, %v2925
  %v2927 = vpop.f32.mrb[0].mxu0
  %v2928 = vpop.f32.mrb[0].mxu0
  %v2929 = vadd.f32 0.0, %v2928
  %v2930 = vpop.f32.mrb[0].mxu0
  %2931 = vmatprep.mubr.bf16.mxu0 %v2850
  %2932 = vmatmul.mubr.bf16.gmra.mrb[0].mxu0 %v2745
  %v2933 = vpop.f32.mrb[0].mxu0
  %v2934 = vadd.f32 0.0, %v2933
  %v2935 = vpop.f32.mrb[0].mxu0
  %v2936 = vpop.f32.mrb[0].mxu0
  %v2937 = vadd.f32 0.0, %v2936
  %v2938 = vpop.f32.mrb[0].mxu0
  %2939 = vmatprep.mubr.bf16.mxu0 %v2853
  %2940 = vmatmul.mubr.bf16.gmra.mrb[0].mxu0 %v2747
  %v2941 = vpop.f32.mrb[0].mxu0
  %v2942 = vadd.f32 0.0, %v2941
  %v2943 = vpop.f32.mrb[0].mxu0
  %v2944 = vpop.f32.mrb[0].mxu0
  %v2945 = vadd.f32 0.0, %v2944
  %v2946 = vpop.f32.mrb[0].mxu0
  %2947 = vdwg.mxu0
  %v2948 = vpack.c.bf16 %v2897, %v2894
  %v2949 = vpack.c.bf16 %v2905, %v2902
  %v2950 = vpack.c.bf16 %v2913, %v2910
  %v2951 = vpack.c.bf16 %v2921, %v2918
  %v2952 = vpack.c.bf16 %v2929, %v2926
  %v2953 = vpack.c.bf16 %v2937, %v2934
  %v2954 = vpack.c.bf16 %v2945, %v2942
  %v2955 = vld [vmem:[%s5] sm:$0xff]
  %v2956 = vld [vmem:[%s5 + $0x8] sm:$0xff]
  %v2957 = vld [vmem:[%s5 + $0x10] sm:$0xff]
  %v2958 = vld [vmem:[%s5 + $0x18] sm:$0xff]
  %v2959 = vld [vmem:[%s5 + $0x20] sm:$0xff]
  %v2960 = vld [vmem:[%s5 + $0x28] sm:$0xff]
  %v2961 = vld [vmem:[%s5 + $0x30] sm:$0xff]
  %v2962 = vld [vmem:[%s5 + $0x38] sm:$0xff]
  %v2963 = vld [vmem:[%s5 + $0x40] sm:$0xff]
  %v2964 = vld [vmem:[%s5 + $0x48] sm:$0xff]
  %v2965 = vld [vmem:[%s5 + $0x50] sm:$0x33]
  %v2977 = vunpack.c.l.b16 %v2955
  %v2978 = vunpack.c.h.b16 %v2955
  %v2979 = vunpack.c.l.b16 %v2956
  %v2980 = vunpack.c.h.b16 %v2956
  %v2981 = vunpack.c.l.b16 %v2957
  %v2982 = vunpack.c.h.b16 %v2957
  %v2983 = vunpack.c.l.b16 %v2958
  %v2984 = vunpack.c.h.b16 %v2958
  %v2985 = vunpack.c.l.b16 %v2959
  %v2986 = vunpack.c.h.b16 %v2959
  %v2987 = vunpack.c.l.b16 %v2960
  %v2988 = vunpack.c.h.b16 %v2960
  %v2989 = vunpack.c.l.b16 %v2961
  %v2990 = vunpack.c.h.b16 %v2961
  %v2991 = vunpack.c.l.b16 %v2962
  %v2992 = vunpack.c.h.b16 %v2962
  %v2993 = vunpack.c.l.b16 %v2963
  %v2994 = vunpack.c.h.b16 %v2963
  %v2995 = vunpack.c.l.b16 %v2964
  %v2996 = vunpack.c.h.b16 %v2964
  %v2997 = vunpack.c.l.b16 %v2965
  %v2998 = vunpack.c.h.b16 %v2965
  %v2999 = vpack.c.b16 %v2979, %v2977
  %v3000 = vpack.c.b16 %v2980, %v2978
  %v3001 = vpack.c.b16 %v2983, %v2981
  %v3002 = vpack.c.b16 %v2984, %v2982
  %v3003 = vpack.c.b16 %v2987, %v2985
  %v3004 = vpack.c.b16 %v2988, %v2986
  %v3005 = vpack.c.b16 %v2991, %v2989
  %v3006 = vpack.c.b16 %v2992, %v2990
  %v3007 = vpack.c.b16 %v2995, %v2993
  %v3008 = vpack.c.b16 %v2996, %v2994
  %v3009 = vpack.c.b16 %v2997, %v2997
  %v3010 = vpack.c.b16 %v2998, %v2998
  %vm3021 = vcmask 687104
  %v3023 = vsel %vm3021, %v2948, 0
  %v3026 = vsel %vm3021, %v2949, 0
  %v3029 = vsel %vm3021, %v2950, 0
  %v3032 = vsel %vm3021, %v2951, 0
  %v3035 = vsel %vm3021, %v2952, 0
  %v3038 = vsel %vm3021, %v2953, 0
  %v3041 = vsel %vm3021, %v2954, 0
  %vm3043 = vcmask 1041408
  %v3045 = vsel %vm3043, %v3009, 0
  %v3048 = vsel %vm3043, %v3010, 0
  %3050 = vmatprep.subr.bf16.mxu0 %v3000
  %3051 = vmatpush1.bf16.msra.mxu0 %v2999
  %3052 = vmatprep.subr.bf16.mxu0 %v3002
  %3053 = vmatpush1.bf16.msra.mxu0 %v3001
  %3054 = vmatprep.subr.bf16.mxu0 %v3004
  %3055 = vmatpush1.bf16.msra.mxu0 %v3003
  %3056 = vmatprep.subr.bf16.mxu0 %v3006
  %3057 = vmatpush1.bf16.msra.mxu0 %v3005
  %3058 = vmatprep.subr.bf16.mxu0 %v3008
  %3059 = vmatpush1.bf16.msra.mxu0 %v3007
  %3060 = vmatprep.subr.bf16.mxu0 %v3048
  %3061 = vmatpush1.bf16.msra.mxu0 %v3045
  %3062 = vmatprep.subr.bf16.mxu0 0
  %3063 = vmatpush1.bf16.msra.mxu0 0
  %3064 = vmatprep.subr.bf16.mxu0 0
  %3065 = vmatpush1.bf16.msra.mxu0 0
  %3066 = vmatprep.subr.bf16.mxu0 0
  %3067 = vmatpush1.bf16.msra.mxu0 0
  %3068 = vmatprep.subr.bf16.mxu0 0
  %3069 = vmatpush1.bf16.msra.mxu0 0
  %3070 = vmatprep.subr.bf16.mxu0 0
  %3071 = vmatpush1.bf16.msra.mxu0 0
  %3072 = vmatprep.subr.bf16.mxu0 0
  %3073 = vmatpush1.bf16.msra.mxu0 0
  %3074 = vmatprep.subr.bf16.mxu0 0
  %3075 = vmatpush1.bf16.msra.mxu0 0
  %3076 = vmatprep.subr.bf16.mxu0 0
  %3077 = vmatpush1.bf16.msra.mxu0 0
  %3078 = vmatprep.subr.bf16.mxu0 0
  %3079 = vmatpush1.bf16.msra.mxu0 0
  %3080 = vmatprep.subr.bf16.mxu0 0
  %3081 = vmatpush1.bf16.msra.mxu0 0
  %3082 = vmatprep.mubr.bf16.mxu0 0
  %3083 = vmatmul.mubr.bf16.gmra.mrb[0].mxu0 %v3023
  %v3084 = vpop.f32.mrb[0].mxu0
  %v3085 = vadd.f32 0.0, %v3084
  %v3086 = vpop.f32.mrb[0].mxu0
  %v3087 = vadd.f32 0.0, %v3086
  %v3088 = vpop.f32.mrb[0].mxu0
  %v3089 = vadd.f32 0.0, %v3088
  %v3090 = vpop.f32.mrb[0].mxu0
  %v3091 = vadd.f32 0.0, %v3090
  %3092 = vmatprep.mubr.bf16.mxu0 0
  %3093 = vmatmul.mubr.bf16.gmra.mrb[0].mxu0 %v3026
  %v3094 = vpop.f32.mrb[0].mxu0
  %v3095 = vadd.f32 0.0, %v3094
  %v3096 = vpop.f32.mrb[0].mxu0
  %v3097 = vadd.f32 0.0, %v3096
  %v3098 = vpop.f32.mrb[0].mxu0
  %v3099 = vadd.f32 0.0, %v3098
  %v3100 = vpop.f32.mrb[0].mxu0
  %v3101 = vadd.f32 0.0, %v3100
  %3102 = vmatprep.mubr.bf16.mxu0 0
  %3103 = vmatmul.mubr.bf16.gmra.mrb[0].mxu0 %v3029
  %v3104 = vpop.f32.mrb[0].mxu0
  %v3105 = vadd.f32 0.0, %v3104
  %v3106 = vpop.f32.mrb[0].mxu0
  %v3107 = vadd.f32 0.0, %v3106
  %v3108 = vpop.f32.mrb[0].mxu0
  %v3109 = vadd.f32 0.0, %v3108
  %v3110 = vpop.f32.mrb[0].mxu0
  %v3111 = vadd.f32 0.0, %v3110
  %3112 = vmatprep.mubr.bf16.mxu0 0
  %3113 = vmatmul.mubr.bf16.gmra.mrb[0].mxu0 %v3032
  %v3114 = vpop.f32.mrb[0].mxu0
  %v3115 = vadd.f32 0.0, %v3114
  %v3116 = vpop.f32.mrb[0].mxu0
  %v3117 = vadd.f32 0.0, %v3116
  %v3118 = vpop.f32.mrb[0].mxu0
  %v3119 = vadd.f32 0.0, %v3118
  %v3120 = vpop.f32.mrb[0].mxu0
  %v3121 = vadd.f32 0.0, %v3120
  %3122 = vmatprep.mubr.bf16.mxu0 0
  %3123 = vmatmul.mubr.bf16.gmra.mrb[0].mxu0 %v3035
  %v3124 = vpop.f32.mrb[0].mxu0
  %v3125 = vadd.f32 0.0, %v3124
  %v3126 = vpop.f32.mrb[0].mxu0
  %v3127 = vadd.f32 0.0, %v3126
  %v3128 = vpop.f32.mrb[0].mxu0
  %v3129 = vadd.f32 0.0, %v3128
  %v3130 = vpop.f32.mrb[0].mxu0
  %v3131 = vadd.f32 0.0, %v3130
  %3132 = vmatprep.mubr.bf16.mxu0 0
  %3133 = vmatmul.mubr.bf16.gmra.mrb[0].mxu0 %v3038
  %v3134 = vpop.f32.mrb[0].mxu0
  %v3135 = vadd.f32 0.0, %v3134
  %v3136 = vpop.f32.mrb[0].mxu0
  %v3137 = vadd.f32 0.0, %v3136
  %v3138 = vpop.f32.mrb[0].mxu0
  %v3139 = vadd.f32 0.0, %v3138
  %v3140 = vpop.f32.mrb[0].mxu0
  %v3141 = vadd.f32 0.0, %v3140
  %3142 = vmatprep.mubr.bf16.mxu0 0
  %3143 = vmatmul.mubr.bf16.gmra.mrb[0].mxu0 %v3041
  %v3144 = vpop.f32.mrb[0].mxu0
  %v3145 = vadd.f32 0.0, %v3144
  %v3146 = vpop.f32.mrb[0].mxu0
  %v3147 = vadd.f32 0.0, %v3146
  %v3148 = vpop.f32.mrb[0].mxu0
  %v3149 = vadd.f32 0.0, %v3148
  %v3150 = vpop.f32.mrb[0].mxu0
  %v3151 = vadd.f32 0.0, %v3150
  %3152 = vdwg.mxu0
  %v3153 = vrot.slane %v3085, 4
  %v3154 = vrot.slane %v3087, 4
  %v3155 = vrot.slane %v3089, 4
  %v3156 = vrot.slane %v3091, 4
  %v3157 = vrot.slane %v3095, 4
  %v3158 = vrot.slane %v3097, 4
  %v3159 = vrot.slane %v3099, 4
  %v3160 = vrot.slane %v3101, 4
  %v3161 = vrot.slane %v3105, 4
  %v3162 = vrot.slane %v3107, 4
  %v3163 = vrot.slane %v3109, 4
  %v3164 = vrot.slane %v3111, 4
  %v3165 = vrot.slane %v3115, 4
  %v3166 = vrot.slane %v3117, 4
  %v3167 = vrot.slane %v3119, 4
  %v3168 = vrot.slane %v3121, 4
  %v3169 = vrot.slane %v3125, 4
  %v3170 = vrot.slane %v3127, 4
  %v3171 = vrot.slane %v3129, 4
  %v3172 = vrot.slane %v3131, 4
  %v3173 = vrot.slane %v3135, 4
  %v3174 = vrot.slane %v3137, 4
  %v3175 = vrot.slane %v3139, 4
  %v3176 = vrot.slane %v3141, 4
  %v3177 = vrot.slane %v3145, 4
  %v3178 = vrot.slane %v3147, 4
  %v3179 = vrot.slane %v3149, 4
  %v3180 = vrot.slane %v3151, 4
  %v3181 = vsel %vm540, %v3177, %v3179
  %v3182 = vsel %vm540, %v3178, %v3180
  %v3183 = vsel %vm540, %v3175, %v3177
  %v3184 = vsel %vm540, %v3176, %v3178
  %v3185 = vsel %vm540, %v3173, %v3175
  %v3186 = vsel %vm540, %v3174, %v3176
  %v3187 = vsel %vm540, %v3171, %v3173
  %v3188 = vsel %vm540, %v3172, %v3174
  %v3189 = vsel %vm540, %v3169, %v3171
  %v3190 = vsel %vm540, %v3170, %v3172
  %v3191 = vsel %vm540, %v3167, %v3169
  %v3192 = vsel %vm540, %v3168, %v3170
  %v3193 = vsel %vm540, %v3165, %v3167
  %v3194 = vsel %vm540, %v3166, %v3168
  %v3195 = vsel %vm540, %v3163, %v3165
  %v3196 = vsel %vm540, %v3164, %v3166
  %v3197 = vsel %vm540, %v3161, %v3163
  %v3198 = vsel %vm540, %v3162, %v3164
  %v3199 = vsel %vm540, %v3159, %v3161
  %v3200 = vsel %vm540, %v3160, %v3162
  %v3201 = vsel %vm540, %v3157, %v3159
  %v3202 = vsel %vm540, %v3158, %v3160
  %v3203 = vsel %vm540, %v3155, %v3157
  %v3204 = vsel %vm540, %v3156, %v3158
  %v3205 = vsel %vm540, %v3153, %v3155
  %v3206 = vsel %vm540, %v3154, %v3156
  %v3207 = vsel %vm540, %v3179, %v3153
  %v3208 = vsel %vm540, %v3180, %v3154
  %v3209 = vadd.f32 %v3207, 0.0
  %v3210 = vadd.f32 %v3208, 0.0
  %v3211 = vadd.f32 %v3205, 0.0
  %v3212 = vadd.f32 %v3206, 0.0
  %v3213 = vadd.f32 %v3203, 0.0
  %v3214 = vadd.f32 %v3204, 0.0
  %v3215 = vadd.f32 %v3201, 0.0
  %v3216 = vadd.f32 %v3202, 0.0
  %v3217 = vadd.f32 %v3199, 0.0
  %v3218 = vadd.f32 %v3200, 0.0
  %v3219 = vadd.f32 %v3197, 0.0
  %v3220 = vadd.f32 %v3198, 0.0
  %v3221 = vadd.f32 %v3195, 0.0
  %v3222 = vadd.f32 %v3196, 0.0
  %v3223 = vadd.f32 %v3193, 0.0
  %v3224 = vadd.f32 %v3194, 0.0
  %v3225 = vadd.f32 %v3191, 0.0
  %v3226 = vadd.f32 %v3192, 0.0
  %v3227 = vadd.f32 %v3189, 0.0
  %v3228 = vadd.f32 %v3190, 0.0
  %v3229 = vadd.f32 %v3187, 0.0
  %v3230 = vadd.f32 %v3188, 0.0
  %v3231 = vadd.f32 %v3185, 0.0
  %v3232 = vadd.f32 %v3186, 0.0
  %v3233 = vadd.f32 %v3183, 0.0
  %v3234 = vadd.f32 %v3184, 0.0
  %v3235 = vadd.f32 %v3181, 0.0
  %v3236 = vadd.f32 %v3182, 0.0
  %s3237 = scalar_lea.vmem %s5, 88
  %v3238 = vld [vmem:[%s3237] sm:$0xff]
  %v3239 = vld [vmem:[%s3237 + $0x8] sm:$0xff]
  %v3240 = vld [vmem:[%s3237 + $0x10] sm:$0xff]
  %v3241 = vld [vmem:[%s3237 + $0x18] sm:$0xff]
  %v3242 = vld [vmem:[%s3237 + $0x20] sm:$0xff]
  %v3243 = vld [vmem:[%s3237 + $0x28] sm:$0xff]
  %v3244 = vld [vmem:[%s3237 + $0x30] sm:$0xff]
  %v3245 = vld [vmem:[%s3237 + $0x38] sm:$0xff]
  %v3246 = vld [vmem:[%s3237 + $0x40] sm:$0xff]
  %v3247 = vld [vmem:[%s3237 + $0x48] sm:$0xff]
  %v3248 = vld [vmem:[%s3237 + $0x50] sm:$0x33]
  %v3260 = vunpack.c.l.b16 %v3238
  %v3261 = vunpack.c.h.b16 %v3238
  %v3262 = vunpack.c.l.b16 %v3239
  %v3263 = vunpack.c.h.b16 %v3239
  %v3264 = vunpack.c.l.b16 %v3240
  %v3265 = vunpack.c.h.b16 %v3240
  %v3266 = vunpack.c.l.b16 %v3241
  %v3267 = vunpack.c.h.b16 %v3241
  %v3268 = vunpack.c.l.b16 %v3242
  %v3269 = vunpack.c.h.b16 %v3242
  %v3270 = vunpack.c.l.b16 %v3243
  %v3271 = vunpack.c.h.b16 %v3243
  %v3272 = vunpack.c.l.b16 %v3244
  %v3273 = vunpack.c.h.b16 %v3244
  %v3274 = vunpack.c.l.b16 %v3245
  %v3275 = vunpack.c.h.b16 %v3245
  %v3276 = vunpack.c.l.b16 %v3246
  %v3277 = vunpack.c.h.b16 %v3246
  %v3278 = vunpack.c.l.b16 %v3247
  %v3279 = vunpack.c.h.b16 %v3247
  %v3280 = vunpack.c.l.b16 %v3248
  %v3281 = vunpack.c.h.b16 %v3248
  %v3282 = vpack.c.b16 %v3262, %v3260
  %v3283 = vpack.c.b16 %v3263, %v3261
  %v3284 = vpack.c.b16 %v3266, %v3264
  %v3285 = vpack.c.b16 %v3267, %v3265
  %v3286 = vpack.c.b16 %v3270, %v3268
  %v3287 = vpack.c.b16 %v3271, %v3269
  %v3288 = vpack.c.b16 %v3274, %v3272
  %v3289 = vpack.c.b16 %v3275, %v3273
  %v3290 = vpack.c.b16 %v3278, %v3276
  %v3291 = vpack.c.b16 %v3279, %v3277
  %v3292 = vpack.c.b16 %v3280, %v3280
  %v3293 = vpack.c.b16 %v3281, %v3281
  %v3305 = vsel %vm3043, %v3292, 0
  %v3308 = vsel %vm3043, %v3293, 0
  %3310 = vmatprep.subr.bf16.mxu0 %v3283
  %3311 = vmatpush1.bf16.msra.mxu0 %v3282
  %3312 = vmatprep.subr.bf16.mxu0 %v3285
  %3313 = vmatpush1.bf16.msra.mxu0 %v3284
  %3314 = vmatprep.subr.bf16.mxu0 %v3287
  %3315 = vmatpush1.bf16.msra.mxu0 %v3286
  %3316 = vmatprep.subr.bf16.mxu0 %v3289
  %3317 = vmatpush1.bf16.msra.mxu0 %v3288
  %3318 = vmatprep.subr.bf16.mxu0 %v3291
  %3319 = vmatpush1.bf16.msra.mxu0 %v3290
  %3320 = vmatprep.subr.bf16.mxu0 %v3308
  %3321 = vmatpush1.bf16.msra.mxu0 %v3305
  %3322 = vmatprep.subr.bf16.mxu0 0
  %3323 = vmatpush1.bf16.msra.mxu0 0
  %3324 = vmatprep.subr.bf16.mxu0 0
  %3325 = vmatpush1.bf16.msra.mxu0 0
  %3326 = vmatprep.subr.bf16.mxu0 0
  %3327 = vmatpush1.bf16.msra.mxu0 0
  %3328 = vmatprep.subr.bf16.mxu0 0
  %3329 = vmatpush1.bf16.msra.mxu0 0
  %3330 = vmatprep.subr.bf16.mxu0 0
  %3331 = vmatpush1.bf16.msra.mxu0 0
  %3332 = vmatprep.subr.bf16.mxu0 0
  %3333 = vmatpush1.bf16.msra.mxu0 0
  %3334 = vmatprep.subr.bf16.mxu0 0
  %3335 = vmatpush1.bf16.msra.mxu0 0
  %3336 = vmatprep.subr.bf16.mxu0 0
  %3337 = vmatpush1.bf16.msra.mxu0 0
  %3338 = vmatprep.subr.bf16.mxu0 0
  %3339 = vmatpush1.bf16.msra.mxu0 0
  %3340 = vmatprep.subr.bf16.mxu0 0
  %3341 = vmatpush1.bf16.msra.mxu0 0
  %3342 = vmatprep.mubr.bf16.mxu0 0
  %3343 = vmatmul.mubr.bf16.gmra.mrb[0].mxu0 %v3023
  %v3344 = vpop.f32.mrb[0].mxu0
  %v3345 = vadd.f32 0.0, %v3344
  %v3346 = vpop.f32.mrb[0].mxu0
  %v3347 = vadd.f32 0.0, %v3346
  %v3348 = vpop.f32.mrb[0].mxu0
  %v3349 = vadd.f32 0.0, %v3348
  %v3350 = vpop.f32.mrb[0].mxu0
  %v3351 = vadd.f32 0.0, %v3350
  %3352 = vmatprep.mubr.bf16.mxu0 0
  %3353 = vmatmul.mubr.bf16.gmra.mrb[0].mxu0 %v3026
  %v3354 = vpop.f32.mrb[0].mxu0
  %v3355 = vadd.f32 0.0, %v3354
  %v3356 = vpop.f32.mrb[0].mxu0
  %v3357 = vadd.f32 0.0, %v3356
  %v3358 = vpop.f32.mrb[0].mxu0
  %v3359 = vadd.f32 0.0, %v3358
  %v3360 = vpop.f32.mrb[0].mxu0
  %v3361 = vadd.f32 0.0, %v3360
  %3362 = vmatprep.mubr.bf16.mxu0 0
  %3363 = vmatmul.mubr.bf16.gmra.mrb[0].mxu0 %v3029
  %v3364 = vpop.f32.mrb[0].mxu0
  %v3365 = vadd.f32 0.0, %v3364
  %v3366 = vpop.f32.mrb[0].mxu0
  %v3367 = vadd.f32 0.0, %v3366
  %v3368 = vpop.f32.mrb[0].mxu0
  %v3369 = vadd.f32 0.0, %v3368
  %v3370 = vpop.f32.mrb[0].mxu0
  %v3371 = vadd.f32 0.0, %v3370
  %3372 = vmatprep.mubr.bf16.mxu0 0
  %3373 = vmatmul.mubr.bf16.gmra.mrb[0].mxu0 %v3032
  %v3374 = vpop.f32.mrb[0].mxu0
  %v3375 = vadd.f32 0.0, %v3374
  %v3376 = vpop.f32.mrb[0].mxu0
  %v3377 = vadd.f32 0.0, %v3376
  %v3378 = vpop.f32.mrb[0].mxu0
  %v3379 = vadd.f32 0.0, %v3378
  %v3380 = vpop.f32.mrb[0].mxu0
  %v3381 = vadd.f32 0.0, %v3380
  %3382 = vmatprep.mubr.bf16.mxu0 0
  %3383 = vmatmul.mubr.bf16.gmra.mrb[0].mxu0 %v3035
  %v3384 = vpop.f32.mrb[0].mxu0
  %v3385 = vadd.f32 0.0, %v3384
  %v3386 = vpop.f32.mrb[0].mxu0
  %v3387 = vadd.f32 0.0, %v3386
  %v3388 = vpop.f32.mrb[0].mxu0
  %v3389 = vadd.f32 0.0, %v3388
  %v3390 = vpop.f32.mrb[0].mxu0
  %v3391 = vadd.f32 0.0, %v3390
  %3392 = vmatprep.mubr.bf16.mxu0 0
  %3393 = vmatmul.mubr.bf16.gmra.mrb[0].mxu0 %v3038
  %v3394 = vpop.f32.mrb[0].mxu0
  %v3395 = vadd.f32 0.0, %v3394
  %v3396 = vpop.f32.mrb[0].mxu0
  %v3397 = vadd.f32 0.0, %v3396
  %v3398 = vpop.f32.mrb[0].mxu0
  %v3399 = vadd.f32 0.0, %v3398
  %v3400 = vpop.f32.mrb[0].mxu0
  %v3401 = vadd.f32 0.0, %v3400
  %3402 = vmatprep.mubr.bf16.mxu0 0
  %3403 = vmatmul.mubr.bf16.gmra.mrb[0].mxu0 %v3041
  %v3404 = vpop.f32.mrb[0].mxu0
  %v3405 = vadd.f32 0.0, %v3404
  %v3406 = vpop.f32.mrb[0].mxu0
  %v3407 = vadd.f32 0.0, %v3406
  %v3408 = vpop.f32.mrb[0].mxu0
  %v3409 = vadd.f32 0.0, %v3408
  %v3410 = vpop.f32.mrb[0].mxu0
  %v3411 = vadd.f32 0.0, %v3410
  %3412 = vdwg.mxu0
  %v3413 = vrot.slane %v3345, 5
  %v3414 = vrot.slane %v3347, 5
  %v3415 = vrot.slane %v3349, 5
  %v3416 = vrot.slane %v3351, 5
  %v3417 = vrot.slane %v3355, 5
  %v3418 = vrot.slane %v3357, 5
  %v3419 = vrot.slane %v3359, 5
  %v3420 = vrot.slane %v3361, 5
  %v3421 = vrot.slane %v3365, 5
  %v3422 = vrot.slane %v3367, 5
  %v3423 = vrot.slane %v3369, 5
  %v3424 = vrot.slane %v3371, 5
  %v3425 = vrot.slane %v3375, 5
  %v3426 = vrot.slane %v3377, 5
  %v3427 = vrot.slane %v3379, 5
  %v3428 = vrot.slane %v3381, 5
  %v3429 = vrot.slane %v3385, 5
  %v3430 = vrot.slane %v3387, 5
  %v3431 = vrot.slane %v3389, 5
  %v3432 = vrot.slane %v3391, 5
  %v3433 = vrot.slane %v3395, 5
  %v3434 = vrot.slane %v3397, 5
  %v3435 = vrot.slane %v3399, 5
  %v3436 = vrot.slane %v3401, 5
  %v3437 = vrot.slane %v3405, 5
  %v3438 = vrot.slane %v3407, 5
  %v3439 = vrot.slane %v3409, 5
  %v3440 = vrot.slane %v3411, 5
  %v3441 = vsel %vm999, %v3437, %v3439
  %v3442 = vsel %vm999, %v3438, %v3440
  %v3443 = vsel %vm999, %v3435, %v3437
  %v3444 = vsel %vm999, %v3436, %v3438
  %v3445 = vsel %vm999, %v3433, %v3435
  %v3446 = vsel %vm999, %v3434, %v3436
  %v3447 = vsel %vm999, %v3431, %v3433
  %v3448 = vsel %vm999, %v3432, %v3434
  %v3449 = vsel %vm999, %v3429, %v3431
  %v3450 = vsel %vm999, %v3430, %v3432
  %v3451 = vsel %vm999, %v3427, %v3429
  %v3452 = vsel %vm999, %v3428, %v3430
  %v3453 = vsel %vm999, %v3425, %v3427
  %v3454 = vsel %vm999, %v3426, %v3428
  %v3455 = vsel %vm999, %v3423, %v3425
  %v3456 = vsel %vm999, %v3424, %v3426
  %v3457 = vsel %vm999, %v3421, %v3423
  %v3458 = vsel %vm999, %v3422, %v3424
  %v3459 = vsel %vm999, %v3419, %v3421
  %v3460 = vsel %vm999, %v3420, %v3422
  %v3461 = vsel %vm999, %v3417, %v3419
  %v3462 = vsel %vm999, %v3418, %v3420
  %v3463 = vsel %vm999, %v3415, %v3417
  %v3464 = vsel %vm999, %v3416, %v3418
  %v3465 = vsel %vm999, %v3413, %v3415
  %v3466 = vsel %vm999, %v3414, %v3416
  %v3467 = vsel %vm999, %v3439, %v3413
  %v3468 = vsel %vm999, %v3440, %v3414
  %v3469 = vadd.f32 %v3209, %v3467
  %v3470 = vadd.f32 %v3210, %v3468
  %v3471 = vadd.f32 %v3211, %v3465
  %v3472 = vadd.f32 %v3212, %v3466
  %v3473 = vadd.f32 %v3213, %v3463
  %v3474 = vadd.f32 %v3214, %v3464
  %v3475 = vadd.f32 %v3215, %v3461
  %v3476 = vadd.f32 %v3216, %v3462
  %v3477 = vadd.f32 %v3217, %v3459
  %v3478 = vadd.f32 %v3218, %v3460
  %v3479 = vadd.f32 %v3219, %v3457
  %v3480 = vadd.f32 %v3220, %v3458
  %v3481 = vadd.f32 %v3221, %v3455
  %v3482 = vadd.f32 %v3222, %v3456
  %v3483 = vadd.f32 %v3223, %v3453
  %v3484 = vadd.f32 %v3224, %v3454
  %v3485 = vadd.f32 %v3225, %v3451
  %v3486 = vadd.f32 %v3226, %v3452
  %v3487 = vadd.f32 %v3227, %v3449
  %v3488 = vadd.f32 %v3228, %v3450
  %v3489 = vadd.f32 %v3229, %v3447
  %v3490 = vadd.f32 %v3230, %v3448
  %v3491 = vadd.f32 %v3231, %v3445
  %v3492 = vadd.f32 %v3232, %v3446
  %v3493 = vadd.f32 %v3233, %v3443
  %v3494 = vadd.f32 %v3234, %v3444
  %v3495 = vadd.f32 %v3235, %v3441
  %v3496 = vadd.f32 %v3236, %v3442
  %s3497 = scalar_lea.vmem %s5, 176
  %v3498 = vld [vmem:[%s3497] sm:$0xff]
  %v3499 = vld [vmem:[%s3497 + $0x8] sm:$0xff]
  %v3500 = vld [vmem:[%s3497 + $0x10] sm:$0xff]
  %v3501 = vld [vmem:[%s3497 + $0x18] sm:$0xff]
  %v3502 = vld [vmem:[%s3497 + $0x20] sm:$0xff]
  %v3503 = vld [vmem:[%s3497 + $0x28] sm:$0xff]
  %v3504 = vld [vmem:[%s3497 + $0x30] sm:$0xff]
  %v3505 = vld [vmem:[%s3497 + $0x38] sm:$0xff]
  %v3506 = vld [vmem:[%s3497 + $0x40] sm:$0xff]
  %v3507 = vld [vmem:[%s3497 + $0x48] sm:$0xff]
  %v3508 = vld [vmem:[%s3497 + $0x50] sm:$0x33]
  %v3520 = vunpack.c.l.b16 %v3498
  %v3521 = vunpack.c.h.b16 %v3498
  %v3522 = vunpack.c.l.b16 %v3499
  %v3523 = vunpack.c.h.b16 %v3499
  %v3524 = vunpack.c.l.b16 %v3500
  %v3525 = vunpack.c.h.b16 %v3500
  %v3526 = vunpack.c.l.b16 %v3501
  %v3527 = vunpack.c.h.b16 %v3501
  %v3528 = vunpack.c.l.b16 %v3502
  %v3529 = vunpack.c.h.b16 %v3502
  %v3530 = vunpack.c.l.b16 %v3503
  %v3531 = vunpack.c.h.b16 %v3503
  %v3532 = vunpack.c.l.b16 %v3504
  %v3533 = vunpack.c.h.b16 %v3504
  %v3534 = vunpack.c.l.b16 %v3505
  %v3535 = vunpack.c.h.b16 %v3505
  %v3536 = vunpack.c.l.b16 %v3506
  %v3537 = vunpack.c.h.b16 %v3506
  %v3538 = vunpack.c.l.b16 %v3507
  %v3539 = vunpack.c.h.b16 %v3507
  %v3540 = vunpack.c.l.b16 %v3508
  %v3541 = vunpack.c.h.b16 %v3508
  %v3542 = vpack.c.b16 %v3522, %v3520
  %v3543 = vpack.c.b16 %v3523, %v3521
  %v3544 = vpack.c.b16 %v3526, %v3524
  %v3545 = vpack.c.b16 %v3527, %v3525
  %v3546 = vpack.c.b16 %v3530, %v3528
  %v3547 = vpack.c.b16 %v3531, %v3529
  %v3548 = vpack.c.b16 %v3534, %v3532
  %v3549 = vpack.c.b16 %v3535, %v3533
  %v3550 = vpack.c.b16 %v3538, %v3536
  %v3551 = vpack.c.b16 %v3539, %v3537
  %v3552 = vpack.c.b16 %v3540, %v3540
  %v3553 = vpack.c.b16 %v3541, %v3541
  %v3565 = vsel %vm3043, %v3552, 0
  %v3568 = vsel %vm3043, %v3553, 0
  %3570 = vmatprep.subr.bf16.mxu0 %v3543
  %3571 = vmatpush1.bf16.msra.mxu0 %v3542
  %3572 = vmatprep.subr.bf16.mxu0 %v3545
  %3573 = vmatpush1.bf16.msra.mxu0 %v3544
  %3574 = vmatprep.subr.bf16.mxu0 %v3547
  %3575 = vmatpush1.bf16.msra.mxu0 %v3546
  %3576 = vmatprep.subr.bf16.mxu0 %v3549
  %3577 = vmatpush1.bf16.msra.mxu0 %v3548
  %3578 = vmatprep.subr.bf16.mxu0 %v3551
  %3579 = vmatpush1.bf16.msra.mxu0 %v3550
  %3580 = vmatprep.subr.bf16.mxu0 %v3568
  %3581 = vmatpush1.bf16.msra.mxu0 %v3565
  %3582 = vmatprep.subr.bf16.mxu0 0
  %3583 = vmatpush1.bf16.msra.mxu0 0
  %3584 = vmatprep.subr.bf16.mxu0 0
  %3585 = vmatpush1.bf16.msra.mxu0 0
  %3586 = vmatprep.subr.bf16.mxu0 0
  %3587 = vmatpush1.bf16.msra.mxu0 0
  %3588 = vmatprep.subr.bf16.mxu0 0
  %3589 = vmatpush1.bf16.msra.mxu0 0
  %3590 = vmatprep.subr.bf16.mxu0 0
  %3591 = vmatpush1.bf16.msra.mxu0 0
  %3592 = vmatprep.subr.bf16.mxu0 0
  %3593 = vmatpush1.bf16.msra.mxu0 0
  %3594 = vmatprep.subr.bf16.mxu0 0
  %3595 = vmatpush1.bf16.msra.mxu0 0
  %3596 = vmatprep.subr.bf16.mxu0 0
  %3597 = vmatpush1.bf16.msra.mxu0 0
  %3598 = vmatprep.subr.bf16.mxu0 0
  %3599 = vmatpush1.bf16.msra.mxu0 0
  %3600 = vmatprep.subr.bf16.mxu0 0
  %3601 = vmatpush1.bf16.msra.mxu0 0
  %3602 = vmatprep.mubr.bf16.mxu0 0
  %3603 = vmatmul.mubr.bf16.gmra.mrb[0].mxu0 %v3023
  %v3604 = vpop.f32.mrb[0].mxu0
  %v3605 = vadd.f32 0.0, %v3604
  %v3606 = vpop.f32.mrb[0].mxu0
  %v3607 = vadd.f32 0.0, %v3606
  %v3608 = vpop.f32.mrb[0].mxu0
  %v3609 = vadd.f32 0.0, %v3608
  %v3610 = vpop.f32.mrb[0].mxu0
  %v3611 = vadd.f32 0.0, %v3610
  %3612 = vmatprep.mubr.bf16.mxu0 0
  %3613 = vmatmul.mubr.bf16.gmra.mrb[0].mxu0 %v3026
  %v3614 = vpop.f32.mrb[0].mxu0
  %v3615 = vadd.f32 0.0, %v3614
  %v3616 = vpop.f32.mrb[0].mxu0
  %v3617 = vadd.f32 0.0, %v3616
  %v3618 = vpop.f32.mrb[0].mxu0
  %v3619 = vadd.f32 0.0, %v3618
  %v3620 = vpop.f32.mrb[0].mxu0
  %v3621 = vadd.f32 0.0, %v3620
  %3622 = vmatprep.mubr.bf16.mxu0 0
  %3623 = vmatmul.mubr.bf16.gmra.mrb[0].mxu0 %v3029
  %v3624 = vpop.f32.mrb[0].mxu0
  %v3625 = vadd.f32 0.0, %v3624
  %v3626 = vpop.f32.mrb[0].mxu0
  %v3627 = vadd.f32 0.0, %v3626
  %v3628 = vpop.f32.mrb[0].mxu0
  %v3629 = vadd.f32 0.0, %v3628
  %v3630 = vpop.f32.mrb[0].mxu0
  %v3631 = vadd.f32 0.0, %v3630
  %3632 = vmatprep.mubr.bf16.mxu0 0
  %3633 = vmatmul.mubr.bf16.gmra.mrb[0].mxu0 %v3032
  %v3634 = vpop.f32.mrb[0].mxu0
  %v3635 = vadd.f32 0.0, %v3634
  %v3636 = vpop.f32.mrb[0].mxu0
  %v3637 = vadd.f32 0.0, %v3636
  %v3638 = vpop.f32.mrb[0].mxu0
  %v3639 = vadd.f32 0.0, %v3638
  %v3640 = vpop.f32.mrb[0].mxu0
  %v3641 = vadd.f32 0.0, %v3640
  %3642 = vmatprep.mubr.bf16.mxu0 0
  %3643 = vmatmul.mubr.bf16.gmra.mrb[0].mxu0 %v3035
  %v3644 = vpop.f32.mrb[0].mxu0
  %v3645 = vadd.f32 0.0, %v3644
  %v3646 = vpop.f32.mrb[0].mxu0
  %v3647 = vadd.f32 0.0, %v3646
  %v3648 = vpop.f32.mrb[0].mxu0
  %v3649 = vadd.f32 0.0, %v3648
  %v3650 = vpop.f32.mrb[0].mxu0
  %v3651 = vadd.f32 0.0, %v3650
  %3652 = vmatprep.mubr.bf16.mxu0 0
  %3653 = vmatmul.mubr.bf16.gmra.mrb[0].mxu0 %v3038
  %v3654 = vpop.f32.mrb[0].mxu0
  %v3655 = vadd.f32 0.0, %v3654
  %v3656 = vpop.f32.mrb[0].mxu0
  %v3657 = vadd.f32 0.0, %v3656
  %v3658 = vpop.f32.mrb[0].mxu0
  %v3659 = vadd.f32 0.0, %v3658
  %v3660 = vpop.f32.mrb[0].mxu0
  %v3661 = vadd.f32 0.0, %v3660
  %3662 = vmatprep.mubr.bf16.mxu0 0
  %3663 = vmatmul.mubr.bf16.gmra.mrb[0].mxu0 %v3041
  %v3664 = vpop.f32.mrb[0].mxu0
  %v3665 = vadd.f32 0.0, %v3664
  %v3666 = vpop.f32.mrb[0].mxu0
  %v3667 = vadd.f32 0.0, %v3666
  %v3668 = vpop.f32.mrb[0].mxu0
  %v3669 = vadd.f32 0.0, %v3668
  %v3670 = vpop.f32.mrb[0].mxu0
  %v3671 = vadd.f32 0.0, %v3670
  %3672 = vdwg.mxu0
  %v3673 = vrot.slane %v3605, 6
  %v3674 = vrot.slane %v3607, 6
  %v3675 = vrot.slane %v3609, 6
  %v3676 = vrot.slane %v3611, 6
  %v3677 = vrot.slane %v3615, 6
  %v3678 = vrot.slane %v3617, 6
  %v3679 = vrot.slane %v3619, 6
  %v3680 = vrot.slane %v3621, 6
  %v3681 = vrot.slane %v3625, 6
  %v3682 = vrot.slane %v3627, 6
  %v3683 = vrot.slane %v3629, 6
  %v3684 = vrot.slane %v3631, 6
  %v3685 = vrot.slane %v3635, 6
  %v3686 = vrot.slane %v3637, 6
  %v3687 = vrot.slane %v3639, 6
  %v3688 = vrot.slane %v3641, 6
  %v3689 = vrot.slane %v3645, 6
  %v3690 = vrot.slane %v3647, 6
  %v3691 = vrot.slane %v3649, 6
  %v3692 = vrot.slane %v3651, 6
  %v3693 = vrot.slane %v3655, 6
  %v3694 = vrot.slane %v3657, 6
  %v3695 = vrot.slane %v3659, 6
  %v3696 = vrot.slane %v3661, 6
  %v3697 = vrot.slane %v3665, 6
  %v3698 = vrot.slane %v3667, 6
  %v3699 = vrot.slane %v3669, 6
  %v3700 = vrot.slane %v3671, 6
  %v3701 = vsel %vm1458, %v3697, %v3699
  %v3702 = vsel %vm1458, %v3698, %v3700
  %v3703 = vsel %vm1458, %v3695, %v3697
  %v3704 = vsel %vm1458, %v3696, %v3698
  %v3705 = vsel %vm1458, %v3693, %v3695
  %v3706 = vsel %vm1458, %v3694, %v3696
  %v3707 = vsel %vm1458, %v3691, %v3693
  %v3708 = vsel %vm1458, %v3692, %v3694
  %v3709 = vsel %vm1458, %v3689, %v3691
  %v3710 = vsel %vm1458, %v3690, %v3692
  %v3711 = vsel %vm1458, %v3687, %v3689
  %v3712 = vsel %vm1458, %v3688, %v3690
  %v3713 = vsel %vm1458, %v3685, %v3687
  %v3714 = vsel %vm1458, %v3686, %v3688
  %v3715 = vsel %vm1458, %v3683, %v3685
  %v3716 = vsel %vm1458, %v3684, %v3686
  %v3717 = vsel %vm1458, %v3681, %v3683
  %v3718 = vsel %vm1458, %v3682, %v3684
  %v3719 = vsel %vm1458, %v3679, %v3681
  %v3720 = vsel %vm1458, %v3680, %v3682
  %v3721 = vsel %vm1458, %v3677, %v3679
  %v3722 = vsel %vm1458, %v3678, %v3680
  %v3723 = vsel %vm1458, %v3675, %v3677
  %v3724 = vsel %vm1458, %v3676, %v3678
  %v3725 = vsel %vm1458, %v3673, %v3675
  %v3726 = vsel %vm1458, %v3674, %v3676
  %v3727 = vsel %vm1458, %v3699, %v3673
  %v3728 = vsel %vm1458, %v3700, %v3674
  %v3729 = vadd.f32 %v3469, %v3727
  %v3730 = vadd.f32 %v3470, %v3728
  %v3731 = vadd.f32 %v3471, %v3725
  %v3732 = vadd.f32 %v3472, %v3726
  %v3733 = vadd.f32 %v3473, %v3723
  %v3734 = vadd.f32 %v3474, %v3724
  %v3735 = vadd.f32 %v3475, %v3721
  %v3736 = vadd.f32 %v3476, %v3722
  %v3737 = vadd.f32 %v3477, %v3719
  %v3738 = vadd.f32 %v3478, %v3720
  %v3739 = vadd.f32 %v3479, %v3717
  %v3740 = vadd.f32 %v3480, %v3718
  %v3741 = vadd.f32 %v3481, %v3715
  %v3742 = vadd.f32 %v3482, %v3716
  %v3743 = vadd.f32 %v3483, %v3713
  %v3744 = vadd.f32 %v3484, %v3714
  %v3745 = vadd.f32 %v3485, %v3711
  %v3746 = vadd.f32 %v3486, %v3712
  %v3747 = vadd.f32 %v3487, %v3709
  %v3748 = vadd.f32 %v3488, %v3710
  %v3749 = vadd.f32 %v3489, %v3707
  %v3750 = vadd.f32 %v3490, %v3708
  %v3751 = vadd.f32 %v3491, %v3705
  %v3752 = vadd.f32 %v3492, %v3706
  %v3753 = vadd.f32 %v3493, %v3703
  %v3754 = vadd.f32 %v3494, %v3704
  %v3755 = vadd.f32 %v3495, %v3701
  %v3756 = vadd.f32 %v3496, %v3702
  %s3757 = scalar_lea.vmem %s5, 264
  %v3758 = vld [vmem:[%s3757] sm:$0xff]
  %v3759 = vld [vmem:[%s3757 + $0x8] sm:$0xff]
  %v3760 = vld [vmem:[%s3757 + $0x10] sm:$0xff]
  %v3761 = vld [vmem:[%s3757 + $0x18] sm:$0xff]
  %v3762 = vld [vmem:[%s3757 + $0x20] sm:$0xff]
  %v3763 = vld [vmem:[%s3757 + $0x28] sm:$0xff]
  %v3764 = vld [vmem:[%s3757 + $0x30] sm:$0xff]
  %v3765 = vld [vmem:[%s3757 + $0x38] sm:$0xff]
  %v3766 = vld [vmem:[%s3757 + $0x40] sm:$0xff]
  %v3767 = vld [vmem:[%s3757 + $0x48] sm:$0xff]
  %v3768 = vld [vmem:[%s3757 + $0x50] sm:$0x33]
  %v3780 = vunpack.c.l.b16 %v3758
  %v3781 = vunpack.c.h.b16 %v3758
  %v3782 = vunpack.c.l.b16 %v3759
  %v3783 = vunpack.c.h.b16 %v3759
  %v3784 = vunpack.c.l.b16 %v3760
  %v3785 = vunpack.c.h.b16 %v3760
  %v3786 = vunpack.c.l.b16 %v3761
  %v3787 = vunpack.c.h.b16 %v3761
  %v3788 = vunpack.c.l.b16 %v3762
  %v3789 = vunpack.c.h.b16 %v3762
  %v3790 = vunpack.c.l.b16 %v3763
  %v3791 = vunpack.c.h.b16 %v3763
  %v3792 = vunpack.c.l.b16 %v3764
  %v3793 = vunpack.c.h.b16 %v3764
  %v3794 = vunpack.c.l.b16 %v3765
  %v3795 = vunpack.c.h.b16 %v3765
  %v3796 = vunpack.c.l.b16 %v3766
  %v3797 = vunpack.c.h.b16 %v3766
  %v3798 = vunpack.c.l.b16 %v3767
  %v3799 = vunpack.c.h.b16 %v3767
  %v3800 = vunpack.c.l.b16 %v3768
  %v3801 = vunpack.c.h.b16 %v3768
  %v3802 = vpack.c.b16 %v3782, %v3780
  %v3803 = vpack.c.b16 %v3783, %v3781
  %v3804 = vpack.c.b16 %v3786, %v3784
  %v3805 = vpack.c.b16 %v3787, %v3785
  %v3806 = vpack.c.b16 %v3790, %v3788
  %v3807 = vpack.c.b16 %v3791, %v3789
  %v3808 = vpack.c.b16 %v3794, %v3792
  %v3809 = vpack.c.b16 %v3795, %v3793
  %v3810 = vpack.c.b16 %v3798, %v3796
  %v3811 = vpack.c.b16 %v3799, %v3797
  %v3812 = vpack.c.b16 %v3800, %v3800
  %v3813 = vpack.c.b16 %v3801, %v3801
  %v3825 = vsel %vm3043, %v3812, 0
  %v3828 = vsel %vm3043, %v3813, 0
  %3830 = vmatprep.subr.bf16.mxu0 %v3803
  %3831 = vmatpush1.bf16.msra.mxu0 %v3802
  %3832 = vmatprep.subr.bf16.mxu0 %v3805
  %3833 = vmatpush1.bf16.msra.mxu0 %v3804
  %3834 = vmatprep.subr.bf16.mxu0 %v3807
  %3835 = vmatpush1.bf16.msra.mxu0 %v3806
  %3836 = vmatprep.subr.bf16.mxu0 %v3809
  %3837 = vmatpush1.bf16.msra.mxu0 %v3808
  %3838 = vmatprep.subr.bf16.mxu0 %v3811
  %3839 = vmatpush1.bf16.msra.mxu0 %v3810
  %3840 = vmatprep.subr.bf16.mxu0 %v3828
  %3841 = vmatpush1.bf16.msra.mxu0 %v3825
  %3842 = vmatprep.subr.bf16.mxu0 0
  %3843 = vmatpush1.bf16.msra.mxu0 0
  %3844 = vmatprep.subr.bf16.mxu0 0
  %3845 = vmatpush1.bf16.msra.mxu0 0
  %3846 = vmatprep.subr.bf16.mxu0 0
  %3847 = vmatpush1.bf16.msra.mxu0 0
  %3848 = vmatprep.subr.bf16.mxu0 0
  %3849 = vmatpush1.bf16.msra.mxu0 0
  %3850 = vmatprep.subr.bf16.mxu0 0
  %3851 = vmatpush1.bf16.msra.mxu0 0
  %3852 = vmatprep.subr.bf16.mxu0 0
  %3853 = vmatpush1.bf16.msra.mxu0 0
  %3854 = vmatprep.subr.bf16.mxu0 0
  %3855 = vmatpush1.bf16.msra.mxu0 0
  %3856 = vmatprep.subr.bf16.mxu0 0
  %3857 = vmatpush1.bf16.msra.mxu0 0
  %3858 = vmatprep.subr.bf16.mxu0 0
  %3859 = vmatpush1.bf16.msra.mxu0 0
  %3860 = vmatprep.subr.bf16.mxu0 0
  %3861 = vmatpush1.bf16.msra.mxu0 0
  %3862 = vmatprep.mubr.bf16.mxu0 0
  %3863 = vmatmul.mubr.bf16.gmra.mrb[0].mxu0 %v3023
  %v3864 = vpop.f32.mrb[0].mxu0
  %v3865 = vadd.f32 0.0, %v3864
  %v3866 = vpop.f32.mrb[0].mxu0
  %v3867 = vadd.f32 0.0, %v3866
  %v3868 = vpop.f32.mrb[0].mxu0
  %v3869 = vadd.f32 0.0, %v3868
  %v3870 = vpop.f32.mrb[0].mxu0
  %v3871 = vadd.f32 0.0, %v3870
  %3872 = vmatprep.mubr.bf16.mxu0 0
  %3873 = vmatmul.mubr.bf16.gmra.mrb[0].mxu0 %v3026
  %v3874 = vpop.f32.mrb[0].mxu0
  %v3875 = vadd.f32 0.0, %v3874
  %v3876 = vpop.f32.mrb[0].mxu0
  %v3877 = vadd.f32 0.0, %v3876
  %v3878 = vpop.f32.mrb[0].mxu0
  %v3879 = vadd.f32 0.0, %v3878
  %v3880 = vpop.f32.mrb[0].mxu0
  %v3881 = vadd.f32 0.0, %v3880
  %3882 = vmatprep.mubr.bf16.mxu0 0
  %3883 = vmatmul.mubr.bf16.gmra.mrb[0].mxu0 %v3029
  %v3884 = vpop.f32.mrb[0].mxu0
  %v3885 = vadd.f32 0.0, %v3884
  %v3886 = vpop.f32.mrb[0].mxu0
  %v3887 = vadd.f32 0.0, %v3886
  %v3888 = vpop.f32.mrb[0].mxu0
  %v3889 = vadd.f32 0.0, %v3888
  %v3890 = vpop.f32.mrb[0].mxu0
  %v3891 = vadd.f32 0.0, %v3890
  %3892 = vmatprep.mubr.bf16.mxu0 0
  %3893 = vmatmul.mubr.bf16.gmra.mrb[0].mxu0 %v3032
  %v3894 = vpop.f32.mrb[0].mxu0
  %v3895 = vadd.f32 0.0, %v3894
  %v3896 = vpop.f32.mrb[0].mxu0
  %v3897 = vadd.f32 0.0, %v3896
  %v3898 = vpop.f32.mrb[0].mxu0
  %v3899 = vadd.f32 0.0, %v3898
  %v3900 = vpop.f32.mrb[0].mxu0
  %v3901 = vadd.f32 0.0, %v3900
  %3902 = vmatprep.mubr.bf16.mxu0 0
  %3903 = vmatmul.mubr.bf16.gmra.mrb[0].mxu0 %v3035
  %v3904 = vpop.f32.mrb[0].mxu0
  %v3905 = vadd.f32 0.0, %v3904
  %v3906 = vpop.f32.mrb[0].mxu0
  %v3907 = vadd.f32 0.0, %v3906
  %v3908 = vpop.f32.mrb[0].mxu0
  %v3909 = vadd.f32 0.0, %v3908
  %v3910 = vpop.f32.mrb[0].mxu0
  %v3911 = vadd.f32 0.0, %v3910
  %3912 = vmatprep.mubr.bf16.mxu0 0
  %3913 = vmatmul.mubr.bf16.gmra.mrb[0].mxu0 %v3038
  %v3914 = vpop.f32.mrb[0].mxu0
  %v3915 = vadd.f32 0.0, %v3914
  %v3916 = vpop.f32.mrb[0].mxu0
  %v3917 = vadd.f32 0.0, %v3916
  %v3918 = vpop.f32.mrb[0].mxu0
  %v3919 = vadd.f32 0.0, %v3918
  %v3920 = vpop.f32.mrb[0].mxu0
  %v3921 = vadd.f32 0.0, %v3920
  %3922 = vmatprep.mubr.bf16.mxu0 0
  %3923 = vmatmul.mubr.bf16.gmra.mrb[0].mxu0 %v3041
  %v3924 = vpop.f32.mrb[0].mxu0
  %v3925 = vadd.f32 0.0, %v3924
  %v3926 = vpop.f32.mrb[0].mxu0
  %v3927 = vadd.f32 0.0, %v3926
  %v3928 = vpop.f32.mrb[0].mxu0
  %v3929 = vadd.f32 0.0, %v3928
  %v3930 = vpop.f32.mrb[0].mxu0
  %v3931 = vadd.f32 0.0, %v3930
  %3932 = vdwg.mxu0
  %v3933 = vrot.slane %v3865, 7
  %v3934 = vrot.slane %v3867, 7
  %v3935 = vrot.slane %v3869, 7
  %v3936 = vrot.slane %v3871, 7
  %v3937 = vrot.slane %v3875, 7
  %v3938 = vrot.slane %v3877, 7
  %v3939 = vrot.slane %v3879, 7
  %v3940 = vrot.slane %v3881, 7
  %v3941 = vrot.slane %v3885, 7
  %v3942 = vrot.slane %v3887, 7
  %v3943 = vrot.slane %v3889, 7
  %v3944 = vrot.slane %v3891, 7
  %v3945 = vrot.slane %v3895, 7
  %v3946 = vrot.slane %v3897, 7
  %v3947 = vrot.slane %v3899, 7
  %v3948 = vrot.slane %v3901, 7
  %v3949 = vrot.slane %v3905, 7
  %v3950 = vrot.slane %v3907, 7
  %v3951 = vrot.slane %v3909, 7
  %v3952 = vrot.slane %v3911, 7
  %v3953 = vrot.slane %v3915, 7
  %v3954 = vrot.slane %v3917, 7
  %v3955 = vrot.slane %v3919, 7
  %v3956 = vrot.slane %v3921, 7
  %v3957 = vrot.slane %v3925, 7
  %v3958 = vrot.slane %v3927, 7
  %v3959 = vrot.slane %v3929, 7
  %v3960 = vrot.slane %v3931, 7
  %v3961 = vsel %vm1917, %v3957, %v3959
  %v3962 = vsel %vm1917, %v3958, %v3960
  %v3963 = vsel %vm1917, %v3955, %v3957
  %v3964 = vsel %vm1917, %v3956, %v3958
  %v3965 = vsel %vm1917, %v3953, %v3955
  %v3966 = vsel %vm1917, %v3954, %v3956
  %v3967 = vsel %vm1917, %v3951, %v3953
  %v3968 = vsel %vm1917, %v3952, %v3954
  %v3969 = vsel %vm1917, %v3949, %v3951
  %v3970 = vsel %vm1917, %v3950, %v3952
  %v3971 = vsel %vm1917, %v3947, %v3949
  %v3972 = vsel %vm1917, %v3948, %v3950
  %v3973 = vsel %vm1917, %v3945, %v3947
  %v3974 = vsel %vm1917, %v3946, %v3948
  %v3975 = vsel %vm1917, %v3943, %v3945
  %v3976 = vsel %vm1917, %v3944, %v3946
  %v3977 = vsel %vm1917, %v3941, %v3943
  %v3978 = vsel %vm1917, %v3942, %v3944
  %v3979 = vsel %vm1917, %v3939, %v3941
  %v3980 = vsel %vm1917, %v3940, %v3942
  %v3981 = vsel %vm1917, %v3937, %v3939
  %v3982 = vsel %vm1917, %v3938, %v3940
  %v3983 = vsel %vm1917, %v3935, %v3937
  %v3984 = vsel %vm1917, %v3936, %v3938
  %v3985 = vsel %vm1917, %v3933, %v3935
  %v3986 = vsel %vm1917, %v3934, %v3936
  %v3987 = vsel %vm1917, %v3959, %v3933
  %v3988 = vsel %vm1917, %v3960, %v3934
  %v3989 = vadd.f32 %v3729, %v3987
  %v3990 = vadd.f32 %v3730, %v3988
  %v3991 = vadd.f32 %v3731, %v3985
  %v3992 = vadd.f32 %v3732, %v3986
  %v3993 = vadd.f32 %v3733, %v3983
  %v3994 = vadd.f32 %v3734, %v3984
  %v3995 = vadd.f32 %v3735, %v3981
  %v3996 = vadd.f32 %v3736, %v3982
  %v3997 = vadd.f32 %v3737, %v3979
  %v3998 = vadd.f32 %v3738, %v3980
  %v3999 = vadd.f32 %v3739, %v3977
  %v4000 = vadd.f32 %v3740, %v3978
  %v4001 = vadd.f32 %v3741, %v3975
  %v4002 = vadd.f32 %v3742, %v3976
  %v4003 = vadd.f32 %v3743, %v3973
  %v4004 = vadd.f32 %v3744, %v3974
  %v4005 = vadd.f32 %v3745, %v3971
  %v4006 = vadd.f32 %v3746, %v3972
  %v4007 = vadd.f32 %v3747, %v3969
  %v4008 = vadd.f32 %v3748, %v3970
  %v4009 = vadd.f32 %v3749, %v3967
  %v4010 = vadd.f32 %v3750, %v3968
  %v4011 = vadd.f32 %v3751, %v3965
  %v4012 = vadd.f32 %v3752, %v3966
  %v4013 = vadd.f32 %v3753, %v3963
  %v4014 = vadd.f32 %v3754, %v3964
  %v4015 = vadd.f32 %v3755, %v3961
  %v4016 = vadd.f32 %v3756, %v3962
  %s4017 = scalar_lea.vmem %s5, 352
  %v4018 = vld [vmem:[%s4017] sm:$0xff]
  %v4019 = vld [vmem:[%s4017 + $0x8] sm:$0xff]
  %v4020 = vld [vmem:[%s4017 + $0x10] sm:$0xff]
  %v4021 = vld [vmem:[%s4017 + $0x18] sm:$0xff]
  %v4022 = vld [vmem:[%s4017 + $0x20] sm:$0xff]
  %v4023 = vld [vmem:[%s4017 + $0x28] sm:$0xff]
  %v4024 = vld [vmem:[%s4017 + $0x30] sm:$0xff]
  %v4025 = vld [vmem:[%s4017 + $0x38] sm:$0xff]
  %v4026 = vld [vmem:[%s4017 + $0x40] sm:$0xff]
  %v4027 = vld [vmem:[%s4017 + $0x48] sm:$0xff]
  %v4028 = vld [vmem:[%s4017 + $0x50] sm:$0x33]
  %v4040 = vunpack.c.l.b16 %v4018
  %v4041 = vunpack.c.h.b16 %v4018
  %v4042 = vunpack.c.l.b16 %v4019
  %v4043 = vunpack.c.h.b16 %v4019
  %v4044 = vunpack.c.l.b16 %v4020
  %v4045 = vunpack.c.h.b16 %v4020
  %v4046 = vunpack.c.l.b16 %v4021
  %v4047 = vunpack.c.h.b16 %v4021
  %v4048 = vunpack.c.l.b16 %v4022
  %v4049 = vunpack.c.h.b16 %v4022
  %v4050 = vunpack.c.l.b16 %v4023
  %v4051 = vunpack.c.h.b16 %v4023
  %v4052 = vunpack.c.l.b16 %v4024
  %v4053 = vunpack.c.h.b16 %v4024
  %v4054 = vunpack.c.l.b16 %v4025
  %v4055 = vunpack.c.h.b16 %v4025
  %v4056 = vunpack.c.l.b16 %v4026
  %v4057 = vunpack.c.h.b16 %v4026
  %v4058 = vunpack.c.l.b16 %v4027
  %v4059 = vunpack.c.h.b16 %v4027
  %v4060 = vunpack.c.l.b16 %v4028
  %v4061 = vunpack.c.h.b16 %v4028
  %v4062 = vpack.c.b16 %v4042, %v4040
  %v4063 = vpack.c.b16 %v4043, %v4041
  %v4064 = vpack.c.b16 %v4046, %v4044
  %v4065 = vpack.c.b16 %v4047, %v4045
  %v4066 = vpack.c.b16 %v4050, %v4048
  %v4067 = vpack.c.b16 %v4051, %v4049
  %v4068 = vpack.c.b16 %v4054, %v4052
  %v4069 = vpack.c.b16 %v4055, %v4053
  %v4070 = vpack.c.b16 %v4058, %v4056
  %v4071 = vpack.c.b16 %v4059, %v4057
  %v4072 = vpack.c.b16 %v4060, %v4060
  %v4073 = vpack.c.b16 %v4061, %v4061
  %v4085 = vsel %vm3043, %v4072, 0
  %v4088 = vsel %vm3043, %v4073, 0
  %4090 = vmatprep.subr.bf16.mxu0 %v4063
  %4091 = vmatpush1.bf16.msra.mxu0 %v4062
  %4092 = vmatprep.subr.bf16.mxu0 %v4065
  %4093 = vmatpush1.bf16.msra.mxu0 %v4064
  %4094 = vmatprep.subr.bf16.mxu0 %v4067
  %4095 = vmatpush1.bf16.msra.mxu0 %v4066
  %4096 = vmatprep.subr.bf16.mxu0 %v4069
  %4097 = vmatpush1.bf16.msra.mxu0 %v4068
  %4098 = vmatprep.subr.bf16.mxu0 %v4071
  %4099 = vmatpush1.bf16.msra.mxu0 %v4070
  %4100 = vmatprep.subr.bf16.mxu0 %v4088
  %4101 = vmatpush1.bf16.msra.mxu0 %v4085
  %4102 = vmatprep.subr.bf16.mxu0 0
  %4103 = vmatpush1.bf16.msra.mxu0 0
  %4104 = vmatprep.subr.bf16.mxu0 0
  %4105 = vmatpush1.bf16.msra.mxu0 0
  %4106 = vmatprep.subr.bf16.mxu0 0
  %4107 = vmatpush1.bf16.msra.mxu0 0
  %4108 = vmatprep.subr.bf16.mxu0 0
  %4109 = vmatpush1.bf16.msra.mxu0 0
  %4110 = vmatprep.subr.bf16.mxu0 0
  %4111 = vmatpush1.bf16.msra.mxu0 0
  %4112 = vmatprep.subr.bf16.mxu0 0
  %4113 = vmatpush1.bf16.msra.mxu0 0
  %4114 = vmatprep.subr.bf16.mxu0 0
  %4115 = vmatpush1.bf16.msra.mxu0 0
  %4116 = vmatprep.subr.bf16.mxu0 0
  %4117 = vmatpush1.bf16.msra.mxu0 0
  %4118 = vmatprep.subr.bf16.mxu0 0
  %4119 = vmatpush1.bf16.msra.mxu0 0
  %4120 = vmatprep.subr.bf16.mxu0 0
  %4121 = vmatpush1.bf16.msra.mxu0 0
  %4122 = vmatprep.mubr.bf16.mxu0 0
  %4123 = vmatmul.mubr.bf16.gmra.mrb[0].mxu0 %v3023
  %v4124 = vpop.f32.mrb[0].mxu0
  %v4125 = vadd.f32 0.0, %v4124
  %v4126 = vpop.f32.mrb[0].mxu0
  %v4127 = vadd.f32 0.0, %v4126
  %v4128 = vpop.f32.mrb[0].mxu0
  %v4129 = vadd.f32 0.0, %v4128
  %v4130 = vpop.f32.mrb[0].mxu0
  %v4131 = vadd.f32 0.0, %v4130
  %4132 = vmatprep.mubr.bf16.mxu0 0
  %4133 = vmatmul.mubr.bf16.gmra.mrb[0].mxu0 %v3026
  %v4134 = vpop.f32.mrb[0].mxu0
  %v4135 = vadd.f32 0.0, %v4134
  %v4136 = vpop.f32.mrb[0].mxu0
  %v4137 = vadd.f32 0.0, %v4136
  %v4138 = vpop.f32.mrb[0].mxu0
  %v4139 = vadd.f32 0.0, %v4138
  %v4140 = vpop.f32.mrb[0].mxu0
  %v4141 = vadd.f32 0.0, %v4140
  %4142 = vmatprep.mubr.bf16.mxu0 0
  %4143 = vmatmul.mubr.bf16.gmra.mrb[0].mxu0 %v3029
  %v4144 = vpop.f32.mrb[0].mxu0
  %v4145 = vadd.f32 0.0, %v4144
  %v4146 = vpop.f32.mrb[0].mxu0
  %v4147 = vadd.f32 0.0, %v4146
  %v4148 = vpop.f32.mrb[0].mxu0
  %v4149 = vadd.f32 0.0, %v4148
  %v4150 = vpop.f32.mrb[0].mxu0
  %v4151 = vadd.f32 0.0, %v4150
  %4152 = vmatprep.mubr.bf16.mxu0 0
  %4153 = vmatmul.mubr.bf16.gmra.mrb[0].mxu0 %v3032
  %v4154 = vpop.f32.mrb[0].mxu0
  %v4155 = vadd.f32 0.0, %v4154
  %v4156 = vpop.f32.mrb[0].mxu0
  %v4157 = vadd.f32 0.0, %v4156
  %v4158 = vpop.f32.mrb[0].mxu0
  %v4159 = vadd.f32 0.0, %v4158
  %v4160 = vpop.f32.mrb[0].mxu0
  %v4161 = vadd.f32 0.0, %v4160
  %4162 = vmatprep.mubr.bf16.mxu0 0
  %4163 = vmatmul.mubr.bf16.gmra.mrb[0].mxu0 %v3035
  %v4164 = vpop.f32.mrb[0].mxu0
  %v4165 = vadd.f32 0.0, %v4164
  %v4166 = vpop.f32.mrb[0].mxu0
  %v4167 = vadd.f32 0.0, %v4166
  %v4168 = vpop.f32.mrb[0].mxu0
  %v4169 = vadd.f32 0.0, %v4168
  %v4170 = vpop.f32.mrb[0].mxu0
  %v4171 = vadd.f32 0.0, %v4170
  %4172 = vmatprep.mubr.bf16.mxu0 0
  %4173 = vmatmul.mubr.bf16.gmra.mrb[0].mxu0 %v3038
  %v4174 = vpop.f32.mrb[0].mxu0
  %v4175 = vadd.f32 0.0, %v4174
  %v4176 = vpop.f32.mrb[0].mxu0
  %v4177 = vadd.f32 0.0, %v4176
  %v4178 = vpop.f32.mrb[0].mxu0
  %v4179 = vadd.f32 0.0, %v4178
  %v4180 = vpop.f32.mrb[0].mxu0
  %v4181 = vadd.f32 0.0, %v4180
  %4182 = vmatprep.mubr.bf16.mxu0 0
  %4183 = vmatmul.mubr.bf16.gmra.mrb[0].mxu0 %v3041
  %v4184 = vpop.f32.mrb[0].mxu0
  %v4185 = vadd.f32 0.0, %v4184
  %v4186 = vpop.f32.mrb[0].mxu0
  %v4187 = vadd.f32 0.0, %v4186
  %v4188 = vpop.f32.mrb[0].mxu0
  %v4189 = vadd.f32 0.0, %v4188
  %v4190 = vpop.f32.mrb[0].mxu0
  %v4191 = vadd.f32 0.0, %v4190
  %4192 = vdwg.mxu0
  %v4193 = vadd.f32 %v3989, %v4125
  %v4194 = vadd.f32 %v3990, %v4127
  %v4195 = vadd.f32 %v3991, %v4129
  %v4196 = vadd.f32 %v3992, %v4131
  %v4197 = vadd.f32 %v3993, %v4135
  %v4198 = vadd.f32 %v3994, %v4137
  %v4199 = vadd.f32 %v3995, %v4139
  %v4200 = vadd.f32 %v3996, %v4141
  %v4201 = vadd.f32 %v3997, %v4145
  %v4202 = vadd.f32 %v3998, %v4147
  %v4203 = vadd.f32 %v3999, %v4149
  %v4204 = vadd.f32 %v4000, %v4151
  %v4205 = vadd.f32 %v4001, %v4155
  %v4206 = vadd.f32 %v4002, %v4157
  %v4207 = vadd.f32 %v4003, %v4159
  %v4208 = vadd.f32 %v4004, %v4161
  %v4209 = vadd.f32 %v4005, %v4165
  %v4210 = vadd.f32 %v4006, %v4167
  %v4211 = vadd.f32 %v4007, %v4169
  %v4212 = vadd.f32 %v4008, %v4171
  %v4213 = vadd.f32 %v4009, %v4175
  %v4214 = vadd.f32 %v4010, %v4177
  %v4215 = vadd.f32 %v4011, %v4179
  %v4216 = vadd.f32 %v4012, %v4181
  %v4217 = vadd.f32 %v4013, %v4185
  %v4218 = vadd.f32 %v4014, %v4187
  %v4219 = vadd.f32 %v4015, %v4189
  %v4220 = vadd.f32 %v4016, %v4191
  %v4221 = vld [vmem:[%s6] sm:$0x3]
  %v4223 = vlaneseq
  %v4224 = vshrl.u32 %v4223, 7
  %v4225 = vsub.s32 0, %v4224
  %v4226 = vrot.slane %v4221, %v4225
  %v4227 = vlaneseq
  %v4228 = vshrl.u32 %v4227, 7
  %v4229 = vsub.s32 1, %v4228
  %v4230 = vrot.slane %v4221, %v4229
  %v4233 = vadd.f32 %v4193, %v4226
  %v4234 = vadd.f32 %v4194, %v4230
  %v4235 = vadd.f32 %v4195, %v4226
  %v4236 = vadd.f32 %v4196, %v4230
  %v4237 = vadd.f32 %v4197, %v4226
  %v4238 = vadd.f32 %v4198, %v4230
  %v4239 = vadd.f32 %v4199, %v4226
  %v4240 = vadd.f32 %v4200, %v4230
  %v4241 = vadd.f32 %v4201, %v4226
  %v4242 = vadd.f32 %v4202, %v4230
  %v4243 = vadd.f32 %v4203, %v4226
  %v4244 = vadd.f32 %v4204, %v4230
  %v4245 = vadd.f32 %v4205, %v4226
  %v4246 = vadd.f32 %v4206, %v4230
  %v4247 = vadd.f32 %v4207, %v4226
  %v4248 = vadd.f32 %v4208, %v4230
  %v4249 = vadd.f32 %v4209, %v4226
  %v4250 = vadd.f32 %v4210, %v4230
  %v4251 = vadd.f32 %v4211, %v4226
  %v4252 = vadd.f32 %v4212, %v4230
  %v4253 = vadd.f32 %v4213, %v4226
  %v4254 = vadd.f32 %v4214, %v4230
  %v4255 = vadd.f32 %v4215, %v4226
  %v4256 = vadd.f32 %v4216, %v4230
  %v4257 = vadd.f32 %v4217, %v4226
  %v4258 = vadd.f32 %v4218, %v4230
  %v4259 = vadd.f32 %v4219, %v4226
  %v4260 = vadd.f32 %v4220, %v4230
  %v4261 = vtanh.pop %v4233
  %v4262 = vtanh.pop %v4234
  %v4263 = vtanh.pop %v4235
  %v4264 = vtanh.pop %v4236
  %v4265 = vtanh.pop %v4237
  %v4266 = vtanh.pop %v4238
  %v4267 = vtanh.pop %v4239
  %v4268 = vtanh.pop %v4240
  %v4269 = vtanh.pop %v4241
  %v4270 = vtanh.pop %v4242
  %v4271 = vtanh.pop %v4243
  %v4272 = vtanh.pop %v4244
  %v4273 = vtanh.pop %v4245
  %v4274 = vtanh.pop %v4246
  %v4275 = vtanh.pop %v4247
  %v4276 = vtanh.pop %v4248
  %v4277 = vtanh.pop %v4249
  %v4278 = vtanh.pop %v4250
  %v4279 = vtanh.pop %v4251
  %v4280 = vtanh.pop %v4252
  %v4281 = vtanh.pop %v4253
  %v4282 = vtanh.pop %v4254
  %v4283 = vtanh.pop %v4255
  %v4284 = vtanh.pop %v4256
  %v4285 = vtanh.pop %v4257
  %v4286 = vtanh.pop %v4258
  %v4287 = vtanh.pop %v4259
  %v4288 = vtanh.pop %v4260
  %v4289 = vpack.c.bf16 %v4263, %v4261
  %v4290 = vpack.c.bf16 %v4264, %v4262
  %v4291 = vpack.c.bf16 %v4267, %v4265
  %v4292 = vpack.c.bf16 %v4268, %v4266
  %v4293 = vpack.c.bf16 %v4271, %v4269
  %v4294 = vpack.c.bf16 %v4272, %v4270
  %v4295 = vpack.c.bf16 %v4275, %v4273
  %v4296 = vpack.c.bf16 %v4276, %v4274
  %v4297 = vpack.c.bf16 %v4279, %v4277
  %v4298 = vpack.c.bf16 %v4280, %v4278
  %v4299 = vpack.c.bf16 %v4283, %v4281
  %v4300 = vpack.c.bf16 %v4284, %v4282
  %v4301 = vpack.c.bf16 %v4287, %v4285
  %v4302 = vpack.c.bf16 %v4288, %v4286
  %v4303 = vld [vmem:[%s7] sm:$0xf]
  %v4304 = vld [vmem:[%s7 + $0x4] sm:$0xf]
  %v4305 = vld [vmem:[%s7 + $0x8] sm:$0xf]
  %v4306 = vld [vmem:[%s7 + $0xc] sm:$0xf]
  %v4307 = vld [vmem:[%s7 + $0x10] sm:$0xf]
  %v4313 = vunpack.c.l.b16 %v4303
  %v4314 = vunpack.c.l.b16 %v4304
  %v4315 = vunpack.c.l.b16 %v4305
  %v4316 = vunpack.c.l.b16 %v4306
  %v4317 = vunpack.c.l.b16 %v4307
  %v4318 = vpack.c.b16 %v4314, %v4313
  %v4319 = vpack.c.b16 %v4316, %v4315
  %v4320 = vpack.c.b16 %v4317, %v4317
  %vm4321 = vcmask 916480
  %v4323 = vsel %vm4321, %v4318, 0
  %v4326 = vsel %vm4321, %v4319, 0
  %v4329 = vsel %vm4321, %v4320, 0
  %4331 = vmatprep.subr.bf16.mxu0 %v4290
  %4332 = vmatpush1.bf16.msra.mxu0 %v4289
  %4333 = vmatprep.subr.bf16.mxu0 %v4292
  %4334 = vmatpush1.bf16.msra.mxu0 %v4291
  %4335 = vmatprep.subr.bf16.mxu0 %v4294
  %4336 = vmatpush1.bf16.msra.mxu0 %v4293
  %4337 = vmatprep.subr.bf16.mxu0 %v4296
  %4338 = vmatpush1.bf16.msra.mxu0 %v4295
  %4339 = vmatprep.subr.bf16.mxu0 %v4298
  %4340 = vmatpush1.bf16.msra.mxu0 %v4297
  %4341 = vmatprep.subr.bf16.mxu0 %v4300
  %4342 = vmatpush1.bf16.msra.mxu0 %v4299
  %4343 = vmatprep.subr.bf16.mxu0 %v4302
  %4344 = vmatpush1.bf16.msra.mxu0 %v4301
  %4345 = vmatprep.subr.bf16.mxu0 0
  %4346 = vmatpush1.bf16.msra.mxu0 0
  %4347 = vmatprep.subr.bf16.mxu0 0
  %4348 = vmatpush1.bf16.msra.mxu0 0
  %4349 = vmatprep.subr.bf16.mxu0 0
  %4350 = vmatpush1.bf16.msra.mxu0 0
  %4351 = vmatprep.subr.bf16.mxu0 0
  %4352 = vmatpush1.bf16.msra.mxu0 0
  %4353 = vmatprep.subr.bf16.mxu0 0
  %4354 = vmatpush1.bf16.msra.mxu0 0
  %4355 = vmatprep.subr.bf16.mxu0 0
  %4356 = vmatpush1.bf16.msra.mxu0 0
  %4357 = vmatprep.subr.bf16.mxu0 0
  %4358 = vmatpush1.bf16.msra.mxu0 0
  %4359 = vmatprep.subr.bf16.mxu0 0
  %4360 = vmatpush1.bf16.msra.mxu0 0
  %4361 = vmatprep.subr.bf16.mxu0 0
  %4362 = vmatpush1.bf16.msra.mxu0 0
  %4363 = vmatprep.mubr.bf16.mxu0 0
  %4364 = vmatmul.mubr.bf16.gmra.mrb[0].mxu0 %v4323
  %v4365 = vpop.f32.mrb[0].mxu0
  %v4366 = vadd.f32 0.0, %v4365
  %v4367 = vpop.f32.mrb[0].mxu0
  %v4368 = vadd.f32 0.0, %v4367
  %v4369 = vpop.f32.mrb[0].mxu0
  %v4370 = vadd.f32 0.0, %v4369
  %v4371 = vpop.f32.mrb[0].mxu0
  %v4372 = vadd.f32 0.0, %v4371
  %4373 = vmatprep.mubr.bf16.mxu0 0
  %4374 = vmatmul.mubr.bf16.gmra.mrb[0].mxu0 %v4326
  %v4375 = vpop.f32.mrb[0].mxu0
  %v4376 = vadd.f32 0.0, %v4375
  %v4377 = vpop.f32.mrb[0].mxu0
  %v4378 = vadd.f32 0.0, %v4377
  %v4379 = vpop.f32.mrb[0].mxu0
  %v4380 = vadd.f32 0.0, %v4379
  %v4381 = vpop.f32.mrb[0].mxu0
  %v4382 = vadd.f32 0.0, %v4381
  %4383 = vmatprep.mubr.bf16.mxu0 0
  %4384 = vmatmul.mubr.bf16.gmra.mrb[0].mxu0 %v4329
  %v4385 = vpop.f32.mrb[0].mxu0
  %v4386 = vadd.f32 0.0, %v4385
  %v4387 = vpop.f32.mrb[0].mxu0
  %v4388 = vadd.f32 0.0, %v4387
  %v4389 = vpop.f32.mrb[0].mxu0
  %v4390 = vpop.f32.mrb[0].mxu0
  %4391 = vdwg.mxu0
  %v4392 = vld [vmem:[%s9] sm:$0x1]
  %v4393 = vld [vmem:[%s8] sm:$0xff]
  %v4394 = vld [vmem:[%s8 + $0x8] sm:$0xff]
  %v4395 = vld [vmem:[%s8 + $0x10] sm:$0xff]
  %v4396 = vld [vmem:[%s8 + $0x18] sm:$0xff]
  %v4397 = vld [vmem:[%s8 + $0x20] sm:$0xff]
  %v4398 = vld [vmem:[%s8 + $0x28] sm:$0xff]
  %v4399 = vld [vmem:[%s8 + $0x30] sm:$0xff]
  %v4400 = vld [vmem:[%s8 + $0x38] sm:$0xff]
  %v4401 = vld [vmem:[%s8 + $0x40] sm:$0xff]
  %v4402 = vld [vmem:[%s8 + $0x48] sm:$0xff]
  %v4403 = vld [vmem:[%s8 + $0x50] sm:$0xff]
  %v4404 = vld [vmem:[%s8 + $0x58] sm:$0xff]
  %v4405 = vld [vmem:[%s8 + $0x60] sm:$0xff]
  %v4406 = vld [vmem:[%s8 + $0x68] sm:$0xff]
  %v4407 = vld [vmem:[%s8 + $0x70] sm:$0xff]
  %v4408 = vld [vmem:[%s8 + $0x78] sm:$0xff]
  %v4409 = vld [vmem:[%s8 + $0x80] sm:$0xff]
  %v4410 = vld [vmem:[%s8 + $0x88] sm:$0xff]
  %v4411 = vld [vmem:[%s8 + $0x90] sm:$0xff]
  %v4412 = vld [vmem:[%s8 + $0x98] sm:$0xff]
  %vm4413 = vcmask 261120
  %v4415 = vsel %vm4413, %v4368, 0
  %4417 = vmatprep.subr.mxu0 0.0
  %4418 = vmatpush1.msra.mxu0 %v4393
  %4419 = vmatprep.subr.mxu0 0.0
  %4420 = vmatpush1.msra.mxu0 %v4394
  %4421 = vmatprep.subr.mxu0 0.0
  %4422 = vmatpush1.msra.mxu0 %v4395
  %4423 = vmatprep.subr.mxu0 0.0
  %4424 = vmatpush1.msra.mxu0 %v4396
  %4425 = vmatprep.subr.mxu0 0.0
  %4426 = vmatpush1.msra.mxu0 %v4397
  %4427 = vmatprep.subr.mxu0 0.0
  %4428 = vmatpush1.msra.mxu0 %v4398
  %4429 = vmatprep.subr.mxu0 0.0
  %4430 = vmatpush1.msra.mxu0 %v4399
  %4431 = vmatprep.subr.mxu0 0.0
  %4432 = vmatpush1.msra.mxu0 %v4400
  %4433 = vmatprep.subr.mxu0 0.0
  %4434 = vmatpush1.msra.mxu0 %v4401
  %4435 = vmatprep.subr.mxu0 0.0
  %4436 = vmatpush1.msra.mxu0 %v4402
  %4437 = vmatprep.subr.mxu0 0.0
  %4438 = vmatpush1.msra.mxu0 %v4403
  %4439 = vmatprep.subr.mxu0 0.0
  %4440 = vmatpush1.msra.mxu0 %v4404
  %4441 = vmatprep.subr.mxu0 0.0
  %4442 = vmatpush1.msra.mxu0 %v4405
  %4443 = vmatprep.subr.mxu0 0.0
  %4444 = vmatpush1.msra.mxu0 %v4406
  %4445 = vmatprep.subr.mxu0 0.0
  %4446 = vmatpush1.msra.mxu0 %v4407
  %4447 = vmatprep.subr.mxu0 0.0
  %4448 = vmatpush1.msra.mxu0 %v4408
  %4449 = vmatprep.subr.mxu0 0.0
  %4450 = vmatpush1.msra.mxu0 %v4409
  %4451 = vmatprep.subr.mxu0 0.0
  %4452 = vmatpush1.msra.mxu0 %v4410
  %4453 = vmatprep.subr.mxu0 0.0
  %4454 = vmatpush1.msra.mxu0 %v4411
  %4455 = vmatprep.subr.mxu0 0.0
  %4456 = vmatpush1.msra.mxu0 %v4412
  %4457 = vmatprep.subr.mxu0 0.0
  %4458 = vmatpush1.msra.mxu0 0.0
  %4459 = vmatprep.subr.mxu0 0.0
  %4460 = vmatpush1.msra.mxu0 0.0
  %4461 = vmatprep.subr.mxu0 0.0
  %4462 = vmatpush1.msra.mxu0 0.0
  %4463 = vmatprep.subr.mxu0 0.0
  %4464 = vmatpush1.msra.mxu0 0.0
  %4465 = vmatprep.subr.mxu0 0.0
  %4466 = vmatpush1.msra.mxu0 0.0
  %4467 = vmatprep.subr.mxu0 0.0
  %4468 = vmatpush1.msra.mxu0 0.0
  %4469 = vmatprep.subr.mxu0 0.0
  %4470 = vmatpush1.msra.mxu0 0.0
  %4471 = vmatprep.subr.mxu0 0.0
  %4472 = vmatpush1.msra.mxu0 0.0
  %4473 = vmatprep.subr.mxu0 0.0
  %4474 = vmatpush1.msra.mxu0 0.0
  %4475 = vmatprep.subr.mxu0 0.0
  %4476 = vmatpush1.msra.mxu0 0.0
  %4477 = vmatprep.subr.mxu0 0.0
  %4478 = vmatpush1.msra.mxu0 0.0
  %4479 = vmatprep.subr.mxu0 0.0
  %4480 = vmatpush1.msra.mxu0 0.0
  %4481 = vmatprep.mubr.f32.mxu0 %v4415
  %4482 = vmatmul.mubr.f32.gmra.mrb[0].mxu0 %v4366
  %v4483 = vpop.f32.mrb[0].mxu0
  %v4484 = vadd.f32 0.0, %v4483
  %v4485 = vpop.f32.mrb[0].mxu0
  %4486 = vdwg.mxu0
  %v4488 = vlaneseq
  %v4489 = vshrl.u32 %v4488, 7
  %v4490 = vsub.s32 0, %v4489
  %v4491 = vrot.slane %v4392, %v4490
  %v4493 = vadd.f32 %v4491, %v4484
  %s4494 = scalar_lea.vmem %s8, 160
  %v4495 = vld [vmem:[%s4494] sm:$0xff]
  %v4496 = vld [vmem:[%s4494 + $0x8] sm:$0xff]
  %v4497 = vld [vmem:[%s4494 + $0x10] sm:$0xff]
  %v4498 = vld [vmem:[%s4494 + $0x18] sm:$0xff]
  %v4499 = vld [vmem:[%s4494 + $0x20] sm:$0xff]
  %v4500 = vld [vmem:[%s4494 + $0x28] sm:$0xff]
  %v4501 = vld [vmem:[%s4494 + $0x30] sm:$0xff]
  %v4502 = vld [vmem:[%s4494 + $0x38] sm:$0xff]
  %v4503 = vld [vmem:[%s4494 + $0x40] sm:$0xff]
  %v4504 = vld [vmem:[%s4494 + $0x48] sm:$0xff]
  %v4505 = vld [vmem:[%s4494 + $0x50] sm:$0xff]
  %v4506 = vld [vmem:[%s4494 + $0x58] sm:$0xff]
  %v4507 = vld [vmem:[%s4494 + $0x60] sm:$0xff]
  %v4508 = vld [vmem:[%s4494 + $0x68] sm:$0xff]
  %v4509 = vld [vmem:[%s4494 + $0x70] sm:$0xff]
  %v4510 = vld [vmem:[%s4494 + $0x78] sm:$0xff]
  %v4511 = vld [vmem:[%s4494 + $0x80] sm:$0xff]
  %v4512 = vld [vmem:[%s4494 + $0x88] sm:$0xff]
  %v4513 = vld [vmem:[%s4494 + $0x90] sm:$0xff]
  %v4514 = vld [vmem:[%s4494 + $0x98] sm:$0xff]
  %v4516 = vsel %vm4413, %v4372, 0
  %4518 = vmatprep.subr.mxu0 0.0
  %4519 = vmatpush1.msra.mxu0 %v4495
  %4520 = vmatprep.subr.mxu0 0.0
  %4521 = vmatpush1.msra.mxu0 %v4496
  %4522 = vmatprep.subr.mxu0 0.0
  %4523 = vmatpush1.msra.mxu0 %v4497
  %4524 = vmatprep.subr.mxu0 0.0
  %4525 = vmatpush1.msra.mxu0 %v4498
  %4526 = vmatprep.subr.mxu0 0.0
  %4527 = vmatpush1.msra.mxu0 %v4499
  %4528 = vmatprep.subr.mxu0 0.0
  %4529 = vmatpush1.msra.mxu0 %v4500
  %4530 = vmatprep.subr.mxu0 0.0
  %4531 = vmatpush1.msra.mxu0 %v4501
  %4532 = vmatprep.subr.mxu0 0.0
  %4533 = vmatpush1.msra.mxu0 %v4502
  %4534 = vmatprep.subr.mxu0 0.0
  %4535 = vmatpush1.msra.mxu0 %v4503
  %4536 = vmatprep.subr.mxu0 0.0
  %4537 = vmatpush1.msra.mxu0 %v4504
  %4538 = vmatprep.subr.mxu0 0.0
  %4539 = vmatpush1.msra.mxu0 %v4505
  %4540 = vmatprep.subr.mxu0 0.0
  %4541 = vmatpush1.msra.mxu0 %v4506
  %4542 = vmatprep.subr.mxu0 0.0
  %4543 = vmatpush1.msra.mxu0 %v4507
  %4544 = vmatprep.subr.mxu0 0.0
  %4545 = vmatpush1.msra.mxu0 %v4508
  %4546 = vmatprep.subr.mxu0 0.0
  %4547 = vmatpush1.msra.mxu0 %v4509
  %4548 = vmatprep.subr.mxu0 0.0
  %4549 = vmatpush1.msra.mxu0 %v4510
  %4550 = vmatprep.subr.mxu0 0.0
  %4551 = vmatpush1.msra.mxu0 %v4511
  %4552 = vmatprep.subr.mxu0 0.0
  %4553 = vmatpush1.msra.mxu0 %v4512
  %4554 = vmatprep.subr.mxu0 0.0
  %4555 = vmatpush1.msra.mxu0 %v4513
  %4556 = vmatprep.subr.mxu0 0.0
  %4557 = vmatpush1.msra.mxu0 %v4514
  %4558 = vmatprep.subr.mxu0 0.0
  %4559 = vmatpush1.msra.mxu0 0.0
  %4560 = vmatprep.subr.mxu0 0.0
  %4561 = vmatpush1.msra.mxu0 0.0
  %4562 = vmatprep.subr.mxu0 0.0
  %4563 = vmatpush1.msra.mxu0 0.0
  %4564 = vmatprep.subr.mxu0 0.0
  %4565 = vmatpush1.msra.mxu0 0.0
  %4566 = vmatprep.subr.mxu0 0.0
  %4567 = vmatpush1.msra.mxu0 0.0
  %4568 = vmatprep.subr.mxu0 0.0
  %4569 = vmatpush1.msra.mxu0 0.0
  %4570 = vmatprep.subr.mxu0 0.0
  %4571 = vmatpush1.msra.mxu0 0.0
  %4572 = vmatprep.subr.mxu0 0.0
  %4573 = vmatpush1.msra.mxu0 0.0
  %4574 = vmatprep.subr.mxu0 0.0
  %4575 = vmatpush1.msra.mxu0 0.0
  %4576 = vmatprep.subr.mxu0 0.0
  %4577 = vmatpush1.msra.mxu0 0.0
  %4578 = vmatprep.subr.mxu0 0.0
  %4579 = vmatpush1.msra.mxu0 0.0
  %4580 = vmatprep.subr.mxu0 0.0
  %4581 = vmatpush1.msra.mxu0 0.0
  %4582 = vmatprep.mubr.f32.mxu0 %v4516
  %4583 = vmatmul.mubr.f32.gmra.mrb[0].mxu0 %v4370
  %v4584 = vpop.f32.mrb[0].mxu0
  %v4585 = vadd.f32 0.0, %v4584
  %v4586 = vpop.f32.mrb[0].mxu0
  %4587 = vdwg.mxu0
  %v4588 = vadd.f32 %v4493, %v4585
  %s4589 = scalar_lea.vmem %s8, 320
  %v4590 = vld [vmem:[%s4589] sm:$0xff]
  %v4591 = vld [vmem:[%s4589 + $0x8] sm:$0xff]
  %v4592 = vld [vmem:[%s4589 + $0x10] sm:$0xff]
  %v4593 = vld [vmem:[%s4589 + $0x18] sm:$0xff]
  %v4594 = vld [vmem:[%s4589 + $0x20] sm:$0xff]
  %v4595 = vld [vmem:[%s4589 + $0x28] sm:$0xff]
  %v4596 = vld [vmem:[%s4589 + $0x30] sm:$0xff]
  %v4597 = vld [vmem:[%s4589 + $0x38] sm:$0xff]
  %v4598 = vld [vmem:[%s4589 + $0x40] sm:$0xff]
  %v4599 = vld [vmem:[%s4589 + $0x48] sm:$0xff]
  %v4600 = vld [vmem:[%s4589 + $0x50] sm:$0xff]
  %v4601 = vld [vmem:[%s4589 + $0x58] sm:$0xff]
  %v4602 = vld [vmem:[%s4589 + $0x60] sm:$0xff]
  %v4603 = vld [vmem:[%s4589 + $0x68] sm:$0xff]
  %v4604 = vld [vmem:[%s4589 + $0x70] sm:$0xff]
  %v4605 = vld [vmem:[%s4589 + $0x78] sm:$0xff]
  %v4606 = vld [vmem:[%s4589 + $0x80] sm:$0xff]
  %v4607 = vld [vmem:[%s4589 + $0x88] sm:$0xff]
  %v4608 = vld [vmem:[%s4589 + $0x90] sm:$0xff]
  %v4609 = vld [vmem:[%s4589 + $0x98] sm:$0xff]
  %v4611 = vsel %vm4413, %v4378, 0
  %4613 = vmatprep.subr.mxu0 0.0
  %4614 = vmatpush1.msra.mxu0 %v4590
  %4615 = vmatprep.subr.mxu0 0.0
  %4616 = vmatpush1.msra.mxu0 %v4591
  %4617 = vmatprep.subr.mxu0 0.0
  %4618 = vmatpush1.msra.mxu0 %v4592
  %4619 = vmatprep.subr.mxu0 0.0
  %4620 = vmatpush1.msra.mxu0 %v4593
  %4621 = vmatprep.subr.mxu0 0.0
  %4622 = vmatpush1.msra.mxu0 %v4594
  %4623 = vmatprep.subr.mxu0 0.0
  %4624 = vmatpush1.msra.mxu0 %v4595
  %4625 = vmatprep.subr.mxu0 0.0
  %4626 = vmatpush1.msra.mxu0 %v4596
  %4627 = vmatprep.subr.mxu0 0.0
  %4628 = vmatpush1.msra.mxu0 %v4597
  %4629 = vmatprep.subr.mxu0 0.0
  %4630 = vmatpush1.msra.mxu0 %v4598
  %4631 = vmatprep.subr.mxu0 0.0
  %4632 = vmatpush1.msra.mxu0 %v4599
  %4633 = vmatprep.subr.mxu0 0.0
  %4634 = vmatpush1.msra.mxu0 %v4600
  %4635 = vmatprep.subr.mxu0 0.0
  %4636 = vmatpush1.msra.mxu0 %v4601
  %4637 = vmatprep.subr.mxu0 0.0
  %4638 = vmatpush1.msra.mxu0 %v4602
  %4639 = vmatprep.subr.mxu0 0.0
  %4640 = vmatpush1.msra.mxu0 %v4603
  %4641 = vmatprep.subr.mxu0 0.0
  %4642 = vmatpush1.msra.mxu0 %v4604
  %4643 = vmatprep.subr.mxu0 0.0
  %4644 = vmatpush1.msra.mxu0 %v4605
  %4645 = vmatprep.subr.mxu0 0.0
  %4646 = vmatpush1.msra.mxu0 %v4606
  %4647 = vmatprep.subr.mxu0 0.0
  %4648 = vmatpush1.msra.mxu0 %v4607
  %4649 = vmatprep.subr.mxu0 0.0
  %4650 = vmatpush1.msra.mxu0 %v4608
  %4651 = vmatprep.subr.mxu0 0.0
  %4652 = vmatpush1.msra.mxu0 %v4609
  %4653 = vmatprep.subr.mxu0 0.0
  %4654 = vmatpush1.msra.mxu0 0.0
  %4655 = vmatprep.subr.mxu0 0.0
  %4656 = vmatpush1.msra.mxu0 0.0
  %4657 = vmatprep.subr.mxu0 0.0
  %4658 = vmatpush1.msra.mxu0 0.0
  %4659 = vmatprep.subr.mxu0 0.0
  %4660 = vmatpush1.msra.mxu0 0.0
  %4661 = vmatprep.subr.mxu0 0.0
  %4662 = vmatpush1.msra.mxu0 0.0
  %4663 = vmatprep.subr.mxu0 0.0
  %4664 = vmatpush1.msra.mxu0 0.0
  %4665 = vmatprep.subr.mxu0 0.0
  %4666 = vmatpush1.msra.mxu0 0.0
  %4667 = vmatprep.subr.mxu0 0.0
  %4668 = vmatpush1.msra.mxu0 0.0
  %4669 = vmatprep.subr.mxu0 0.0
  %4670 = vmatpush1.msra.mxu0 0.0
  %4671 = vmatprep.subr.mxu0 0.0
  %4672 = vmatpush1.msra.mxu0 0.0
  %4673 = vmatprep.subr.mxu0 0.0
  %4674 = vmatpush1.msra.mxu0 0.0
  %4675 = vmatprep.subr.mxu0 0.0
  %4676 = vmatpush1.msra.mxu0 0.0
  %4677 = vmatprep.mubr.f32.mxu0 %v4611
  %4678 = vmatmul.mubr.f32.gmra.mrb[0].mxu0 %v4376
  %v4679 = vpop.f32.mrb[0].mxu0
  %v4680 = vadd.f32 0.0, %v4679
  %v4681 = vpop.f32.mrb[0].mxu0
  %4682 = vdwg.mxu0
  %v4683 = vadd.f32 %v4588, %v4680
  %s4684 = scalar_lea.vmem %s8, 480
  %v4685 = vld [vmem:[%s4684] sm:$0xff]
  %v4686 = vld [vmem:[%s4684 + $0x8] sm:$0xff]
  %v4687 = vld [vmem:[%s4684 + $0x10] sm:$0xff]
  %v4688 = vld [vmem:[%s4684 + $0x18] sm:$0xff]
  %v4689 = vld [vmem:[%s4684 + $0x20] sm:$0xff]
  %v4690 = vld [vmem:[%s4684 + $0x28] sm:$0xff]
  %v4691 = vld [vmem:[%s4684 + $0x30] sm:$0xff]
  %v4692 = vld [vmem:[%s4684 + $0x38] sm:$0xff]
  %v4693 = vld [vmem:[%s4684 + $0x40] sm:$0xff]
  %v4694 = vld [vmem:[%s4684 + $0x48] sm:$0xff]
  %v4695 = vld [vmem:[%s4684 + $0x50] sm:$0xff]
  %v4696 = vld [vmem:[%s4684 + $0x58] sm:$0xff]
  %v4697 = vld [vmem:[%s4684 + $0x60] sm:$0xff]
  %v4698 = vld [vmem:[%s4684 + $0x68] sm:$0xff]
  %v4699 = vld [vmem:[%s4684 + $0x70] sm:$0xff]
  %v4700 = vld [vmem:[%s4684 + $0x78] sm:$0xff]
  %v4701 = vld [vmem:[%s4684 + $0x80] sm:$0xff]
  %v4702 = vld [vmem:[%s4684 + $0x88] sm:$0xff]
  %v4703 = vld [vmem:[%s4684 + $0x90] sm:$0xff]
  %v4704 = vld [vmem:[%s4684 + $0x98] sm:$0xff]
  %v4706 = vsel %vm4413, %v4382, 0
  %4708 = vmatprep.subr.mxu0 0.0
  %4709 = vmatpush1.msra.mxu0 %v4685
  %4710 = vmatprep.subr.mxu0 0.0
  %4711 = vmatpush1.msra.mxu0 %v4686
  %4712 = vmatprep.subr.mxu0 0.0
  %4713 = vmatpush1.msra.mxu0 %v4687
  %4714 = vmatprep.subr.mxu0 0.0
  %4715 = vmatpush1.msra.mxu0 %v4688
  %4716 = vmatprep.subr.mxu0 0.0
  %4717 = vmatpush1.msra.mxu0 %v4689
  %4718 = vmatprep.subr.mxu0 0.0
  %4719 = vmatpush1.msra.mxu0 %v4690
  %4720 = vmatprep.subr.mxu0 0.0
  %4721 = vmatpush1.msra.mxu0 %v4691
  %4722 = vmatprep.subr.mxu0 0.0
  %4723 = vmatpush1.msra.mxu0 %v4692
  %4724 = vmatprep.subr.mxu0 0.0
  %4725 = vmatpush1.msra.mxu0 %v4693
  %4726 = vmatprep.subr.mxu0 0.0
  %4727 = vmatpush1.msra.mxu0 %v4694
  %4728 = vmatprep.subr.mxu0 0.0
  %4729 = vmatpush1.msra.mxu0 %v4695
  %4730 = vmatprep.subr.mxu0 0.0
  %4731 = vmatpush1.msra.mxu0 %v4696
  %4732 = vmatprep.subr.mxu0 0.0
  %4733 = vmatpush1.msra.mxu0 %v4697
  %4734 = vmatprep.subr.mxu0 0.0
  %4735 = vmatpush1.msra.mxu0 %v4698
  %4736 = vmatprep.subr.mxu0 0.0
  %4737 = vmatpush1.msra.mxu0 %v4699
  %4738 = vmatprep.subr.mxu0 0.0
  %4739 = vmatpush1.msra.mxu0 %v4700
  %4740 = vmatprep.subr.mxu0 0.0
  %4741 = vmatpush1.msra.mxu0 %v4701
  %4742 = vmatprep.subr.mxu0 0.0
  %4743 = vmatpush1.msra.mxu0 %v4702
  %4744 = vmatprep.subr.mxu0 0.0
  %4745 = vmatpush1.msra.mxu0 %v4703
  %4746 = vmatprep.subr.mxu0 0.0
  %4747 = vmatpush1.msra.mxu0 %v4704
  %4748 = vmatprep.subr.mxu0 0.0
  %4749 = vmatpush1.msra.mxu0 0.0
  %4750 = vmatprep.subr.mxu0 0.0
  %4751 = vmatpush1.msra.mxu0 0.0
  %4752 = vmatprep.subr.mxu0 0.0
  %4753 = vmatpush1.msra.mxu0 0.0
  %4754 = vmatprep.subr.mxu0 0.0
  %4755 = vmatpush1.msra.mxu0 0.0
  %4756 = vmatprep.subr.mxu0 0.0
  %4757 = vmatpush1.msra.mxu0 0.0
  %4758 = vmatprep.subr.mxu0 0.0
  %4759 = vmatpush1.msra.mxu0 0.0
  %4760 = vmatprep.subr.mxu0 0.0
  %4761 = vmatpush1.msra.mxu0 0.0
  %4762 = vmatprep.subr.mxu0 0.0
  %4763 = vmatpush1.msra.mxu0 0.0
  %4764 = vmatprep.subr.mxu0 0.0
  %4765 = vmatpush1.msra.mxu0 0.0
  %4766 = vmatprep.subr.mxu0 0.0
  %4767 = vmatpush1.msra.mxu0 0.0
  %4768 = vmatprep.subr.mxu0 0.0
  %4769 = vmatpush1.msra.mxu0 0.0
  %4770 = vmatprep.subr.mxu0 0.0
  %4771 = vmatpush1.msra.mxu0 0.0
  %4772 = vmatprep.mubr.f32.mxu0 %v4706
  %4773 = vmatmul.mubr.f32.gmra.mrb[0].mxu0 %v4380
  %v4774 = vpop.f32.mrb[0].mxu0
  %v4775 = vadd.f32 0.0, %v4774
  %v4776 = vpop.f32.mrb[0].mxu0
  %4777 = vdwg.mxu0
  %v4778 = vadd.f32 %v4683, %v4775
  %s4779 = scalar_lea.vmem %s8, 640
  %v4780 = vld [vmem:[%s4779] sm:$0xff]
  %v4781 = vld [vmem:[%s4779 + $0x8] sm:$0xff]
  %v4782 = vld [vmem:[%s4779 + $0x10] sm:$0xff]
  %v4783 = vld [vmem:[%s4779 + $0x18] sm:$0xff]
  %v4784 = vld [vmem:[%s4779 + $0x20] sm:$0xff]
  %v4785 = vld [vmem:[%s4779 + $0x28] sm:$0xff]
  %v4786 = vld [vmem:[%s4779 + $0x30] sm:$0xff]
  %v4787 = vld [vmem:[%s4779 + $0x38] sm:$0xff]
  %v4788 = vld [vmem:[%s4779 + $0x40] sm:$0xff]
  %v4789 = vld [vmem:[%s4779 + $0x48] sm:$0xff]
  %v4790 = vld [vmem:[%s4779 + $0x50] sm:$0xff]
  %v4791 = vld [vmem:[%s4779 + $0x58] sm:$0xff]
  %v4792 = vld [vmem:[%s4779 + $0x60] sm:$0xff]
  %v4793 = vld [vmem:[%s4779 + $0x68] sm:$0xff]
  %v4794 = vld [vmem:[%s4779 + $0x70] sm:$0xff]
  %v4795 = vld [vmem:[%s4779 + $0x78] sm:$0xff]
  %v4796 = vld [vmem:[%s4779 + $0x80] sm:$0xff]
  %v4797 = vld [vmem:[%s4779 + $0x88] sm:$0xff]
  %v4798 = vld [vmem:[%s4779 + $0x90] sm:$0xff]
  %v4799 = vld [vmem:[%s4779 + $0x98] sm:$0xff]
  %v4801 = vsel %vm4413, %v4388, 0
  %4803 = vmatprep.subr.mxu0 0.0
  %4804 = vmatpush1.msra.mxu0 %v4780
  %4805 = vmatprep.subr.mxu0 0.0
  %4806 = vmatpush1.msra.mxu0 %v4781
  %4807 = vmatprep.subr.mxu0 0.0
  %4808 = vmatpush1.msra.mxu0 %v4782
  %4809 = vmatprep.subr.mxu0 0.0
  %4810 = vmatpush1.msra.mxu0 %v4783
  %4811 = vmatprep.subr.mxu0 0.0
  %4812 = vmatpush1.msra.mxu0 %v4784
  %4813 = vmatprep.subr.mxu0 0.0
  %4814 = vmatpush1.msra.mxu0 %v4785
  %4815 = vmatprep.subr.mxu0 0.0
  %4816 = vmatpush1.msra.mxu0 %v4786
  %4817 = vmatprep.subr.mxu0 0.0
  %4818 = vmatpush1.msra.mxu0 %v4787
  %4819 = vmatprep.subr.mxu0 0.0
  %4820 = vmatpush1.msra.mxu0 %v4788
  %4821 = vmatprep.subr.mxu0 0.0
  %4822 = vmatpush1.msra.mxu0 %v4789
  %4823 = vmatprep.subr.mxu0 0.0
  %4824 = vmatpush1.msra.mxu0 %v4790
  %4825 = vmatprep.subr.mxu0 0.0
  %4826 = vmatpush1.msra.mxu0 %v4791
  %4827 = vmatprep.subr.mxu0 0.0
  %4828 = vmatpush1.msra.mxu0 %v4792
  %4829 = vmatprep.subr.mxu0 0.0
  %4830 = vmatpush1.msra.mxu0 %v4793
  %4831 = vmatprep.subr.mxu0 0.0
  %4832 = vmatpush1.msra.mxu0 %v4794
  %4833 = vmatprep.subr.mxu0 0.0
  %4834 = vmatpush1.msra.mxu0 %v4795
  %4835 = vmatprep.subr.mxu0 0.0
  %4836 = vmatpush1.msra.mxu0 %v4796
  %4837 = vmatprep.subr.mxu0 0.0
  %4838 = vmatpush1.msra.mxu0 %v4797
  %4839 = vmatprep.subr.mxu0 0.0
  %4840 = vmatpush1.msra.mxu0 %v4798
  %4841 = vmatprep.subr.mxu0 0.0
  %4842 = vmatpush1.msra.mxu0 %v4799
  %4843 = vmatprep.subr.mxu0 0.0
  %4844 = vmatpush1.msra.mxu0 0.0
  %4845 = vmatprep.subr.mxu0 0.0
  %4846 = vmatpush1.msra.mxu0 0.0
  %4847 = vmatprep.subr.mxu0 0.0
  %4848 = vmatpush1.msra.mxu0 0.0
  %4849 = vmatprep.subr.mxu0 0.0
  %4850 = vmatpush1.msra.mxu0 0.0
  %4851 = vmatprep.subr.mxu0 0.0
  %4852 = vmatpush1.msra.mxu0 0.0
  %4853 = vmatprep.subr.mxu0 0.0
  %4854 = vmatpush1.msra.mxu0 0.0
  %4855 = vmatprep.subr.mxu0 0.0
  %4856 = vmatpush1.msra.mxu0 0.0
  %4857 = vmatprep.subr.mxu0 0.0
  %4858 = vmatpush1.msra.mxu0 0.0
  %4859 = vmatprep.subr.mxu0 0.0
  %4860 = vmatpush1.msra.mxu0 0.0
  %4861 = vmatprep.subr.mxu0 0.0
  %4862 = vmatpush1.msra.mxu0 0.0
  %4863 = vmatprep.subr.mxu0 0.0
  %4864 = vmatpush1.msra.mxu0 0.0
  %4865 = vmatprep.subr.mxu0 0.0
  %4866 = vmatpush1.msra.mxu0 0.0
  %4867 = vmatprep.mubr.f32.mxu0 %v4801
  %4868 = vmatmul.mubr.f32.gmra.mrb[0].mxu0 %v4386
  %v4869 = vpop.f32.mrb[0].mxu0
  %v4870 = vadd.f32 0.0, %v4869
  %v4871 = vpop.f32.mrb[0].mxu0
  %4872 = vdwg.mxu0
  %v4873 = vadd.f32 %v4778, %v4870
  %v4874 = vtanh.pop %v4873
  %v4875 = vld [vmem:[%s10] sm:$0xff]
  %v4876 = vld [vmem:[%s10 + $0x8] sm:$0xff]
  %v4877 = vld [vmem:[%s10 + $0x10] sm:$0xff]
  %v4878 = vld [vmem:[%s10 + $0x18] sm:$0xff]
  %v4879 = vld [vmem:[%s10 + $0x20] sm:$0xff]
  %v4880 = vld [vmem:[%s10 + $0x28] sm:$0xff]
  %v4881 = vld [vmem:[%s10 + $0x30] sm:$0xff]
  %v4882 = vld [vmem:[%s10 + $0x38] sm:$0xff]
  %v4883 = vld [vmem:[%s10 + $0x40] sm:$0xff]
  %v4884 = vld [vmem:[%s10 + $0x48] sm:$0xff]
  %v4885 = vld [vmem:[%s10 + $0x50] sm:$0xff]
  %v4886 = vld [vmem:[%s10 + $0x58] sm:$0xff]
  %v4887 = vld [vmem:[%s10 + $0x60] sm:$0xff]
  %v4888 = vld [vmem:[%s10 + $0x68] sm:$0xff]
  %v4889 = vld [vmem:[%s10 + $0x70] sm:$0xff]
  %v4890 = vld [vmem:[%s11] sm:$0x1]
  %v4892 = vlaneseq
  %v4893 = vshrl.u32 %v4892, 7
  %v4894 = vsub.s32 0, %v4893
  %v4895 = vrot.slane %v4890, %v4894
  %vm4897 = vcmask 982016
  %v4899 = vsel %vm4897, %v4874, 0
  %4901 = vmatprep.subr.mxu0 0.0
  %4902 = vmatpush1.msra.mxu0 %v4875
  %4903 = vmatprep.subr.mxu0 0.0
  %4904 = vmatpush1.msra.mxu0 %v4876
  %4905 = vmatprep.subr.mxu0 0.0
  %4906 = vmatpush1.msra.mxu0 %v4877
  %4907 = vmatprep.subr.mxu0 0.0
  %4908 = vmatpush1.msra.mxu0 %v4878
  %4909 = vmatprep.subr.mxu0 0.0
  %4910 = vmatpush1.msra.mxu0 %v4879
  %4911 = vmatprep.subr.mxu0 0.0
  %4912 = vmatpush1.msra.mxu0 %v4880
  %4913 = vmatprep.subr.mxu0 0.0
  %4914 = vmatpush1.msra.mxu0 %v4881
  %4915 = vmatprep.subr.mxu0 0.0
  %4916 = vmatpush1.msra.mxu0 %v4882
  %4917 = vmatprep.subr.mxu0 0.0
  %4918 = vmatpush1.msra.mxu0 %v4883
  %4919 = vmatprep.subr.mxu0 0.0
  %4920 = vmatpush1.msra.mxu0 %v4884
  %4921 = vmatprep.subr.mxu0 0.0
  %4922 = vmatpush1.msra.mxu0 %v4885
  %4923 = vmatprep.subr.mxu0 0.0
  %4924 = vmatpush1.msra.mxu0 %v4886
  %4925 = vmatprep.subr.mxu0 0.0
  %4926 = vmatpush1.msra.mxu0 %v4887
  %4927 = vmatprep.subr.mxu0 0.0
  %4928 = vmatpush1.msra.mxu0 %v4888
  %4929 = vmatprep.subr.mxu0 0.0
  %4930 = vmatpush1.msra.mxu0 %v4889
  %4931 = vmatprep.subr.mxu0 0.0
  %4932 = vmatpush1.msra.mxu0 0.0
  %4933 = vmatprep.subr.mxu0 0.0
  %4934 = vmatpush1.msra.mxu0 0.0
  %4935 = vmatprep.subr.mxu0 0.0
  %4936 = vmatpush1.msra.mxu0 0.0
  %4937 = vmatprep.subr.mxu0 0.0
  %4938 = vmatpush1.msra.mxu0 0.0
  %4939 = vmatprep.subr.mxu0 0.0
  %4940 = vmatpush1.msra.mxu0 0.0
  %4941 = vmatprep.subr.mxu0 0.0
  %4942 = vmatpush1.msra.mxu0 0.0
  %4943 = vmatprep.subr.mxu0 0.0
  %4944 = vmatpush1.msra.mxu0 0.0
  %4945 = vmatprep.subr.mxu0 0.0
  %4946 = vmatpush1.msra.mxu0 0.0
  %4947 = vmatprep.subr.mxu0 0.0
  %4948 = vmatpush1.msra.mxu0 0.0
  %4949 = vmatprep.subr.mxu0 0.0
  %4950 = vmatpush1.msra.mxu0 0.0
  %4951 = vmatprep.subr.mxu0 0.0
  %4952 = vmatpush1.msra.mxu0 0.0
  %4953 = vmatprep.subr.mxu0 0.0
  %4954 = vmatpush1.msra.mxu0 0.0
  %4955 = vmatprep.subr.mxu0 0.0
  %4956 = vmatpush1.msra.mxu0 0.0
  %4957 = vmatprep.subr.mxu0 0.0
  %4958 = vmatpush1.msra.mxu0 0.0
  %4959 = vmatprep.subr.mxu0 0.0
  %4960 = vmatpush1.msra.mxu0 0.0
  %4961 = vmatprep.subr.mxu0 0.0
  %4962 = vmatpush1.msra.mxu0 0.0
  %4963 = vmatprep.subr.mxu0 0.0
  %4964 = vmatpush1.msra.mxu0 0.0
  %4965 = vmatprep.mubr.f32.mxu0 0.0
  %4966 = vmatmul.mubr.f32.gmra.mrb[0].mxu0 %v4899
  %v4967 = vpop.f32.mrb[0].mxu0
  %v4968 = vadd.f32 %v4895, %v4967
  %v4969 = vpop.f32.mrb[0].mxu0
  %4970 = vdwg.mxu0
  %v4971 = vtanh.pop %v4968
  %v4972 = vld [vmem:[%s12] sm:$0xff]
  %v4973 = vld [vmem:[%s12 + $0x8] sm:$0xff]
  %v4974 = vld [vmem:[%s12 + $0x10] sm:$0xff]
  %v4975 = vld [vmem:[%s12 + $0x18] sm:$0xff]
  %v4976 = vld [vmem:[%s12 + $0x20] sm:$0xff]
  %v4977 = vld [vmem:[%s12 + $0x28] sm:$0xff]
  %v4978 = vld [vmem:[%s12 + $0x30] sm:$0xff]
  %v4979 = vld [vmem:[%s12 + $0x38] sm:$0xff]
  %v4980 = vld [vmem:[%s12 + $0x40] sm:$0xff]
  %v4981 = vld [vmem:[%s12 + $0x48] sm:$0xff]
  %v4982 = vld [vmem:[%s12 + $0x50] sm:$0xf]
  %v4983 = vld [vmem:[%s13] sm:$0x1]
  %v4985 = vlaneseq
  %v4986 = vshrl.u32 %v4985, 7
  %v4987 = vsub.s32 0, %v4986
  %v4988 = vrot.slane %v4983, %v4987
  %v4991 = vsel %vm3021, %v4971, 0
  %v4994 = vsel %vm2855, %v4982, 0
  %4996 = vmatprep.subr.mxu0 0.0
  %4997 = vmatpush1.msra.mxu0 %v4972
  %4998 = vmatprep.subr.mxu0 0.0
  %4999 = vmatpush1.msra.mxu0 %v4973
  %5000 = vmatprep.subr.mxu0 0.0
  %5001 = vmatpush1.msra.mxu0 %v4974
  %5002 = vmatprep.subr.mxu0 0.0
  %5003 = vmatpush1.msra.mxu0 %v4975
  %5004 = vmatprep.subr.mxu0 0.0
  %5005 = vmatpush1.msra.mxu0 %v4976
  %5006 = vmatprep.subr.mxu0 0.0
  %5007 = vmatpush1.msra.mxu0 %v4977
  %5008 = vmatprep.subr.mxu0 0.0
  %5009 = vmatpush1.msra.mxu0 %v4978
  %5010 = vmatprep.subr.mxu0 0.0
  %5011 = vmatpush1.msra.mxu0 %v4979
  %5012 = vmatprep.subr.mxu0 0.0
  %5013 = vmatpush1.msra.mxu0 %v4980
  %5014 = vmatprep.subr.mxu0 0.0
  %5015 = vmatpush1.msra.mxu0 %v4981
  %5016 = vmatprep.subr.mxu0 0.0
  %5017 = vmatpush1.msra.mxu0 %v4994
  %5018 = vmatprep.subr.mxu0 0.0
  %5019 = vmatpush1.msra.mxu0 0.0
  %5020 = vmatprep.subr.mxu0 0.0
  %5021 = vmatpush1.msra.mxu0 0.0
  %5022 = vmatprep.subr.mxu0 0.0
  %5023 = vmatpush1.msra.mxu0 0.0
  %5024 = vmatprep.subr.mxu0 0.0
  %5025 = vmatpush1.msra.mxu0 0.0
  %5026 = vmatprep.subr.mxu0 0.0
  %5027 = vmatpush1.msra.mxu0 0.0
  %5028 = vmatprep.subr.mxu0 0.0
  %5029 = vmatpush1.msra.mxu0 0.0
  %5030 = vmatprep.subr.mxu0 0.0
  %5031 = vmatpush1.msra.mxu0 0.0
  %5032 = vmatprep.subr.mxu0 0.0
  %5033 = vmatpush1.msra.mxu0 0.0
  %5034 = vmatprep.subr.mxu0 0.0
  %5035 = vmatpush1.msra.mxu0 0.0
  %5036 = vmatprep.subr.mxu0 0.0
  %5037 = vmatpush1.msra.mxu0 0.0
  %5038 = vmatprep.subr.mxu0 0.0
  %5039 = vmatpush1.msra.mxu0 0.0
  %5040 = vmatprep.subr.mxu0 0.0
  %5041 = vmatpush1.msra.mxu0 0.0
  %5042 = vmatprep.subr.mxu0 0.0
  %5043 = vmatpush1.msra.mxu0 0.0
  %5044 = vmatprep.subr.mxu0 0.0
  %5045 = vmatpush1.msra.mxu0 0.0
  %5046 = vmatprep.subr.mxu0 0.0
  %5047 = vmatpush1.msra.mxu0 0.0
  %5048 = vmatprep.subr.mxu0 0.0
  %5049 = vmatpush1.msra.mxu0 0.0
  %5050 = vmatprep.subr.mxu0 0.0
  %5051 = vmatpush1.msra.mxu0 0.0
  %5052 = vmatprep.subr.mxu0 0.0
  %5053 = vmatpush1.msra.mxu0 0.0
  %5054 = vmatprep.subr.mxu0 0.0
  %5055 = vmatpush1.msra.mxu0 0.0
  %5056 = vmatprep.subr.mxu0 0.0
  %5057 = vmatpush1.msra.mxu0 0.0
  %5058 = vmatprep.subr.mxu0 0.0
  %5059 = vmatpush1.msra.mxu0 0.0
  %5060 = vmatprep.mubr.f32.mxu0 0.0
  %5061 = vmatmul.mubr.f32.gmra.mrb[0].mxu0 %v4991
  %v5062 = vpop.f32.mrb[0].mxu0
  %v5063 = vadd.f32 %v4988, %v5062
  %v5064 = vpop.f32.mrb[0].mxu0
  %5065 = vdwg.mxu0
  %vm5066 = vcmask 80896
  %5067 = vst.msk [vmem:[%s14] sm:$0xff] %vm5066, %v5063
  // Predicated region
  $region58: #{lenet_tanh_forward.1} parent=0 // pred_check
    _
  $region59: #{lenet_tanh_forward.1} parent=0 // pred_check_branch
    %5069 = sbr.rel (0) target = $region61
  $region60: #{lenet_tanh_forward.1} parent=0 // pred_region
    _
  $region61: #{lenet_tanh_forward.1} parent=0 // pred_fallthru
    _
  // Predicated region
  $region62: #{lenet_tanh_forward.1} parent=0 // pred_check
    _
  $region63: #{lenet_tanh_forward.1} parent=0 // pred_check_branch
    %5071 = sbr.rel (0) target = $region65
  $region64: #{lenet_tanh_forward.1} parent=0 // pred_region
    _
  $region65: #{lenet_tanh_forward.1} parent=0 // pred_fallthru
    _

</llo_original>
